<compile_context>
chip_gen: v5e
topology: v5e:2x2
jax: 0.10.0
libtpu: 0.0.40
codegen_flags: <defaults>
</compile_context>

<pallas_src>
import jax
import jax.numpy as jnp
from jax import lax
from jax.experimental import pallas as pl
from jax.experimental.pallas import tpu as pltpu

VMEM_LIMIT = 24 * 1024 * 1024


# -----------------------------------------------------------------------------
# Fused conv3x3(SAME) + bias + ReLU + maxpool2x2 -- one (batch, row-strip) step.
# -----------------------------------------------------------------------------
def conv_block_kernel(x_ref, w_ref, b_ref, o_ref):
  """x_ref: (1, 16*Cin, TH*Wo) bf16  fully K-folded activation strip
     w_ref: (4*Cout, 16*Cin)   bf16  combined conv+pool weight (transposed)
     b_ref: (Cout, 1)          f32   bias (broadcast along lanes)
     o_ref: (1, Cout, TH*Wo)   bf16  pooled output strip (lane-dense)
  """
  cout = o_ref.shape[1]
  acc = jnp.dot(w_ref[...], x_ref[0],
                preferred_element_type=jnp.float32)          # (4*Cout, TH*Wo)
  # 2x2/stride-2 max-pool == max over the 4 pooling-offset row chunks
  # (sublane slices at multiples of Cout -> aligned, cheap vreg selection).
  z = jnp.maximum(jnp.maximum(acc[0 * cout:1 * cout], acc[1 * cout:2 * cout]),
                  jnp.maximum(acc[2 * cout:3 * cout], acc[3 * cout:4 * cout]))
  z = jnp.maximum(z + b_ref[...], 0.0)                        # bias + ReLU (f32)
  o_ref[0] = z.astype(o_ref.dtype)


def fold_input_nchw(x):
  """(B, C, H, W) -> (B, 16*C, Ho*Wo): pad + fold pool-offset and tap parity
  into channels.  Channel index = (roff*8 + coff*4 + rp*2 + cp)*C + c where
  value = x_pad[b, c, 2*(oh+roff)+rp, 2*(ow+coff)+cp]."""
  B, C, H, W = x.shape
  Ho, Wo = H // 2, W // 2
  xp = jnp.pad(x, ((0, 0), (0, 0), (1, 1), (1, 1)))
  s2d = xp.reshape(B, C, Ho + 1, 2, Wo + 1, 2)       # [b, c, hh, rp, ww, cp]
  pieces = [s2d[:, :, ro:ro + Ho, rp, co:co + Wo, cp]
            for ro in (0, 1) for co in (0, 1) for rp in (0, 1) for cp in (0, 1)]
  folded = jnp.stack(pieces, axis=1).reshape(B, 16 * C, Ho, Wo)
  return folded.reshape(B, 16 * C, Ho * Wo)


def conv_relu_pool(x_nchw, w_t, bias_col, *, row_tile=32):
  """x_nchw: (B, Cin, H, W) bf16; w_t: (4*Cout, 16*Cin) bf16; bias_col: (Cout,1) f32.
  Returns (B, Cout, Ho, Wo) bf16."""
  B, C, H, W = x_nchw.shape
  Cout = w_t.shape[0] // 4
  Ho, Wo = H // 2, W // 2

  folded = fold_input_nchw(x_nchw)                   # (B, 16*C, Ho*Wo) bf16

  # Row-strip tile: multiple of 16 and lane-dense (th*Wo % 128 == 0),
  # otherwise fall back to the full height (full-dim blocks always legal).
  if Ho % row_tile == 0 and (row_tile * Wo) % 128 == 0:
    th = row_tile
  else:
    th = Ho
  nt = Ho // th

  out = pl.pallas_call(
      conv_block_kernel,
      out_shape=jax.ShapeDtypeStruct((B, Cout, Ho * Wo), jnp.bfloat16),
      grid=(B, nt),
      in_specs=[
          pl.BlockSpec((1, 16 * C, th * Wo), lambda b, t: (b, 0, t)),
          pl.BlockSpec((4 * Cout, 16 * C), lambda b, t: (0, 0)),
          pl.BlockSpec((Cout, 1), lambda b, t: (0, 0)),
      ],
      out_specs=pl.BlockSpec((1, Cout, th * Wo), lambda b, t: (b, 0, t)),
      compiler_params=pltpu.CompilerParams(
          dimension_semantics=("parallel", "parallel"),
          vmem_limit_bytes=VMEM_LIMIT),
  )(folded, w_t, bias_col)
  return out.reshape(B, Cout, Ho, Wo)


# -----------------------------------------------------------------------------
# MLP head.
#   Kernel 1: fc1 K-reduction, K-tiled (big tiles) and split across a leading
#             "parallel" axis (2 TensorCores on v7x; serial elsewhere).
#   Kernel 2: combine partials, fc1 bias+ReLU, fc2/fc3/fc_out (tiny).
#   Dropout layers are identity in eval mode.
# -----------------------------------------------------------------------------
def fc1_partial_kernel(x_ref, w_ref, o_ref, acc_ref):
  k = pl.program_id(1)

  @pl.when(k == 0)
  def _():
    acc_ref[...] = jnp.zeros_like(acc_ref)

  acc_ref[...] += jnp.dot(x_ref[...], w_ref[...],
                          preferred_element_type=jnp.float32)

  @pl.when(k == pl.num_programs(1) - 1)
  def _():
    o_ref[0] = acc_ref[...]


def mlp_tail_kernel(p_ref, b1_ref, w2_ref, b2_ref, w3_ref, b3_ref,
                    w4_ref, b4_ref, o_ref):
  h = p_ref[0]
  for s in range(1, p_ref.shape[0]):                 # combine per-core partials
    h = h + p_ref[s]
  h = jnp.maximum(h + b1_ref[...], 0.0)                                 # fc1
  h = jnp.maximum(jnp.dot(h, w2_ref[...],
                          preferred_element_type=jnp.float32)
                  + b2_ref[...], 0.0)                                   # fc2
  h = jnp.maximum(jnp.dot(h, w3_ref[...],
                          preferred_element_type=jnp.float32)
                  + b3_ref[...], 0.0)                                   # fc3
  o_ref[...] = (jnp.dot(h, w4_ref[...],
                        preferred_element_type=jnp.float32)
                + b4_ref[...])                                          # fc_out


def pick_k_tile(K, target=16384):
  """Largest convenient K tile: ~16K at full scale (nk ~ 16 instead of 512)."""
  if K <= target:
    return K // 2 if K % 256 == 0 else K
  t = target
  while t > 128 and K % t != 0:
    t //= 2
  return t if K % t == 0 else K


def mlp_head(feat, kp):
  B, K = feat.shape
  n1 = kp["fc1_w_bf16"].shape[1]                     # padded fc1 width (128)
  n_out = kp["fc_out_w"].shape[1]
  tk = pick_k_tile(K)
  nk = K // tk
  ksplit = 2 if nk % 2 == 0 else 1                   # 2-way core split when even
  nk_per = nk // ksplit

  partials = pl.pallas_call(
      fc1_partial_kernel,
      out_shape=jax.ShapeDtypeStruct((ksplit, B, n1), jnp.float32),
      grid=(ksplit, nk_per),
      in_specs=[
          pl.BlockSpec((B, tk), lambda c, k: (0, c * nk_per + k)),
          pl.BlockSpec((tk, n1), lambda c, k: (c * nk_per + k, 0)),
      ],
      out_specs=pl.BlockSpec((1, B, n1), lambda c, k: (c, 0, 0)),
      scratch_shapes=[pltpu.VMEM((B, n1), jnp.float32)],
      compiler_params=pltpu.CompilerParams(
          dimension_semantics=("parallel", "arbitrary"),
          vmem_limit_bytes=VMEM_LIMIT),
  )(feat, kp["fc1_w_bf16"])

  return pl.pallas_call(
      mlp_tail_kernel,
      out_shape=jax.ShapeDtypeStruct((B, n_out), jnp.float32),
      compiler_params=pltpu.CompilerParams(vmem_limit_bytes=VMEM_LIMIT),
  )(partials, kp["fc1_b2d"], kp["fc2_w"], kp["fc2_b2d"],
    kp["fc3_w"], kp["fc3_b2d"], kp["fc_out_w"], kp["fc_out_b2d"])


# -----------------------------------------------------------------------------
# Full model forward (Pallas kernels + reshape/pad glue).
# -----------------------------------------------------------------------------
def model_forward(x_nchw, kp):
  x = x_nchw.astype(jnp.bfloat16)                    # stays NCHW throughout
  for i in range(1, 5):
    x = conv_relu_pool(x, kp[f"conv{i}_wt"], kp[f"conv{i}_bcol"])
  B = x.shape[0]
  feat = x.reshape(B, -1)         # NCHW flatten -> (c, h, w) order, as in torch
  return mlp_head(feat, kp)


# -----------------------------------------------------------------------------
# Parameter construction / packing.
# -----------------------------------------------------------------------------
def init_params(key, H, W, num_classes=4):
  ks = iter(jax.random.split(key, 20))

  def conv(cin, cout):
    s = 1.0 / jnp.sqrt(cin * 9.0)
    return (s * jax.random.normal(next(ks), (3, 3, cin, cout), jnp.float32),
            s * jax.random.normal(next(ks), (cout,), jnp.float32))

  def lin(fin, fout):
    s = 1.0 / jnp.sqrt(float(fin))
    return (s * jax.random.normal(next(ks), (fin, fout), jnp.float32),
            s * jax.random.normal(next(ks), (fout,), jnp.float32))

  p = {}
  p["conv1_w"], p["conv1_b"] = conv(3, 8)
  p["conv2_w"], p["conv2_b"] = conv(8, 16)
  p["conv3_w"], p["conv3_b"] = conv(16, 32)
  p["conv4_w"], p["conv4_b"] = conv(32, 64)
  flattened = 64 * (H // 16) * (W // 16)   # = 64*64*64 for the 1024x1024 input
  p["fc1_w"], p["fc1_b"] = lin(flattened, 64)
  p["fc2_w"], p["fc2_b"] = lin(64, 128)
  p["fc3_w"], p["fc3_b"] = lin(128, 256)
  p["fc_out_w"], p["fc_out_b"] = lin(256, num_classes)

  # Weights the Pallas path streams as bf16 are pre-rounded so the f32
  # reference uses identical effective weights (only activation rounding
  # differs between the two paths).
  for name in ["conv1_w", "conv2_w", "conv3_w", "conv4_w", "fc1_w"]:
    p[name] = p[name].astype(jnp.bfloat16).astype(jnp.float32)
  return p


def build_weight_t(w):
  """HWIO (3,3,Cin,Cout) -> (4*Cout, 16*Cin) combined conv+pool weight.

  Row index = (pool_i*2 + pool_j)*Cout + cout           (4 pooling offsets)
  Col index = (roff*8 + coff*4 + rp*2 + cp)*Cin + cin   (matches fold_input_nchw)
  """
  cin, cout = w.shape[2], w.shape[3]
  wt = jnp.zeros((4 * cout, 16 * cin), jnp.float32)
  for i in range(2):
    for j in range(2):
      for ky in range(3):
        for kx in range(3):
          ro, rp = divmod(i + ky, 2)
          co, cp = divmod(j + kx, 2)
          fold = ro * 8 + co * 4 + rp * 2 + cp
          nsl = slice((i * 2 + j) * cout, (i * 2 + j + 1) * cout)
          ksl = slice(fold * cin, (fold + 1) * cin)
          wt = wt.at[nsl, ksl].set(w[ky, kx].T)
  return wt


def prepare_pallas_params(p, n1_pad=128):
  kp = {}
  for i in range(1, 5):
    kp[f"conv{i}_wt"] = build_weight_t(p[f"conv{i}_w"]).astype(jnp.bfloat16)
    kp[f"conv{i}_bcol"] = p[f"conv{i}_b"].reshape(-1, 1)
  n1 = p["fc1_w"].shape[1]
  pad = n1_pad - n1
  # fc1 width padded 64 -> 128 so the accumulator / weight slab are lane-dense;
  # padded fc2 rows are zero so the math is unchanged.
  kp["fc1_w_bf16"] = jnp.pad(p["fc1_w"], ((0, 0), (0, pad))).astype(jnp.bfloat16)
  kp["fc1_b2d"] = jnp.pad(p["fc1_b"], ((0, pad),)).reshape(1, -1)
  kp["fc2_w"] = jnp.pad(p["fc2_w"], ((0, pad), (0, 0)))
  kp["fc2_b2d"] = p["fc2_b"].reshape(1, -1)
  kp["fc3_w"] = p["fc3_w"]
  kp["fc3_b2d"] = p["fc3_b"].reshape(1, -1)
  kp["fc_out_w"] = p["fc_out_w"]
  kp["fc_out_b2d"] = p["fc_out_b"].reshape(1, -1)
  return kp


# -----------------------------------------------------------------------------
# Plain-JAX f32 reference (numerical sanity check).
# -----------------------------------------------------------------------------
def ref_forward(x_nchw, p):
  x = jnp.transpose(x_nchw, (0, 2, 3, 1))
  for i in range(1, 5):
    y = lax.conv_general_dilated(
        x, p[f"conv{i}_w"], window_strides=(1, 1), padding="SAME",
        dimension_numbers=("NHWC", "HWIO", "NHWC"))
    y = jnp.maximum(y + p[f"conv{i}_b"], 0.0)
    x = lax.reduce_window(y, -jnp.inf, lax.max,
                          (1, 2, 2, 1), (1, 2, 2, 1), "VALID")
  B = x.shape[0]
  h = jnp.transpose(x, (0, 3, 1, 2)).reshape(B, -1)
  h = jnp.maximum(h @ p["fc1_w"] + p["fc1_b"], 0.0)
  h = jnp.maximum(h @ p["fc2_w"] + p["fc2_b"], 0.0)
  h = jnp.maximum(h @ p["fc3_w"] + p["fc3_b"], 0.0)
  return h @ p["fc_out_w"] + p["fc_out_b"]


if __name__ == "__main__":
  key = jax.random.PRNGKey(0)
  kx, kparam = jax.random.split(key)

  # Small stand-in for the 1024x1024 input (must be divisible by 16 so all
  # four pool stages stay integral).  Flattened fc1 features scale accordingly.
  B, H, W = 2, 128, 128
  x = jax.random.normal(kx, (B, 3, H, W), jnp.float32)
  x = x.astype(jnp.bfloat16).astype(jnp.float32)   # identical values both paths

  params = init_params(kparam, H, W, num_classes=4)
  kparams = prepare_pallas_params(params)

  out = jax.block_until_ready(jax.jit(model_forward)(x, kparams))
  ref = jax.block_until_ready(ref_forward(x, params))

  assert out.shape == (B, 4), out.shape
  err = float(jnp.max(jnp.abs(out - ref)))
  scale = float(jnp.max(jnp.abs(ref)))
  # bf16 activation / weight streaming => looser tolerance than pure f32
  # (a packing bug in build_weight_t / fold_input_nchw would blow far past it).
  assert err <= 0.08 * scale + 0.02, (err, scale)
  print("KERNEL_OK")
</pallas_src>

<mosaic_0001>
module attributes {stable_mosaic.version = 11 : i64} {
  func.func @conv_block_kernel(%arg0: i32, %arg1: i32, %arg2: memref<1x48x2048xbf16, #tpu.memory_space<vmem>>, %arg3: memref<32x48xbf16, #tpu.memory_space<vmem>>, %arg4: memref<8x1xf32, #tpu.memory_space<vmem>>, %arg5: memref<1x8x2048xbf16, #tpu.memory_space<vmem>>) attributes {dimension_semantics = [#tpu.dimension_semantics<parallel>, #tpu.dimension_semantics<parallel>], iteration_bounds = array<i64: 2, 2>, scalar_prefetch = 0 : i64, scratch_operands = 0 : i64, tpu.core_type = #tpu.core_type<tc>, window_params = [{transform_indices = @transform_0, window_bounds = array<i64: 1, 48, 2048>}, {pipeline_mode = #tpu.pipeline_mode<synchronous>, transform_indices = @transform_1, window_bounds = array<i64: 32, 48>}, {pipeline_mode = #tpu.pipeline_mode<synchronous>, transform_indices = @transform_2, window_bounds = array<i64: 8, 1>}, {transform_indices = @transform_3, window_bounds = array<i64: 1, 8, 2048>}]} {
    %c0 = arith.constant 0 : index
    %c0_0 = arith.constant 0 : index
    %0 = vector.load %arg3[%c0, %c0_0] : memref<32x48xbf16, #tpu.memory_space<vmem>>, vector<32x48xbf16>
    %c0_1 = arith.constant 0 : index
    %c0_2 = arith.constant 0 : index
    %c0_3 = arith.constant 0 : index
    %1 = vector.load %arg2[%c0_1, %c0_2, %c0_3] : memref<1x48x2048xbf16, #tpu.memory_space<vmem>>, vector<1x48x2048xbf16>
    %2 = vector.shape_cast %1 : vector<1x48x2048xbf16> to vector<48x2048xbf16>
    %cst = arith.constant dense<0.000000e+00> : vector<32x2048xf32>
    %3 = tpu.matmul %0, %2, %cst {dimension_numbers = #tpu.dot_dimension_numbers<[1], [0], [0], [1], [0, 0, 1, 1], [], []>} : vector<32x48xbf16>, vector<48x2048xbf16>, vector<32x2048xf32> -> vector<32x2048xf32>
    %4 = vector.extract_strided_slice %3 {offsets = [0, 0], sizes = [8, 2048], strides = [1, 1]} : vector<32x2048xf32> to vector<8x2048xf32>
    %5 = vector.extract_strided_slice %3 {offsets = [8, 0], sizes = [8, 2048], strides = [1, 1]} : vector<32x2048xf32> to vector<8x2048xf32>
    %6 = arith.maximumf %4, %5 : vector<8x2048xf32>
    %7 = vector.extract_strided_slice %3 {offsets = [16, 0], sizes = [8, 2048], strides = [1, 1]} : vector<32x2048xf32> to vector<8x2048xf32>
    %8 = vector.extract_strided_slice %3 {offsets = [24, 0], sizes = [8, 2048], strides = [1, 1]} : vector<32x2048xf32> to vector<8x2048xf32>
    %9 = arith.maximumf %7, %8 : vector<8x2048xf32>
    %10 = arith.maximumf %6, %9 : vector<8x2048xf32>
    %c0_4 = arith.constant 0 : index
    %c0_5 = arith.constant 0 : index
    %11 = vector.load %arg4[%c0_4, %c0_5] : memref<8x1xf32, #tpu.memory_space<vmem>>, vector<8x1xf32>
    %12 = vector.broadcast %11 : vector<8x1xf32> to vector<8x2048xf32>
    %13 = arith.addf %10, %12 : vector<8x2048xf32>
    %cst_6 = arith.constant 0.000000e+00 : f32
    %14 = vector.broadcast %cst_6 : f32 to vector<8x2048xf32>
    %15 = arith.maximumf %13, %14 : vector<8x2048xf32>
    %16 = arith.truncf %15 : vector<8x2048xf32> to vector<8x2048xbf16>
    %c0_7 = arith.constant 0 : index
    %c0_8 = arith.constant 0 : index
    %c0_9 = arith.constant 0 : index
    %17 = vector.load %arg5[%c0_7, %c0_8, %c0_9] : memref<1x8x2048xbf16, #tpu.memory_space<vmem>>, vector<1x8x2048xbf16>
    %18 = vector.shape_cast %17 : vector<1x8x2048xbf16> to vector<8x2048xbf16>
    %19 = vector.shape_cast %16 : vector<8x2048xbf16> to vector<1x8x2048xbf16>
    tpu.vector_store %arg5[%c0_7, %c0_8, %c0_9], %19 {strides = array<i32>} : memref<1x8x2048xbf16, #tpu.memory_space<vmem>>, vector<1x8x2048xbf16>,
    return
  }
  func.func @transform_0(%arg0: i32, %arg1: i32) -> (i32, i32, i32) {
    %c0_i32 = arith.constant 0 : i32
    %c0_i32_0 = arith.constant 0 : i32
    return %arg0, %c0_i32, %arg1 : i32, i32, i32
  }
  func.func @transform_1(%arg0: i32, %arg1: i32) -> (i32, i32) {
    %c0_i32 = arith.constant 0 : i32
    %c0_i32_0 = arith.constant 0 : i32
    %c0_i32_1 = arith.constant 0 : i32
    return %c0_i32, %c0_i32_0 : i32, i32
  }
  func.func @transform_2(%arg0: i32, %arg1: i32) -> (i32, i32) {
    %c0_i32 = arith.constant 0 : i32
    %c0_i32_0 = arith.constant 0 : i32
    %c0_i32_1 = arith.constant 0 : i32
    return %c0_i32, %c0_i32_0 : i32, i32
  }
  func.func @transform_3(%arg0: i32, %arg1: i32) -> (i32, i32, i32) {
    %c0_i32 = arith.constant 0 : i32
    %c0_i32_0 = arith.constant 0 : i32
    return %arg0, %c0_i32, %arg1 : i32, i32, i32
  }
}

module attributes {stable_mosaic.version = 11 : i64} {
  func.func @conv_block_kernel(%arg0: i32, %arg1: i32, %arg2: memref<1x128x1024xbf16, #tpu.memory_space<vmem>>, %arg3: memref<64x128xbf16, #tpu.memory_space<vmem>>, %arg4: memref<16x1xf32, #tpu.memory_space<vmem>>, %arg5: memref<1x16x1024xbf16, #tpu.memory_space<vmem>>) attributes {dimension_semantics = [#tpu.dimension_semantics<parallel>, #tpu.dimension_semantics<parallel>], iteration_bounds = array<i64: 2, 1>, scalar_prefetch = 0 : i64, scratch_operands = 0 : i64, tpu.core_type = #tpu.core_type<tc>, window_params = [{transform_indices = @transform_0, window_bounds = array<i64: 1, 128, 1024>}, {pipeline_mode = #tpu.pipeline_mode<synchronous>, transform_indices = @transform_1, window_bounds = array<i64: 64, 128>}, {pipeline_mode = #tpu.pipeline_mode<synchronous>, transform_indices = @transform_2, window_bounds = array<i64: 16, 1>}, {transform_indices = @transform_3, window_bounds = array<i64: 1, 16, 1024>}]} {
    %c0 = arith.constant 0 : index
    %c0_0 = arith.constant 0 : index
    %0 = vector.load %arg3[%c0, %c0_0] : memref<64x128xbf16, #tpu.memory_space<vmem>>, vector<64x128xbf16>
    %c0_1 = arith.constant 0 : index
    %c0_2 = arith.constant 0 : index
    %c0_3 = arith.constant 0 : index
    %1 = vector.load %arg2[%c0_1, %c0_2, %c0_3] : memref<1x128x1024xbf16, #tpu.memory_space<vmem>>, vector<1x128x1024xbf16>
    %2 = vector.shape_cast %1 : vector<1x128x1024xbf16> to vector<128x1024xbf16>
    %cst = arith.constant dense<0.000000e+00> : vector<64x1024xf32>
    %3 = tpu.matmul %0, %2, %cst {dimension_numbers = #tpu.dot_dimension_numbers<[1], [0], [0], [1], [0, 0, 1, 1], [], []>} : vector<64x128xbf16>, vector<128x1024xbf16>, vector<64x1024xf32> -> vector<64x1024xf32>
    %4 = vector.extract_strided_slice %3 {offsets = [0, 0], sizes = [16, 1024], strides = [1, 1]} : vector<64x1024xf32> to vector<16x1024xf32>
    %5 = vector.extract_strided_slice %3 {offsets = [16, 0], sizes = [16, 1024], strides = [1, 1]} : vector<64x1024xf32> to vector<16x1024xf32>
    %6 = arith.maximumf %4, %5 : vector<16x1024xf32>
    %7 = vector.extract_strided_slice %3 {offsets = [32, 0], sizes = [16, 1024], strides = [1, 1]} : vector<64x1024xf32> to vector<16x1024xf32>
    %8 = vector.extract_strided_slice %3 {offsets = [48, 0], sizes = [16, 1024], strides = [1, 1]} : vector<64x1024xf32> to vector<16x1024xf32>
    %9 = arith.maximumf %7, %8 : vector<16x1024xf32>
    %10 = arith.maximumf %6, %9 : vector<16x1024xf32>
    %c0_4 = arith.constant 0 : index
    %c0_5 = arith.constant 0 : index
    %11 = vector.load %arg4[%c0_4, %c0_5] : memref<16x1xf32, #tpu.memory_space<vmem>>, vector<16x1xf32>
    %12 = vector.broadcast %11 : vector<16x1xf32> to vector<16x1024xf32>
    %13 = arith.addf %10, %12 : vector<16x1024xf32>
    %cst_6 = arith.constant 0.000000e+00 : f32
    %14 = vector.broadcast %cst_6 : f32 to vector<16x1024xf32>
    %15 = arith.maximumf %13, %14 : vector<16x1024xf32>
    %16 = arith.truncf %15 : vector<16x1024xf32> to vector<16x1024xbf16>
    %c0_7 = arith.constant 0 : index
    %c0_8 = arith.constant 0 : index
    %c0_9 = arith.constant 0 : index
    %17 = vector.load %arg5[%c0_7, %c0_8, %c0_9] : memref<1x16x1024xbf16, #tpu.memory_space<vmem>>, vector<1x16x1024xbf16>
    %18 = vector.shape_cast %17 : vector<1x16x1024xbf16> to vector<16x1024xbf16>
    %19 = vector.shape_cast %16 : vector<16x1024xbf16> to vector<1x16x1024xbf16>
    tpu.vector_store %arg5[%c0_7, %c0_8, %c0_9], %19 {strides = array<i32>} : memref<1x16x1024xbf16, #tpu.memory_space<vmem>>, vector<1x16x1024xbf16>,
    return
  }
  func.func @transform_0(%arg0: i32, %arg1: i32) -> (i32, i32, i32) {
    %c0_i32 = arith.constant 0 : i32
    %c0_i32_0 = arith.constant 0 : i32
    return %arg0, %c0_i32, %arg1 : i32, i32, i32
  }
  func.func @transform_1(%arg0: i32, %arg1: i32) -> (i32, i32) {
    %c0_i32 = arith.constant 0 : i32
    %c0_i32_0 = arith.constant 0 : i32
    %c0_i32_1 = arith.constant 0 : i32
    return %c0_i32, %c0_i32_0 : i32, i32
  }
  func.func @transform_2(%arg0: i32, %arg1: i32) -> (i32, i32) {
    %c0_i32 = arith.constant 0 : i32
    %c0_i32_0 = arith.constant 0 : i32
    %c0_i32_1 = arith.constant 0 : i32
    return %c0_i32, %c0_i32_0 : i32, i32
  }
  func.func @transform_3(%arg0: i32, %arg1: i32) -> (i32, i32, i32) {
    %c0_i32 = arith.constant 0 : i32
    %c0_i32_0 = arith.constant 0 : i32
    return %arg0, %c0_i32, %arg1 : i32, i32, i32
  }
}

module attributes {stable_mosaic.version = 11 : i64} {
  func.func @conv_block_kernel(%arg0: i32, %arg1: i32, %arg2: memref<1x256x256xbf16, #tpu.memory_space<vmem>>, %arg3: memref<128x256xbf16, #tpu.memory_space<vmem>>, %arg4: memref<32x1xf32, #tpu.memory_space<vmem>>, %arg5: memref<1x32x256xbf16, #tpu.memory_space<vmem>>) attributes {dimension_semantics = [#tpu.dimension_semantics<parallel>, #tpu.dimension_semantics<parallel>], iteration_bounds = array<i64: 2, 1>, scalar_prefetch = 0 : i64, scratch_operands = 0 : i64, tpu.core_type = #tpu.core_type<tc>, window_params = [{transform_indices = @transform_0, window_bounds = array<i64: 1, 256, 256>}, {pipeline_mode = #tpu.pipeline_mode<synchronous>, transform_indices = @transform_1, window_bounds = array<i64: 128, 256>}, {pipeline_mode = #tpu.pipeline_mode<synchronous>, transform_indices = @transform_2, window_bounds = array<i64: 32, 1>}, {transform_indices = @transform_3, window_bounds = array<i64: 1, 32, 256>}]} {
    %c0 = arith.constant 0 : index
    %c0_0 = arith.constant 0 : index
    %0 = vector.load %arg3[%c0, %c0_0] : memref<128x256xbf16, #tpu.memory_space<vmem>>, vector<128x256xbf16>
    %c0_1 = arith.constant 0 : index
    %c0_2 = arith.constant 0 : index
    %c0_3 = arith.constant 0 : index
    %1 = vector.load %arg2[%c0_1, %c0_2, %c0_3] : memref<1x256x256xbf16, #tpu.memory_space<vmem>>, vector<1x256x256xbf16>
    %2 = vector.shape_cast %1 : vector<1x256x256xbf16> to vector<256x256xbf16>
    %cst = arith.constant dense<0.000000e+00> : vector<128x256xf32>
    %3 = tpu.matmul %0, %2, %cst {dimension_numbers = #tpu.dot_dimension_numbers<[1], [0], [0], [1], [0, 0, 1, 1], [], []>} : vector<128x256xbf16>, vector<256x256xbf16>, vector<128x256xf32> -> vector<128x256xf32>
    %4 = vector.extract_strided_slice %3 {offsets = [0, 0], sizes = [32, 256], strides = [1, 1]} : vector<128x256xf32> to vector<32x256xf32>
    %5 = vector.extract_strided_slice %3 {offsets = [32, 0], sizes = [32, 256], strides = [1, 1]} : vector<128x256xf32> to vector<32x256xf32>
    %6 = arith.maximumf %4, %5 : vector<32x256xf32>
    %7 = vector.extract_strided_slice %3 {offsets = [64, 0], sizes = [32, 256], strides = [1, 1]} : vector<128x256xf32> to vector<32x256xf32>
    %8 = vector.extract_strided_slice %3 {offsets = [96, 0], sizes = [32, 256], strides = [1, 1]} : vector<128x256xf32> to vector<32x256xf32>
    %9 = arith.maximumf %7, %8 : vector<32x256xf32>
    %10 = arith.maximumf %6, %9 : vector<32x256xf32>
    %c0_4 = arith.constant 0 : index
    %c0_5 = arith.constant 0 : index
    %11 = vector.load %arg4[%c0_4, %c0_5] : memref<32x1xf32, #tpu.memory_space<vmem>>, vector<32x1xf32>
    %12 = vector.broadcast %11 : vector<32x1xf32> to vector<32x256xf32>
    %13 = arith.addf %10, %12 : vector<32x256xf32>
    %cst_6 = arith.constant 0.000000e+00 : f32
    %14 = vector.broadcast %cst_6 : f32 to vector<32x256xf32>
    %15 = arith.maximumf %13, %14 : vector<32x256xf32>
    %16 = arith.truncf %15 : vector<32x256xf32> to vector<32x256xbf16>
    %c0_7 = arith.constant 0 : index
    %c0_8 = arith.constant 0 : index
    %c0_9 = arith.constant 0 : index
    %17 = vector.load %arg5[%c0_7, %c0_8, %c0_9] : memref<1x32x256xbf16, #tpu.memory_space<vmem>>, vector<1x32x256xbf16>
    %18 = vector.shape_cast %17 : vector<1x32x256xbf16> to vector<32x256xbf16>
    %19 = vector.shape_cast %16 : vector<32x256xbf16> to vector<1x32x256xbf16>
    tpu.vector_store %arg5[%c0_7, %c0_8, %c0_9], %19 {strides = array<i32>} : memref<1x32x256xbf16, #tpu.memory_space<vmem>>, vector<1x32x256xbf16>,
    return
  }
  func.func @transform_0(%arg0: i32, %arg1: i32) -> (i32, i32, i32) {
    %c0_i32 = arith.constant 0 : i32
    %c0_i32_0 = arith.constant 0 : i32
    return %arg0, %c0_i32, %arg1 : i32, i32, i32
  }
  func.func @transform_1(%arg0: i32, %arg1: i32) -> (i32, i32) {
    %c0_i32 = arith.constant 0 : i32
    %c0_i32_0 = arith.constant 0 : i32
    %c0_i32_1 = arith.constant 0 : i32
    return %c0_i32, %c0_i32_0 : i32, i32
  }
  func.func @transform_2(%arg0: i32, %arg1: i32) -> (i32, i32) {
    %c0_i32 = arith.constant 0 : i32
    %c0_i32_0 = arith.constant 0 : i32
    %c0_i32_1 = arith.constant 0 : i32
    return %c0_i32, %c0_i32_0 : i32, i32
  }
  func.func @transform_3(%arg0: i32, %arg1: i32) -> (i32, i32, i32) {
    %c0_i32 = arith.constant 0 : i32
    %c0_i32_0 = arith.constant 0 : i32
    return %arg0, %c0_i32, %arg1 : i32, i32, i32
  }
}

module attributes {stable_mosaic.version = 11 : i64} {
  func.func @conv_block_kernel(%arg0: i32, %arg1: i32, %arg2: memref<1x512x64xbf16, #tpu.memory_space<vmem>>, %arg3: memref<256x512xbf16, #tpu.memory_space<vmem>>, %arg4: memref<64x1xf32, #tpu.memory_space<vmem>>, %arg5: memref<1x64x64xbf16, #tpu.memory_space<vmem>>) attributes {dimension_semantics = [#tpu.dimension_semantics<parallel>, #tpu.dimension_semantics<parallel>], iteration_bounds = array<i64: 2, 1>, scalar_prefetch = 0 : i64, scratch_operands = 0 : i64, tpu.core_type = #tpu.core_type<tc>, window_params = [{transform_indices = @transform_0, window_bounds = array<i64: 1, 512, 64>}, {pipeline_mode = #tpu.pipeline_mode<synchronous>, transform_indices = @transform_1, window_bounds = array<i64: 256, 512>}, {pipeline_mode = #tpu.pipeline_mode<synchronous>, transform_indices = @transform_2, window_bounds = array<i64: 64, 1>}, {transform_indices = @transform_3, window_bounds = array<i64: 1, 64, 64>}]} {
    %c0 = arith.constant 0 : index
    %c0_0 = arith.constant 0 : index
    %0 = vector.load %arg3[%c0, %c0_0] : memref<256x512xbf16, #tpu.memory_space<vmem>>, vector<256x512xbf16>
    %c0_1 = arith.constant 0 : index
    %c0_2 = arith.constant 0 : index
    %c0_3 = arith.constant 0 : index
    %1 = vector.load %arg2[%c0_1, %c0_2, %c0_3] : memref<1x512x64xbf16, #tpu.memory_space<vmem>>, vector<1x512x64xbf16>
    %2 = vector.shape_cast %1 : vector<1x512x64xbf16> to vector<512x64xbf16>
    %cst = arith.constant dense<0.000000e+00> : vector<256x64xf32>
    %3 = tpu.matmul %0, %2, %cst {dimension_numbers = #tpu.dot_dimension_numbers<[1], [0], [0], [1], [0, 0, 1, 1], [], []>} : vector<256x512xbf16>, vector<512x64xbf16>, vector<256x64xf32> -> vector<256x64xf32>
    %4 = vector.extract_strided_slice %3 {offsets = [0, 0], sizes = [64, 64], strides = [1, 1]} : vector<256x64xf32> to vector<64x64xf32>
    %5 = vector.extract_strided_slice %3 {offsets = [64, 0], sizes = [64, 64], strides = [1, 1]} : vector<256x64xf32> to vector<64x64xf32>
    %6 = arith.maximumf %4, %5 : vector<64x64xf32>
    %7 = vector.extract_strided_slice %3 {offsets = [128, 0], sizes = [64, 64], strides = [1, 1]} : vector<256x64xf32> to vector<64x64xf32>
    %8 = vector.extract_strided_slice %3 {offsets = [192, 0], sizes = [64, 64], strides = [1, 1]} : vector<256x64xf32> to vector<64x64xf32>
    %9 = arith.maximumf %7, %8 : vector<64x64xf32>
    %10 = arith.maximumf %6, %9 : vector<64x64xf32>
    %c0_4 = arith.constant 0 : index
    %c0_5 = arith.constant 0 : index
    %11 = vector.load %arg4[%c0_4, %c0_5] : memref<64x1xf32, #tpu.memory_space<vmem>>, vector<64x1xf32>
    %12 = vector.broadcast %11 : vector<64x1xf32> to vector<64x64xf32>
    %13 = arith.addf %10, %12 : vector<64x64xf32>
    %cst_6 = arith.constant 0.000000e+00 : f32
    %14 = vector.broadcast %cst_6 : f32 to vector<64x64xf32>
    %15 = arith.maximumf %13, %14 : vector<64x64xf32>
    %16 = arith.truncf %15 : vector<64x64xf32> to vector<64x64xbf16>
    %c0_7 = arith.constant 0 : index
    %c0_8 = arith.constant 0 : index
    %c0_9 = arith.constant 0 : index
    %17 = vector.load %arg5[%c0_7, %c0_8, %c0_9] : memref<1x64x64xbf16, #tpu.memory_space<vmem>>, vector<1x64x64xbf16>
    %18 = vector.shape_cast %17 : vector<1x64x64xbf16> to vector<64x64xbf16>
    %19 = vector.shape_cast %16 : vector<64x64xbf16> to vector<1x64x64xbf16>
    tpu.vector_store %arg5[%c0_7, %c0_8, %c0_9], %19 {strides = array<i32>} : memref<1x64x64xbf16, #tpu.memory_space<vmem>>, vector<1x64x64xbf16>,
    return
  }
  func.func @transform_0(%arg0: i32, %arg1: i32) -> (i32, i32, i32) {
    %c0_i32 = arith.constant 0 : i32
    %c0_i32_0 = arith.constant 0 : i32
    return %arg0, %c0_i32, %arg1 : i32, i32, i32
  }
  func.func @transform_1(%arg0: i32, %arg1: i32) -> (i32, i32) {
    %c0_i32 = arith.constant 0 : i32
    %c0_i32_0 = arith.constant 0 : i32
    %c0_i32_1 = arith.constant 0 : i32
    return %c0_i32, %c0_i32_0 : i32, i32
  }
  func.func @transform_2(%arg0: i32, %arg1: i32) -> (i32, i32) {
    %c0_i32 = arith.constant 0 : i32
    %c0_i32_0 = arith.constant 0 : i32
    %c0_i32_1 = arith.constant 0 : i32
    return %c0_i32, %c0_i32_0 : i32, i32
  }
  func.func @transform_3(%arg0: i32, %arg1: i32) -> (i32, i32, i32) {
    %c0_i32 = arith.constant 0 : i32
    %c0_i32_0 = arith.constant 0 : i32
    return %arg0, %c0_i32, %arg1 : i32, i32, i32
  }
}

module attributes {stable_mosaic.version = 11 : i64} {
  func.func @fc1_partial_kernel(%arg0: i32, %arg1: i32, %arg2: memref<2x2048xbf16, #tpu.memory_space<vmem>>, %arg3: memref<2048x128xbf16, #tpu.memory_space<vmem>>, %arg4: memref<1x2x128xf32, #tpu.memory_space<vmem>>, %arg5: memref<2x128xf32, #tpu.memory_space<vmem>>) attributes {dimension_semantics = [#tpu.dimension_semantics<parallel>, #tpu.dimension_semantics<arbitrary>], iteration_bounds = array<i64: 2, 1>, scalar_prefetch = 0 : i64, scratch_operands = 1 : i64, tpu.core_type = #tpu.core_type<tc>, window_params = [{transform_indices = @transform_0, window_bounds = array<i64: 2, 2048>}, {transform_indices = @transform_1, window_bounds = array<i64: 2048, 128>}, {transform_indices = @transform_2, window_bounds = array<i64: 1, 2, 128>}]} {
    %c0_i32 = arith.constant 0 : i32
    %0 = arith.cmpi eq, %arg1, %c0_i32 : i32
    %1 = arith.extui %0 : i1 to i32
    %c0_i32_0 = arith.constant 0 : i32
    %2 = arith.cmpi ne, %1, %c0_i32_0 : i32
    scf.if %2 {
      %cst_10 = arith.constant 0.000000e+00 : f32
      %12 = vector.broadcast %cst_10 : f32 to vector<2x128xf32>
      %c0_11 = arith.constant 0 : index
      %c0_12 = arith.constant 0 : index
      %13 = vector.load %arg5[%c0_11, %c0_12] : memref<2x128xf32, #tpu.memory_space<vmem>>, vector<2x128xf32>
      tpu.vector_store %arg5[%c0_11, %c0_12], %12 {strides = array<i32>} : memref<2x128xf32, #tpu.memory_space<vmem>>, vector<2x128xf32>,
    } else {
    }
    %c0 = arith.constant 0 : index
    %c0_1 = arith.constant 0 : index
    %3 = vector.load %arg5[%c0, %c0_1] : memref<2x128xf32, #tpu.memory_space<vmem>>, vector<2x128xf32>
    %c0_2 = arith.constant 0 : index
    %c0_3 = arith.constant 0 : index
    %4 = vector.load %arg2[%c0_2, %c0_3] : memref<2x2048xbf16, #tpu.memory_space<vmem>>, vector<2x2048xbf16>
    %c0_4 = arith.constant 0 : index
    %c0_5 = arith.constant 0 : index
    %5 = vector.load %arg3[%c0_4, %c0_5] : memref<2048x128xbf16, #tpu.memory_space<vmem>>, vector<2048x128xbf16>
    %cst = arith.constant dense<0.000000e+00> : vector<2x128xf32>
    %6 = tpu.matmul %4, %5, %cst {dimension_numbers = #tpu.dot_dimension_numbers<[1], [0], [0], [1], [0, 0, 1, 1], [], []>} : vector<2x2048xbf16>, vector<2048x128xbf16>, vector<2x128xf32> -> vector<2x128xf32>
    %7 = arith.addf %3, %6 : vector<2x128xf32>
    %c0_6 = arith.constant 0 : index
    %c0_7 = arith.constant 0 : index
    %8 = vector.load %arg5[%c0_6, %c0_7] : memref<2x128xf32, #tpu.memory_space<vmem>>, vector<2x128xf32>
    tpu.vector_store %arg5[%c0_6, %c0_7], %7 {strides = array<i32>} : memref<2x128xf32, #tpu.memory_space<vmem>>, vector<2x128xf32>,
    %c0_i32_8 = arith.constant 0 : i32
    %9 = arith.cmpi eq, %arg1, %c0_i32_8 : i32
    %10 = arith.extui %9 : i1 to i32
    %c0_i32_9 = arith.constant 0 : i32
    %11 = arith.cmpi ne, %10, %c0_i32_9 : i32
    scf.if %11 {
      %c0_10 = arith.constant 0 : index
      %c0_11 = arith.constant 0 : index
      %12 = vector.load %arg5[%c0_10, %c0_11] : memref<2x128xf32, #tpu.memory_space<vmem>>, vector<2x128xf32>
      %c0_12 = arith.constant 0 : index
      %c0_13 = arith.constant 0 : index
      %c0_14 = arith.constant 0 : index
      %13 = vector.load %arg4[%c0_12, %c0_13, %c0_14] : memref<1x2x128xf32, #tpu.memory_space<vmem>>, vector<1x2x128xf32>
      %14 = vector.shape_cast %13 : vector<1x2x128xf32> to vector<2x128xf32>
      %15 = vector.shape_cast %12 : vector<2x128xf32> to vector<1x2x128xf32>
      tpu.vector_store %arg4[%c0_12, %c0_13, %c0_14], %15 {strides = array<i32>} : memref<1x2x128xf32, #tpu.memory_space<vmem>>, vector<1x2x128xf32>,
    } else {
    }
    return
  }
  func.func @transform_0(%arg0: i32, %arg1: i32) -> (i32, i32) {
    %c1_i32 = arith.constant 1 : i32
    %0 = arith.muli %arg0, %c1_i32 : i32
    %1 = arith.addi %0, %arg1 : i32
    %c0_i32 = arith.constant 0 : i32
    %c0_i32_0 = arith.constant 0 : i32
    return %c0_i32, %1 : i32, i32
  }
  func.func @transform_1(%arg0: i32, %arg1: i32) -> (i32, i32) {
    %c1_i32 = arith.constant 1 : i32
    %0 = arith.muli %arg0, %c1_i32 : i32
    %1 = arith.addi %0, %arg1 : i32
    %c0_i32 = arith.constant 0 : i32
    %c0_i32_0 = arith.constant 0 : i32
    return %1, %c0_i32 : i32, i32
  }
  func.func @transform_2(%arg0: i32, %arg1: i32) -> (i32, i32, i32) {
    %c0_i32 = arith.constant 0 : i32
    %c0_i32_0 = arith.constant 0 : i32
    %c0_i32_1 = arith.constant 0 : i32
    return %arg0, %c0_i32, %c0_i32_0 : i32, i32, i32
  }
}

module attributes {stable_mosaic.version = 11 : i64} {
  func.func @mlp_tail_kernel(%arg0: memref<2x2x128xf32, #tpu.memory_space<vmem>>, %arg1: memref<1x128xf32, #tpu.memory_space<vmem>>, %arg2: memref<128x128xf32, #tpu.memory_space<vmem>>, %arg3: memref<1x128xf32, #tpu.memory_space<vmem>>, %arg4: memref<128x256xf32, #tpu.memory_space<vmem>>, %arg5: memref<1x256xf32, #tpu.memory_space<vmem>>, %arg6: memref<256x4xf32, #tpu.memory_space<vmem>>, %arg7: memref<1x4xf32, #tpu.memory_space<vmem>>, %arg8: memref<2x4xf32, #tpu.memory_space<vmem>>) attributes {dimension_semantics = [], scalar_prefetch = 0 : i64, scratch_operands = 0 : i64, tpu.core_type = #tpu.core_type<tc>} {
    %c0 = arith.constant 0 : index
    %c0_0 = arith.constant 0 : index
    %c0_1 = arith.constant 0 : index
    %0 = vector.load %arg0[%c0, %c0_0, %c0_1] : memref<2x2x128xf32, #tpu.memory_space<vmem>>, vector<1x2x128xf32>
    %1 = vector.shape_cast %0 : vector<1x2x128xf32> to vector<2x128xf32>
    %c1 = arith.constant 1 : index
    %c0_2 = arith.constant 0 : index
    %c0_3 = arith.constant 0 : index
    %2 = vector.load %arg0[%c1, %c0_2, %c0_3] : memref<2x2x128xf32, #tpu.memory_space<vmem>>, vector<1x2x128xf32>
    %3 = vector.shape_cast %2 : vector<1x2x128xf32> to vector<2x128xf32>
    %4 = arith.addf %1, %3 : vector<2x128xf32>
    %c0_4 = arith.constant 0 : index
    %c0_5 = arith.constant 0 : index
    %5 = vector.load %arg1[%c0_4, %c0_5] : memref<1x128xf32, #tpu.memory_space<vmem>>, vector<1x128xf32>
    %6 = vector.broadcast %5 : vector<1x128xf32> to vector<2x128xf32>
    %7 = arith.addf %4, %6 : vector<2x128xf32>
    %cst = arith.constant 0.000000e+00 : f32
    %8 = vector.broadcast %cst : f32 to vector<2x128xf32>
    %9 = arith.maximumf %7, %8 : vector<2x128xf32>
    %c0_6 = arith.constant 0 : index
    %c0_7 = arith.constant 0 : index
    %10 = vector.load %arg2[%c0_6, %c0_7] : memref<128x128xf32, #tpu.memory_space<vmem>>, vector<128x128xf32>
    %cst_8 = arith.constant dense<0.000000e+00> : vector<2x128xf32>
    %11 = tpu.matmul %9, %10, %cst_8 {dimension_numbers = #tpu.dot_dimension_numbers<[1], [0], [0], [1], [0, 0, 1, 1], [], []>} : vector<2x128xf32>, vector<128x128xf32>, vector<2x128xf32> -> vector<2x128xf32>
    %c0_9 = arith.constant 0 : index
    %c0_10 = arith.constant 0 : index
    %12 = vector.load %arg3[%c0_9, %c0_10] : memref<1x128xf32, #tpu.memory_space<vmem>>, vector<1x128xf32>
    %13 = vector.broadcast %12 : vector<1x128xf32> to vector<2x128xf32>
    %14 = arith.addf %11, %13 : vector<2x128xf32>
    %cst_11 = arith.constant 0.000000e+00 : f32
    %15 = vector.broadcast %cst_11 : f32 to vector<2x128xf32>
    %16 = arith.maximumf %14, %15 : vector<2x128xf32>
    %c0_12 = arith.constant 0 : index
    %c0_13 = arith.constant 0 : index
    %17 = vector.load %arg4[%c0_12, %c0_13] : memref<128x256xf32, #tpu.memory_space<vmem>>, vector<128x256xf32>
    %cst_14 = arith.constant dense<0.000000e+00> : vector<2x256xf32>
    %18 = tpu.matmul %16, %17, %cst_14 {dimension_numbers = #tpu.dot_dimension_numbers<[1], [0], [0], [1], [0, 0, 1, 1], [], []>} : vector<2x128xf32>, vector<128x256xf32>, vector<2x256xf32> -> vector<2x256xf32>
    %c0_15 = arith.constant 0 : index
    %c0_16 = arith.constant 0 : index
    %19 = vector.load %arg5[%c0_15, %c0_16] : memref<1x256xf32, #tpu.memory_space<vmem>>, vector<1x256xf32>
    %20 = vector.broadcast %19 : vector<1x256xf32> to vector<2x256xf32>
    %21 = arith.addf %18, %20 : vector<2x256xf32>
    %cst_17 = arith.constant 0.000000e+00 : f32
    %22 = vector.broadcast %cst_17 : f32 to vector<2x256xf32>
    %23 = arith.maximumf %21, %22 : vector<2x256xf32>
    %c0_18 = arith.constant 0 : index
    %c0_19 = arith.constant 0 : index
    %24 = vector.load %arg6[%c0_18, %c0_19] : memref<256x4xf32, #tpu.memory_space<vmem>>, vector<256x4xf32>
    %cst_20 = arith.constant dense<0.000000e+00> : vector<2x4xf32>
    %25 = tpu.matmul %23, %24, %cst_20 {dimension_numbers = #tpu.dot_dimension_numbers<[1], [0], [0], [1], [0, 0, 1, 1], [], []>} : vector<2x256xf32>, vector<256x4xf32>, vector<2x4xf32> -> vector<2x4xf32>
    %c0_21 = arith.constant 0 : index
    %c0_22 = arith.constant 0 : index
    %26 = vector.load %arg7[%c0_21, %c0_22] : memref<1x4xf32, #tpu.memory_space<vmem>>, vector<1x4xf32>
    %27 = vector.broadcast %26 : vector<1x4xf32> to vector<2x4xf32>
    %28 = arith.addf %25, %27 : vector<2x4xf32>
    %c0_23 = arith.constant 0 : index
    %c0_24 = arith.constant 0 : index
    %29 = vector.load %arg8[%c0_23, %c0_24] : memref<2x4xf32, #tpu.memory_space<vmem>>, vector<2x4xf32>
    tpu.vector_store %arg8[%c0_23, %c0_24], %28 {strides = array<i32>} : memref<2x4xf32, #tpu.memory_space<vmem>>, vector<2x4xf32>,
    return
  }
}

</mosaic_0001>

<llo_original>
// kernel: model_forward.6
$region0: #{model_forward.6}
  #allocation0 [shape = 'u32[]', space=smem, size = 0x4, offset = 0x4, fixed_abs, tag = 'smem constant byte address 0x4 - core index']
  #allocation1 [shape = 'u32[72,128]{1,0:T(1,128)}', space=vmem, size = 0x9000, scoped, tag = 'internal scratch']
  %s0 = inlined_call_operand.vmem [shape: bf16[2,48,4096], index: 0, kind: input, shape index: {}]
  %s1 = inlined_call_operand.vmem [shape: bf16[32,48], index: 1, kind: input, shape index: {}]
  %s2 = inlined_call_operand.vmem [shape: f32[8,1], index: 2, kind: input, shape index: {}]
  %s3 = inlined_call_operand.vmem [shape: bf16[2,8,4096], index: 3, kind: output, shape index: {}]
  %s4 = sld [smem:[#allocation0]]
  $region68: #{model_forward.6} parent=0
    _
  %s6 = ssub.s32 1, %s4
  %s7 = scalar_select 0, %s6, %s4
  $region1: #{model_forward.6} parent=0
    #allocation2 [shape = 'u8[393216]{0}', space=vmem, size = 0x60000, scoped, tag = 'input window, operand 0']
    loop: start=0, step=1, limit=6
    $region2: #{model_forward.6} parent=1 // loop_pre_header
      _
    $region3: #{model_forward.6} parent=1 // loop_header
      %s9 = sphi 0, %s13
      %p10 = scmp.ge.s32.totalorder %s9, 6
      %s16 = sphi 0, %s28
      %s17 = sphi 0, %s24
      %s18 = sphi 0, %s16
      %s19 = sphi 0, %s17
      %s20 = sphi 0, %s18
      %s21 = sphi 0, %s19
      %s33 = sphi 0, %s35
      %s36 = sphi 0, %s33
      %s37 = sphi 0, %s36
      %s53 = sphi 0, %s37
      %s57 = sphi 0, %s57
      %s59 = sphi 0, %s57
      %s60 = sphi 0, %s59
      %s74 = sphi 0, %s60
      %s78 = sphi 0, %s78
      %s80 = sphi 0, %s78
      %s81 = sphi 0, %s80
      %s95 = sphi 0, %s81
      %s103 = sphi 0, %s105
      %s106 = sphi 0, %s103
      %s107 = sphi 0, %s106
      %s123 = sphi 0, %s107
    $region4: #{model_forward.6} parent=1 // loop_header_branch
      %12 = sbr.rel (%p10) target = $region8
    $region5: #{model_forward.6} parent=1 // loop_body
      %s14 = ssub.s32 %s9, 1
      %s15 = ssub.s32 %s9, 2
      %s22 = sadd.s32 1, %s17
      %p23 = scmp.ge.s32.totalorder %s22, 2
      %s24 = scalar_select %p23, 0, %s22
      %s25 = sadd.s32 1, %s16
      %s26 = scalar_select %p23, %s25, %s16
      %p27 = scmp.ge.s32.totalorder %s26, 2
      %s28 = scalar_select %p27, 0, %s26
      %s29 = ssub.s32 %s16, %s28
      %s30 = ssub.s32 %s17, %s24
      %s31 = sor.u32 %s29, %s30
      %p32 = scmp.eq.s32.totalorder %s31, 0
      %s34 = sadd.s32 %s33, 1
      %s35 = scalar_select %p32, %s33, %s34
      %p38 = pneg %p32
      %p39 = scmp.eq.s32.totalorder %s9, 3
      %p40 = por %p38, %p39
      %p41 = scmp.ne.s32.totalorder %s33, %s36
      %p42 = scmp.eq.s32.totalorder %s9, 0
      %p43 = por %p41, %p42
      %p44 = scmp.ne.s32.totalorder %s33, %s36
      %p45 = scmp.eq.s32.totalorder %s14, 3
      %p46 = por %p44, %p45
      %p47 = scmp.ne.s32.totalorder %s36, %s37
      %p48 = scmp.eq.s32.totalorder %s14, 0
      %p49 = por %p47, %p48
      %p50 = scmp.ne.s32.totalorder %s36, %s37
      %p51 = scmp.eq.s32.totalorder %s15, 3
      %p52 = por %p50, %p51
      %p54 = scmp.ne.s32.totalorder %s37, %s53
      %p55 = scmp.eq.s32.totalorder %s15, 0
      %p56 = por %p54, %p55
      %s58 = sadd.s32 %s57, 1
      %p61 = scmp.eq.s32.totalorder %s9, 3
      %p62 = scmp.ne.s32.totalorder %s57, %s59
      %p63 = scmp.eq.s32.totalorder %s9, 0
      %p64 = por %p62, %p63
      %p65 = scmp.ne.s32.totalorder %s57, %s59
      %p66 = scmp.eq.s32.totalorder %s14, 3
      %p67 = por %p65, %p66
      %p68 = scmp.ne.s32.totalorder %s59, %s60
      %p69 = scmp.eq.s32.totalorder %s14, 0
      %p70 = por %p68, %p69
      %p71 = scmp.ne.s32.totalorder %s59, %s60
      %p72 = scmp.eq.s32.totalorder %s15, 3
      %p73 = por %p71, %p72
      %p75 = scmp.ne.s32.totalorder %s60, %s74
      %p76 = scmp.eq.s32.totalorder %s15, 0
      %p77 = por %p75, %p76
      %s79 = sadd.s32 %s78, 1
      %p82 = scmp.eq.s32.totalorder %s9, 3
      %p83 = scmp.ne.s32.totalorder %s78, %s80
      %p84 = scmp.eq.s32.totalorder %s9, 0
      %p85 = por %p83, %p84
      %p86 = scmp.ne.s32.totalorder %s78, %s80
      %p87 = scmp.eq.s32.totalorder %s14, 3
      %p88 = por %p86, %p87
      %p89 = scmp.ne.s32.totalorder %s80, %s81
      %p90 = scmp.eq.s32.totalorder %s14, 0
      %p91 = por %p89, %p90
      %p92 = scmp.ne.s32.totalorder %s80, %s81
      %p93 = scmp.eq.s32.totalorder %s15, 3
      %p94 = por %p92, %p93
      %p96 = scmp.ne.s32.totalorder %s81, %s95
      %p97 = scmp.eq.s32.totalorder %s15, 0
      %p98 = por %p96, %p97
      %s99 = ssub.s32 %s16, %s28
      %s100 = ssub.s32 %s17, %s24
      %s101 = sor.u32 %s99, %s100
      %p102 = scmp.eq.s32.totalorder %s101, 0
      %s104 = sadd.s32 %s103, 1
      %s105 = scalar_select %p102, %s103, %s104
      %p108 = pneg %p102
      %p109 = scmp.eq.s32.totalorder %s9, 3
      %p110 = por %p108, %p109
      %p111 = scmp.ne.s32.totalorder %s103, %s106
      %p112 = scmp.eq.s32.totalorder %s9, 0
      %p113 = por %p111, %p112
      %p114 = scmp.ne.s32.totalorder %s103, %s106
      %p115 = scmp.eq.s32.totalorder %s14, 3
      %p116 = por %p114, %p115
      %p117 = scmp.ne.s32.totalorder %s106, %s107
      %p118 = scmp.eq.s32.totalorder %s14, 0
      %p119 = por %p117, %p118
      %p120 = scmp.ne.s32.totalorder %s106, %s107
      %p121 = scmp.eq.s32.totalorder %s15, 3
      %p122 = por %p120, %p121
      %p124 = scmp.ne.s32.totalorder %s107, %s123
      %p125 = scmp.eq.s32.totalorder %s15, 0
      %p126 = por %p124, %p125
      %p127 = scmp.le.s32.totalorder 1, %s9
      %p128 = scmp.lt.s32.totalorder %s9, 5
      %p129 = pnand %p127, %p128
      %p130 = pneg %p129
      // Predicated region
      $region9: #{model_forward.6} parent=5 // pred_check
        _
      $region10: #{model_forward.6} parent=5 // pred_check_branch
        %132 = sbr.rel (%p129) target = $region12
      $region11: #{model_forward.6} parent=5 // pred_region
        %s133 = ssub.s32 %s9, 1
        // Predicated region
        $region13: #{model_forward.6} parent=11 // pred_check
          %p134 = pneg %p70
        $region14: #{model_forward.6} parent=11 // pred_check_branch
          %136 = sbr.rel (%p134) target = $region16
        $region15: #{model_forward.6} parent=11 // pred_region
          _
        $region16: #{model_forward.6} parent=11 // pred_fallthru
          _
        // Predicated region
        $region17: #{model_forward.6} parent=11 // pred_check
          %p137 = pneg %p91
        $region18: #{model_forward.6} parent=11 // pred_check_branch
          %139 = sbr.rel (%p137) target = $region20
        $region19: #{model_forward.6} parent=11 // pred_region
          _
        $region20: #{model_forward.6} parent=11 // pred_fallthru
          _
      $region12: #{model_forward.6} parent=5 // pred_fallthru
        _
      %p140 = scmp.lt.s32.totalorder %s9, 4
      // Predicated region
      $region21: #{model_forward.6} parent=5 // pred_check
        %p141 = pneg %p140
      $region22: #{model_forward.6} parent=5 // pred_check_branch
        %143 = sbr.rel (%p141) target = $region24
      $region23: #{model_forward.6} parent=5 // pred_region
        // Predicated region
        $region25: #{model_forward.6} parent=23 // pred_check
          %p144 = pneg %p43
        $region26: #{model_forward.6} parent=23 // pred_check_branch
          %146 = sbr.rel (%p144) target = $region28
        $region27: #{model_forward.6} parent=23 // pred_region
          %s147 = sand.u32 %s33, 1
          %s148 = sand.u32 %s33, 1
          %s149 = smul.addr %s148, 384
          %s150 = scalar_lea.vmem [#allocation2], %s149
          %s151 = smul.u32 16, %s17
          %s152 = smul.addr %s16, 192
          %s153 = sadd.s32 %s151, %s152
          %s154 = smul.addr %s153, 4
          %s155 = scalar_lea.vmem %s0, %s154
          // Predicated region
          $region29: #{model_forward.6} parent=27 // pred_check
            _
          $region30: #{model_forward.6} parent=27 // pred_check_branch
            %157 = sbr.rel (0) target = $region32
          $region31: #{model_forward.6} parent=27 // pred_region
            // Predicated region
            $region33: #{model_forward.6} parent=31 // pred_check
              _
            $region34: #{model_forward.6} parent=31 // pred_check_branch
              %159 = sbr.rel (0) target = $region36
            $region35: #{model_forward.6} parent=31 // pred_region
              loop: start=0, step=1, limit=1
              $region37: #{model_forward.6} parent=35 // loop_pre_header
                _
              $region38: #{model_forward.6} parent=35 // loop_header
                %s161 = sphi 0, %s165
                %p162 = scmp.ge.s32.totalorder %s161, 1
                %s166 = sphi %s155, %s155
                %s167 = sphi %s150, %s150
              $region39: #{model_forward.6} parent=35 // loop_header_branch
                %164 = sbr.rel (%p162) target = $region43
              $region40: #{model_forward.6} parent=35 // loop_body
                %v168 = vld [vmem:[%s166] sm:$0xff]
                %169 = vst [vmem:[%s167] sm:$0xff] %v168
                %v170 = vld [vmem:[%s166 + $0x8] sm:$0xff]
                %171 = vst [vmem:[%s167 + $0x8] sm:$0xff] %v170
                %v172 = vld [vmem:[%s166 + $0x10] sm:$0xff]
                %173 = vst [vmem:[%s167 + $0x10] sm:$0xff] %v172
                %v174 = vld [vmem:[%s166 + $0x18] sm:$0xff]
                %175 = vst [vmem:[%s167 + $0x18] sm:$0xff] %v174
                %v176 = vld [vmem:[%s166 + $0x20] sm:$0xff]
                %177 = vst [vmem:[%s167 + $0x20] sm:$0xff] %v176
                %v178 = vld [vmem:[%s166 + $0x28] sm:$0xff]
                %179 = vst [vmem:[%s167 + $0x28] sm:$0xff] %v178
                %v180 = vld [vmem:[%s166 + $0x30] sm:$0xff]
                %181 = vst [vmem:[%s167 + $0x30] sm:$0xff] %v180
                %v182 = vld [vmem:[%s166 + $0x38] sm:$0xff]
                %183 = vst [vmem:[%s167 + $0x38] sm:$0xff] %v182
                %v184 = vld [vmem:[%s166 + $0x80] sm:$0xff]
                %185 = vst [vmem:[%s167 + $0x40] sm:$0xff] %v184
                %v186 = vld [vmem:[%s166 + $0x88] sm:$0xff]
                %187 = vst [vmem:[%s167 + $0x48] sm:$0xff] %v186
                %v188 = vld [vmem:[%s166 + $0x90] sm:$0xff]
                %189 = vst [vmem:[%s167 + $0x50] sm:$0xff] %v188
                %v190 = vld [vmem:[%s166 + $0x98] sm:$0xff]
                %191 = vst [vmem:[%s167 + $0x58] sm:$0xff] %v190
                %v192 = vld [vmem:[%s166 + $0xa0] sm:$0xff]
                %193 = vst [vmem:[%s167 + $0x60] sm:$0xff] %v192
                %v194 = vld [vmem:[%s166 + $0xa8] sm:$0xff]
                %195 = vst [vmem:[%s167 + $0x68] sm:$0xff] %v194
                %v196 = vld [vmem:[%s166 + $0xb0] sm:$0xff]
                %197 = vst [vmem:[%s167 + $0x70] sm:$0xff] %v196
                %v198 = vld [vmem:[%s166 + $0xb8] sm:$0xff]
                %199 = vst [vmem:[%s167 + $0x78] sm:$0xff] %v198
                %v200 = vld [vmem:[%s166 + $0x100] sm:$0xff]
                %201 = vst [vmem:[%s167 + $0x80] sm:$0xff] %v200
                %v202 = vld [vmem:[%s166 + $0x108] sm:$0xff]
                %203 = vst [vmem:[%s167 + $0x88] sm:$0xff] %v202
                %v204 = vld [vmem:[%s166 + $0x110] sm:$0xff]
                %205 = vst [vmem:[%s167 + $0x90] sm:$0xff] %v204
                %v206 = vld [vmem:[%s166 + $0x118] sm:$0xff]
                %207 = vst [vmem:[%s167 + $0x98] sm:$0xff] %v206
                %v208 = vld [vmem:[%s166 + $0x120] sm:$0xff]
                %209 = vst [vmem:[%s167 + $0xa0] sm:$0xff] %v208
                %v210 = vld [vmem:[%s166 + $0x128] sm:$0xff]
                %211 = vst [vmem:[%s167 + $0xa8] sm:$0xff] %v210
                %v212 = vld [vmem:[%s166 + $0x130] sm:$0xff]
                %213 = vst [vmem:[%s167 + $0xb0] sm:$0xff] %v212
                %v214 = vld [vmem:[%s166 + $0x138] sm:$0xff]
                %215 = vst [vmem:[%s167 + $0xb8] sm:$0xff] %v214
                %v216 = vld [vmem:[%s166 + $0x180] sm:$0xff]
                %217 = vst [vmem:[%s167 + $0xc0] sm:$0xff] %v216
                %v218 = vld [vmem:[%s166 + $0x188] sm:$0xff]
                %219 = vst [vmem:[%s167 + $0xc8] sm:$0xff] %v218
                %v220 = vld [vmem:[%s166 + $0x190] sm:$0xff]
                %221 = vst [vmem:[%s167 + $0xd0] sm:$0xff] %v220
                %v222 = vld [vmem:[%s166 + $0x198] sm:$0xff]
                %223 = vst [vmem:[%s167 + $0xd8] sm:$0xff] %v222
                %v224 = vld [vmem:[%s166 + $0x1a0] sm:$0xff]
                %225 = vst [vmem:[%s167 + $0xe0] sm:$0xff] %v224
                %v226 = vld [vmem:[%s166 + $0x1a8] sm:$0xff]
                %227 = vst [vmem:[%s167 + $0xe8] sm:$0xff] %v226
                %v228 = vld [vmem:[%s166 + $0x1b0] sm:$0xff]
                %229 = vst [vmem:[%s167 + $0xf0] sm:$0xff] %v228
                %v230 = vld [vmem:[%s166 + $0x1b8] sm:$0xff]
                %231 = vst [vmem:[%s167 + $0xf8] sm:$0xff] %v230
                %v232 = vld [vmem:[%s166 + $0x200] sm:$0xff]
                %233 = vst [vmem:[%s167 + $0x100] sm:$0xff] %v232
                %v234 = vld [vmem:[%s166 + $0x208] sm:$0xff]
                %235 = vst [vmem:[%s167 + $0x108] sm:$0xff] %v234
                %v236 = vld [vmem:[%s166 + $0x210] sm:$0xff]
                %237 = vst [vmem:[%s167 + $0x110] sm:$0xff] %v236
                %v238 = vld [vmem:[%s166 + $0x218] sm:$0xff]
                %239 = vst [vmem:[%s167 + $0x118] sm:$0xff] %v238
                %v240 = vld [vmem:[%s166 + $0x220] sm:$0xff]
                %241 = vst [vmem:[%s167 + $0x120] sm:$0xff] %v240
                %v242 = vld [vmem:[%s166 + $0x228] sm:$0xff]
                %243 = vst [vmem:[%s167 + $0x128] sm:$0xff] %v242
                %v244 = vld [vmem:[%s166 + $0x230] sm:$0xff]
                %245 = vst [vmem:[%s167 + $0x130] sm:$0xff] %v244
                %v246 = vld [vmem:[%s166 + $0x238] sm:$0xff]
                %247 = vst [vmem:[%s167 + $0x138] sm:$0xff] %v246
                %v248 = vld [vmem:[%s166 + $0x280] sm:$0xff]
                %249 = vst [vmem:[%s167 + $0x140] sm:$0xff] %v248
                %v250 = vld [vmem:[%s166 + $0x288] sm:$0xff]
                %251 = vst [vmem:[%s167 + $0x148] sm:$0xff] %v250
                %v252 = vld [vmem:[%s166 + $0x290] sm:$0xff]
                %253 = vst [vmem:[%s167 + $0x150] sm:$0xff] %v252
                %v254 = vld [vmem:[%s166 + $0x298] sm:$0xff]
                %255 = vst [vmem:[%s167 + $0x158] sm:$0xff] %v254
                %v256 = vld [vmem:[%s166 + $0x2a0] sm:$0xff]
                %257 = vst [vmem:[%s167 + $0x160] sm:$0xff] %v256
                %v258 = vld [vmem:[%s166 + $0x2a8] sm:$0xff]
                %259 = vst [vmem:[%s167 + $0x168] sm:$0xff] %v258
                %v260 = vld [vmem:[%s166 + $0x2b0] sm:$0xff]
                %261 = vst [vmem:[%s167 + $0x170] sm:$0xff] %v260
                %v262 = vld [vmem:[%s166 + $0x2b8] sm:$0xff]
                %263 = vst [vmem:[%s167 + $0x178] sm:$0xff] %v262
              $region41: #{model_forward.6} parent=35 // loop_footer
                %s165 = sadd.s32 1, %s161
              $region42: #{model_forward.6} parent=35 // loop_footer_branch
                %160 = sbr.rel target = $region38
              $region43: #{model_forward.6} parent=35 // loop_exit
                _
            $region36: #{model_forward.6} parent=31 // pred_fallthru
              _
            // Predicated region
            $region44: #{model_forward.6} parent=31 // pred_check
              _
            $region45: #{model_forward.6} parent=31 // pred_check_branch
              %265 = sbr.rel target = $region47
            $region46: #{model_forward.6} parent=31 // pred_region
              _
            $region47: #{model_forward.6} parent=31 // pred_fallthru
              _
          $region32: #{model_forward.6} parent=27 // pred_fallthru
            _
          %266 = vnop
        $region28: #{model_forward.6} parent=23 // pred_fallthru
          _
      $region24: #{model_forward.6} parent=5 // pred_fallthru
        _
      %p267 = scmp.le.s32.totalorder 1, %s9
      %p268 = scmp.lt.s32.totalorder %s9, 5
      %p269 = pnand %p267, %p268
      %p270 = pneg %p269
      // Predicated region
      $region48: #{model_forward.6} parent=5 // pred_check
        _
      $region49: #{model_forward.6} parent=5 // pred_check_branch
        %272 = sbr.rel (%p269) target = $region51
      $region50: #{model_forward.6} parent=5 // pred_region
        %s273 = ssub.s32 %s9, 1
        %s274 = sand.u32 %s36, 1
        %s275 = sand.u32 %s36, 1
        %s276 = smul.addr %s275, 384
        %s277 = scalar_lea.vmem [#allocation2], %s276
        // Predicated region
        $region52: #{model_forward.6} parent=50 // pred_check
          %p278 = pneg %p49
        $region53: #{model_forward.6} parent=50 // pred_check_branch
          %280 = sbr.rel (%p278) target = $region55
        $region54: #{model_forward.6} parent=50 // pred_region
          _
        $region55: #{model_forward.6} parent=50 // pred_fallthru
          _
        %s281 = sand.u32 %s36, 1
        %s282 = sand.u32 %s36, 1
        %s283 = smul.addr %s282, 384
        %s284 = scalar_lea.vmem [#allocation2], %s283
        %p285 = pneg %p49
        %p286 = pneg %p46
        %p287 = pneg %p70
        %p288 = pneg %p67
        %p289 = pneg %p91
        %p290 = pneg %p88
        %p291 = pneg %p119
        %p292 = pneg %p116
        %s293 = smul.u32 16, %s19
        %p294 = scmp.lt.s32.totalorder %s18, 1
        %s295 = scalar_select %p294, %s18, 1
        %p296 = scmp.lt.s32.totalorder %s293, 31
        %s297 = scalar_select %p296, %s293, 31
        %s298 = smul.addr %s295, 32
        %s299 = sadd.s32 %s297, %s298
        %s300 = smul.addr %s299, 4
        %s301 = scalar_lea.vmem %s3, %s300
        %s302 = smul.u32 16, %s19
        %s303 = smul.u32 16, %s19
        %p304 = scmp.lt.s32.totalorder %s18, 1
        %s305 = scalar_select %p304, %s18, 1
        %p306 = scmp.lt.s32.totalorder %s303, 31
        %s307 = scalar_select %p306, %s303, 31
        %s308 = smul.addr %s305, 32
        %s309 = sadd.s32 %s307, %s308
        %s310 = smul.addr %s309, 4
        %s311 = scalar_lea.vmem %s3, %s310
        %s312 = smul.u32 16, %s19
        %v314 = vld [vmem:[%s1] sm:$0xf]
        %v315 = vld [vmem:[%s1 + $0x4] sm:$0xf]
        %v316 = vld [vmem:[%s1 + $0x8] sm:$0xf]
        %v317 = vld [vmem:[%s1 + $0xc] sm:$0xf]
        %v318 = vld [vmem:[%s277] sm:$0xff]
        %v319 = vld [vmem:[%s277 + $0x8] sm:$0xff]
        %v320 = vld [vmem:[%s277 + $0x10] sm:$0xff]
        %v321 = vld [vmem:[%s277 + $0x18] sm:$0xff]
        %v322 = vld [vmem:[%s277 + $0x20] sm:$0xff]
        %v323 = vld [vmem:[%s277 + $0x28] sm:$0xff]
        %v324 = vld [vmem:[%s277 + $0x30] sm:$0xff]
        %v325 = vld [vmem:[%s277 + $0x38] sm:$0xff]
        %v326 = vld [vmem:[%s277 + $0x40] sm:$0xff]
        %v327 = vld [vmem:[%s277 + $0x48] sm:$0xff]
        %v328 = vld [vmem:[%s277 + $0x50] sm:$0xff]
        %v329 = vld [vmem:[%s277 + $0x58] sm:$0xff]
        %v330 = vld [vmem:[%s277 + $0x60] sm:$0xff]
        %v331 = vld [vmem:[%s277 + $0x68] sm:$0xff]
        %v332 = vld [vmem:[%s277 + $0x70] sm:$0xff]
        %v333 = vld [vmem:[%s277 + $0x78] sm:$0xff]
        %v334 = vld [vmem:[%s277 + $0x80] sm:$0xff]
        %v335 = vld [vmem:[%s277 + $0x88] sm:$0xff]
        %v336 = vld [vmem:[%s277 + $0x90] sm:$0xff]
        %v337 = vld [vmem:[%s277 + $0x98] sm:$0xff]
        %v338 = vld [vmem:[%s277 + $0xa0] sm:$0xff]
        %v339 = vld [vmem:[%s277 + $0xa8] sm:$0xff]
        %v340 = vld [vmem:[%s277 + $0xb0] sm:$0xff]
        %v341 = vld [vmem:[%s277 + $0xb8] sm:$0xff]
        %v342 = vld [vmem:[%s277 + $0xc0] sm:$0xff]
        %v343 = vld [vmem:[%s277 + $0xc8] sm:$0xff]
        %v344 = vld [vmem:[%s277 + $0xd0] sm:$0xff]
        %v345 = vld [vmem:[%s277 + $0xd8] sm:$0xff]
        %v346 = vld [vmem:[%s277 + $0xe0] sm:$0xff]
        %v347 = vld [vmem:[%s277 + $0xe8] sm:$0xff]
        %v348 = vld [vmem:[%s277 + $0xf0] sm:$0xff]
        %v349 = vld [vmem:[%s277 + $0xf8] sm:$0xff]
        %v350 = vld [vmem:[%s277 + $0x100] sm:$0xff]
        %v351 = vld [vmem:[%s277 + $0x108] sm:$0xff]
        %v352 = vld [vmem:[%s277 + $0x110] sm:$0xff]
        %v353 = vld [vmem:[%s277 + $0x118] sm:$0xff]
        %v354 = vld [vmem:[%s277 + $0x120] sm:$0xff]
        %v355 = vld [vmem:[%s277 + $0x128] sm:$0xff]
        %v356 = vld [vmem:[%s277 + $0x130] sm:$0xff]
        %v357 = vld [vmem:[%s277 + $0x138] sm:$0xff]
        %v358 = vld [vmem:[%s277 + $0x140] sm:$0xff]
        %v359 = vld [vmem:[%s277 + $0x148] sm:$0xff]
        %v360 = vld [vmem:[%s277 + $0x150] sm:$0xff]
        %v361 = vld [vmem:[%s277 + $0x158] sm:$0xff]
        %v362 = vld [vmem:[%s277 + $0x160] sm:$0xff]
        %v363 = vld [vmem:[%s277 + $0x168] sm:$0xff]
        %v364 = vld [vmem:[%s277 + $0x170] sm:$0xff]
        %v365 = vld [vmem:[%s277 + $0x178] sm:$0xff]
        %v370 = vunpack.c.l.b16 %v314
        %v371 = vunpack.c.l.b16 %v315
        %v372 = vunpack.c.l.b16 %v316
        %v373 = vunpack.c.l.b16 %v317
        %v374 = vpack.c.b16 %v371, %v370
        %v375 = vpack.c.b16 %v373, %v372
        %v424 = vunpack.c.l.b16 %v318
        %v425 = vunpack.c.h.b16 %v318
        %v426 = vunpack.c.l.b16 %v319
        %v427 = vunpack.c.h.b16 %v319
        %v428 = vunpack.c.l.b16 %v320
        %v429 = vunpack.c.h.b16 %v320
        %v430 = vunpack.c.l.b16 %v321
        %v431 = vunpack.c.h.b16 %v321
        %v432 = vunpack.c.l.b16 %v322
        %v433 = vunpack.c.h.b16 %v322
        %v434 = vunpack.c.l.b16 %v323
        %v435 = vunpack.c.h.b16 %v323
        %v436 = vunpack.c.l.b16 %v324
        %v437 = vunpack.c.h.b16 %v324
        %v438 = vunpack.c.l.b16 %v325
        %v439 = vunpack.c.h.b16 %v325
        %v440 = vunpack.c.l.b16 %v326
        %v441 = vunpack.c.h.b16 %v326
        %v442 = vunpack.c.l.b16 %v327
        %v443 = vunpack.c.h.b16 %v327
        %v444 = vunpack.c.l.b16 %v328
        %v445 = vunpack.c.h.b16 %v328
        %v446 = vunpack.c.l.b16 %v329
        %v447 = vunpack.c.h.b16 %v329
        %v448 = vunpack.c.l.b16 %v330
        %v449 = vunpack.c.h.b16 %v330
        %v450 = vunpack.c.l.b16 %v331
        %v451 = vunpack.c.h.b16 %v331
        %v452 = vunpack.c.l.b16 %v332
        %v453 = vunpack.c.h.b16 %v332
        %v454 = vunpack.c.l.b16 %v333
        %v455 = vunpack.c.h.b16 %v333
        %v456 = vunpack.c.l.b16 %v334
        %v457 = vunpack.c.h.b16 %v334
        %v458 = vunpack.c.l.b16 %v335
        %v459 = vunpack.c.h.b16 %v335
        %v460 = vunpack.c.l.b16 %v336
        %v461 = vunpack.c.h.b16 %v336
        %v462 = vunpack.c.l.b16 %v337
        %v463 = vunpack.c.h.b16 %v337
        %v464 = vunpack.c.l.b16 %v338
        %v465 = vunpack.c.h.b16 %v338
        %v466 = vunpack.c.l.b16 %v339
        %v467 = vunpack.c.h.b16 %v339
        %v468 = vunpack.c.l.b16 %v340
        %v469 = vunpack.c.h.b16 %v340
        %v470 = vunpack.c.l.b16 %v341
        %v471 = vunpack.c.h.b16 %v341
        %v472 = vunpack.c.l.b16 %v342
        %v473 = vunpack.c.h.b16 %v342
        %v474 = vunpack.c.l.b16 %v343
        %v475 = vunpack.c.h.b16 %v343
        %v476 = vunpack.c.l.b16 %v344
        %v477 = vunpack.c.h.b16 %v344
        %v478 = vunpack.c.l.b16 %v345
        %v479 = vunpack.c.h.b16 %v345
        %v480 = vunpack.c.l.b16 %v346
        %v481 = vunpack.c.h.b16 %v346
        %v482 = vunpack.c.l.b16 %v347
        %v483 = vunpack.c.h.b16 %v347
        %v484 = vunpack.c.l.b16 %v348
        %v485 = vunpack.c.h.b16 %v348
        %v486 = vunpack.c.l.b16 %v349
        %v487 = vunpack.c.h.b16 %v349
        %v488 = vunpack.c.l.b16 %v350
        %v489 = vunpack.c.h.b16 %v350
        %v490 = vunpack.c.l.b16 %v351
        %v491 = vunpack.c.h.b16 %v351
        %v492 = vunpack.c.l.b16 %v352
        %v493 = vunpack.c.h.b16 %v352
        %v494 = vunpack.c.l.b16 %v353
        %v495 = vunpack.c.h.b16 %v353
        %v496 = vunpack.c.l.b16 %v354
        %v497 = vunpack.c.h.b16 %v354
        %v498 = vunpack.c.l.b16 %v355
        %v499 = vunpack.c.h.b16 %v355
        %v500 = vunpack.c.l.b16 %v356
        %v501 = vunpack.c.h.b16 %v356
        %v502 = vunpack.c.l.b16 %v357
        %v503 = vunpack.c.h.b16 %v357
        %v504 = vunpack.c.l.b16 %v358
        %v505 = vunpack.c.h.b16 %v358
        %v506 = vunpack.c.l.b16 %v359
        %v507 = vunpack.c.h.b16 %v359
        %v508 = vunpack.c.l.b16 %v360
        %v509 = vunpack.c.h.b16 %v360
        %v510 = vunpack.c.l.b16 %v361
        %v511 = vunpack.c.h.b16 %v361
        %v512 = vunpack.c.l.b16 %v362
        %v513 = vunpack.c.h.b16 %v362
        %v514 = vunpack.c.l.b16 %v363
        %v515 = vunpack.c.h.b16 %v363
        %v516 = vunpack.c.l.b16 %v364
        %v517 = vunpack.c.h.b16 %v364
        %v518 = vunpack.c.l.b16 %v365
        %v519 = vunpack.c.h.b16 %v365
        %v520 = vpack.c.b16 %v440, %v424
        %v521 = vpack.c.b16 %v441, %v425
        %v522 = vpack.c.b16 %v442, %v426
        %v523 = vpack.c.b16 %v443, %v427
        %v524 = vpack.c.b16 %v444, %v428
        %v525 = vpack.c.b16 %v445, %v429
        %v526 = vpack.c.b16 %v446, %v430
        %v527 = vpack.c.b16 %v447, %v431
        %v528 = vpack.c.b16 %v448, %v432
        %v529 = vpack.c.b16 %v449, %v433
        %v530 = vpack.c.b16 %v450, %v434
        %v531 = vpack.c.b16 %v451, %v435
        %v532 = vpack.c.b16 %v452, %v436
        %v533 = vpack.c.b16 %v453, %v437
        %v534 = vpack.c.b16 %v454, %v438
        %v535 = vpack.c.b16 %v455, %v439
        %v536 = vpack.c.b16 %v472, %v456
        %v537 = vpack.c.b16 %v473, %v457
        %v538 = vpack.c.b16 %v474, %v458
        %v539 = vpack.c.b16 %v475, %v459
        %v540 = vpack.c.b16 %v476, %v460
        %v541 = vpack.c.b16 %v477, %v461
        %v542 = vpack.c.b16 %v478, %v462
        %v543 = vpack.c.b16 %v479, %v463
        %v544 = vpack.c.b16 %v480, %v464
        %v545 = vpack.c.b16 %v481, %v465
        %v546 = vpack.c.b16 %v482, %v466
        %v547 = vpack.c.b16 %v483, %v467
        %v548 = vpack.c.b16 %v484, %v468
        %v549 = vpack.c.b16 %v485, %v469
        %v550 = vpack.c.b16 %v486, %v470
        %v551 = vpack.c.b16 %v487, %v471
        %v552 = vpack.c.b16 %v504, %v488
        %v553 = vpack.c.b16 %v505, %v489
        %v554 = vpack.c.b16 %v506, %v490
        %v555 = vpack.c.b16 %v507, %v491
        %v556 = vpack.c.b16 %v508, %v492
        %v557 = vpack.c.b16 %v509, %v493
        %v558 = vpack.c.b16 %v510, %v494
        %v559 = vpack.c.b16 %v511, %v495
        %v560 = vpack.c.b16 %v512, %v496
        %v561 = vpack.c.b16 %v513, %v497
        %v562 = vpack.c.b16 %v514, %v498
        %v563 = vpack.c.b16 %v515, %v499
        %v564 = vpack.c.b16 %v516, %v500
        %v565 = vpack.c.b16 %v517, %v501
        %v566 = vpack.c.b16 %v518, %v502
        %v567 = vpack.c.b16 %v519, %v503
        %vm616 = vcmask 392192
        %v618 = vsel %vm616, %v374, 0
        %v621 = vsel %vm616, %v375, 0
        %623 = vmatpush.bf16.msra.mxu0 0
        %624 = vmatpush.bf16.msra.mxu0 0
        %625 = vmatpush.bf16.msra.mxu0 0
        %626 = vmatpush.bf16.msra.mxu0 0
        %627 = vmatpush.bf16.msra.mxu0 0
        %628 = vmatpush.bf16.msra.mxu0 %v552
        %629 = vmatpush.bf16.msra.mxu0 %v536
        %630 = vmatpush.bf16.msra.mxu0 %v520
        %631 = vmatmul.bf16.gmra.mxu0 %v618
        %v632 = vpop.f32.mrf.mxu0
        %v633 = vadd.f32 0.0, %v632
        %v634 = vpop.f32.mrf.mxu0
        %v635 = vadd.f32 0.0, %v634
        %636 = vmatmul.bf16.gmra.mxu0 %v621
        %v637 = vpop.f32.mrf.mxu0
        %v638 = vadd.f32 0.0, %v637
        %v639 = vpop.f32.mrf.mxu0
        %v640 = vadd.f32 0.0, %v639
        %641 = vdwg.mxu0
        %642 = vmatpush.bf16.msra.mxu0 0
        %643 = vmatpush.bf16.msra.mxu0 0
        %644 = vmatpush.bf16.msra.mxu0 0
        %645 = vmatpush.bf16.msra.mxu0 0
        %646 = vmatpush.bf16.msra.mxu0 0
        %647 = vmatpush.bf16.msra.mxu0 %v553
        %648 = vmatpush.bf16.msra.mxu0 %v537
        %649 = vmatpush.bf16.msra.mxu0 %v521
        %650 = vmatmul.bf16.gmra.mxu0 %v618
        %v651 = vpop.f32.mrf.mxu0
        %v652 = vadd.f32 0.0, %v651
        %v653 = vpop.f32.mrf.mxu0
        %v654 = vadd.f32 0.0, %v653
        %655 = vmatmul.bf16.gmra.mxu0 %v621
        %v656 = vpop.f32.mrf.mxu0
        %v657 = vadd.f32 0.0, %v656
        %v658 = vpop.f32.mrf.mxu0
        %v659 = vadd.f32 0.0, %v658
        %660 = vdwg.mxu0
        %661 = vmatpush.bf16.msra.mxu0 0
        %662 = vmatpush.bf16.msra.mxu0 0
        %663 = vmatpush.bf16.msra.mxu0 0
        %664 = vmatpush.bf16.msra.mxu0 0
        %665 = vmatpush.bf16.msra.mxu0 0
        %666 = vmatpush.bf16.msra.mxu0 %v554
        %667 = vmatpush.bf16.msra.mxu0 %v538
        %668 = vmatpush.bf16.msra.mxu0 %v522
        %669 = vmatmul.bf16.gmra.mxu0 %v618
        %v670 = vpop.f32.mrf.mxu0
        %v671 = vadd.f32 0.0, %v670
        %v672 = vpop.f32.mrf.mxu0
        %v673 = vadd.f32 0.0, %v672
        %674 = vmatmul.bf16.gmra.mxu0 %v621
        %v675 = vpop.f32.mrf.mxu0
        %v676 = vadd.f32 0.0, %v675
        %v677 = vpop.f32.mrf.mxu0
        %v678 = vadd.f32 0.0, %v677
        %679 = vdwg.mxu0
        %680 = vmatpush.bf16.msra.mxu0 0
        %681 = vmatpush.bf16.msra.mxu0 0
        %682 = vmatpush.bf16.msra.mxu0 0
        %683 = vmatpush.bf16.msra.mxu0 0
        %684 = vmatpush.bf16.msra.mxu0 0
        %685 = vmatpush.bf16.msra.mxu0 %v555
        %686 = vmatpush.bf16.msra.mxu0 %v539
        %687 = vmatpush.bf16.msra.mxu0 %v523
        %688 = vmatmul.bf16.gmra.mxu0 %v618
        %v689 = vpop.f32.mrf.mxu0
        %v690 = vadd.f32 0.0, %v689
        %v691 = vpop.f32.mrf.mxu0
        %v692 = vadd.f32 0.0, %v691
        %693 = vmatmul.bf16.gmra.mxu0 %v621
        %v694 = vpop.f32.mrf.mxu0
        %v695 = vadd.f32 0.0, %v694
        %v696 = vpop.f32.mrf.mxu0
        %v697 = vadd.f32 0.0, %v696
        %698 = vdwg.mxu0
        %699 = vmatpush.bf16.msra.mxu0 0
        %700 = vmatpush.bf16.msra.mxu0 0
        %701 = vmatpush.bf16.msra.mxu0 0
        %702 = vmatpush.bf16.msra.mxu0 0
        %703 = vmatpush.bf16.msra.mxu0 0
        %704 = vmatpush.bf16.msra.mxu0 %v556
        %705 = vmatpush.bf16.msra.mxu0 %v540
        %706 = vmatpush.bf16.msra.mxu0 %v524
        %707 = vmatmul.bf16.gmra.mxu0 %v618
        %v708 = vpop.f32.mrf.mxu0
        %v709 = vadd.f32 0.0, %v708
        %v710 = vpop.f32.mrf.mxu0
        %v711 = vadd.f32 0.0, %v710
        %712 = vmatmul.bf16.gmra.mxu0 %v621
        %v713 = vpop.f32.mrf.mxu0
        %v714 = vadd.f32 0.0, %v713
        %v715 = vpop.f32.mrf.mxu0
        %v716 = vadd.f32 0.0, %v715
        %717 = vdwg.mxu0
        %718 = vmatpush.bf16.msra.mxu0 0
        %719 = vmatpush.bf16.msra.mxu0 0
        %720 = vmatpush.bf16.msra.mxu0 0
        %721 = vmatpush.bf16.msra.mxu0 0
        %722 = vmatpush.bf16.msra.mxu0 0
        %723 = vmatpush.bf16.msra.mxu0 %v557
        %724 = vmatpush.bf16.msra.mxu0 %v541
        %725 = vmatpush.bf16.msra.mxu0 %v525
        %726 = vmatmul.bf16.gmra.mxu0 %v618
        %v727 = vpop.f32.mrf.mxu0
        %v728 = vadd.f32 0.0, %v727
        %v729 = vpop.f32.mrf.mxu0
        %v730 = vadd.f32 0.0, %v729
        %731 = vmatmul.bf16.gmra.mxu0 %v621
        %v732 = vpop.f32.mrf.mxu0
        %v733 = vadd.f32 0.0, %v732
        %v734 = vpop.f32.mrf.mxu0
        %v735 = vadd.f32 0.0, %v734
        %736 = vdwg.mxu0
        %737 = vmatpush.bf16.msra.mxu0 0
        %738 = vmatpush.bf16.msra.mxu0 0
        %739 = vmatpush.bf16.msra.mxu0 0
        %740 = vmatpush.bf16.msra.mxu0 0
        %741 = vmatpush.bf16.msra.mxu0 0
        %742 = vmatpush.bf16.msra.mxu0 %v558
        %743 = vmatpush.bf16.msra.mxu0 %v542
        %744 = vmatpush.bf16.msra.mxu0 %v526
        %745 = vmatmul.bf16.gmra.mxu0 %v618
        %v746 = vpop.f32.mrf.mxu0
        %v747 = vadd.f32 0.0, %v746
        %v748 = vpop.f32.mrf.mxu0
        %v749 = vadd.f32 0.0, %v748
        %750 = vmatmul.bf16.gmra.mxu0 %v621
        %v751 = vpop.f32.mrf.mxu0
        %v752 = vadd.f32 0.0, %v751
        %v753 = vpop.f32.mrf.mxu0
        %v754 = vadd.f32 0.0, %v753
        %755 = vdwg.mxu0
        %756 = vmatpush.bf16.msra.mxu0 0
        %757 = vmatpush.bf16.msra.mxu0 0
        %758 = vmatpush.bf16.msra.mxu0 0
        %759 = vmatpush.bf16.msra.mxu0 0
        %760 = vmatpush.bf16.msra.mxu0 0
        %761 = vmatpush.bf16.msra.mxu0 %v559
        %762 = vmatpush.bf16.msra.mxu0 %v543
        %763 = vmatpush.bf16.msra.mxu0 %v527
        %764 = vmatmul.bf16.gmra.mxu0 %v618
        %v765 = vpop.f32.mrf.mxu0
        %v766 = vadd.f32 0.0, %v765
        %v767 = vpop.f32.mrf.mxu0
        %v768 = vadd.f32 0.0, %v767
        %769 = vmatmul.bf16.gmra.mxu0 %v621
        %v770 = vpop.f32.mrf.mxu0
        %v771 = vadd.f32 0.0, %v770
        %v772 = vpop.f32.mrf.mxu0
        %v773 = vadd.f32 0.0, %v772
        %774 = vdwg.mxu0
        %775 = vmatpush.bf16.msra.mxu0 0
        %776 = vmatpush.bf16.msra.mxu0 0
        %777 = vmatpush.bf16.msra.mxu0 0
        %778 = vmatpush.bf16.msra.mxu0 0
        %779 = vmatpush.bf16.msra.mxu0 0
        %780 = vmatpush.bf16.msra.mxu0 %v560
        %781 = vmatpush.bf16.msra.mxu0 %v544
        %782 = vmatpush.bf16.msra.mxu0 %v528
        %783 = vmatmul.bf16.gmra.mxu0 %v618
        %v784 = vpop.f32.mrf.mxu0
        %v785 = vadd.f32 0.0, %v784
        %v786 = vpop.f32.mrf.mxu0
        %v787 = vadd.f32 0.0, %v786
        %788 = vmatmul.bf16.gmra.mxu0 %v621
        %v789 = vpop.f32.mrf.mxu0
        %v790 = vadd.f32 0.0, %v789
        %v791 = vpop.f32.mrf.mxu0
        %v792 = vadd.f32 0.0, %v791
        %793 = vdwg.mxu0
        %794 = vmatpush.bf16.msra.mxu0 0
        %795 = vmatpush.bf16.msra.mxu0 0
        %796 = vmatpush.bf16.msra.mxu0 0
        %797 = vmatpush.bf16.msra.mxu0 0
        %798 = vmatpush.bf16.msra.mxu0 0
        %799 = vmatpush.bf16.msra.mxu0 %v561
        %800 = vmatpush.bf16.msra.mxu0 %v545
        %801 = vmatpush.bf16.msra.mxu0 %v529
        %802 = vmatmul.bf16.gmra.mxu0 %v618
        %v803 = vpop.f32.mrf.mxu0
        %v804 = vadd.f32 0.0, %v803
        %v805 = vpop.f32.mrf.mxu0
        %v806 = vadd.f32 0.0, %v805
        %807 = vmatmul.bf16.gmra.mxu0 %v621
        %v808 = vpop.f32.mrf.mxu0
        %v809 = vadd.f32 0.0, %v808
        %v810 = vpop.f32.mrf.mxu0
        %v811 = vadd.f32 0.0, %v810
        %812 = vdwg.mxu0
        %813 = vmatpush.bf16.msra.mxu0 0
        %814 = vmatpush.bf16.msra.mxu0 0
        %815 = vmatpush.bf16.msra.mxu0 0
        %816 = vmatpush.bf16.msra.mxu0 0
        %817 = vmatpush.bf16.msra.mxu0 0
        %818 = vmatpush.bf16.msra.mxu0 %v562
        %819 = vmatpush.bf16.msra.mxu0 %v546
        %820 = vmatpush.bf16.msra.mxu0 %v530
        %821 = vmatmul.bf16.gmra.mxu0 %v618
        %v822 = vpop.f32.mrf.mxu0
        %v823 = vadd.f32 0.0, %v822
        %v824 = vpop.f32.mrf.mxu0
        %v825 = vadd.f32 0.0, %v824
        %826 = vmatmul.bf16.gmra.mxu0 %v621
        %v827 = vpop.f32.mrf.mxu0
        %v828 = vadd.f32 0.0, %v827
        %v829 = vpop.f32.mrf.mxu0
        %v830 = vadd.f32 0.0, %v829
        %831 = vdwg.mxu0
        %832 = vmatpush.bf16.msra.mxu0 0
        %833 = vmatpush.bf16.msra.mxu0 0
        %834 = vmatpush.bf16.msra.mxu0 0
        %835 = vmatpush.bf16.msra.mxu0 0
        %836 = vmatpush.bf16.msra.mxu0 0
        %837 = vmatpush.bf16.msra.mxu0 %v563
        %838 = vmatpush.bf16.msra.mxu0 %v547
        %839 = vmatpush.bf16.msra.mxu0 %v531
        %840 = vmatmul.bf16.gmra.mxu0 %v618
        %v841 = vpop.f32.mrf.mxu0
        %v842 = vadd.f32 0.0, %v841
        %v843 = vpop.f32.mrf.mxu0
        %v844 = vadd.f32 0.0, %v843
        %845 = vmatmul.bf16.gmra.mxu0 %v621
        %v846 = vpop.f32.mrf.mxu0
        %v847 = vadd.f32 0.0, %v846
        %v848 = vpop.f32.mrf.mxu0
        %v849 = vadd.f32 0.0, %v848
        %850 = vdwg.mxu0
        %851 = vmatpush.bf16.msra.mxu0 0
        %852 = vmatpush.bf16.msra.mxu0 0
        %853 = vmatpush.bf16.msra.mxu0 0
        %854 = vmatpush.bf16.msra.mxu0 0
        %855 = vmatpush.bf16.msra.mxu0 0
        %856 = vmatpush.bf16.msra.mxu0 %v564
        %857 = vmatpush.bf16.msra.mxu0 %v548
        %858 = vmatpush.bf16.msra.mxu0 %v532
        %859 = vmatmul.bf16.gmra.mxu0 %v618
        %v860 = vpop.f32.mrf.mxu0
        %v861 = vadd.f32 0.0, %v860
        %v862 = vpop.f32.mrf.mxu0
        %v863 = vadd.f32 0.0, %v862
        %864 = vmatmul.bf16.gmra.mxu0 %v621
        %v865 = vpop.f32.mrf.mxu0
        %v866 = vadd.f32 0.0, %v865
        %v867 = vpop.f32.mrf.mxu0
        %v868 = vadd.f32 0.0, %v867
        %869 = vdwg.mxu0
        %870 = vmatpush.bf16.msra.mxu0 0
        %871 = vmatpush.bf16.msra.mxu0 0
        %872 = vmatpush.bf16.msra.mxu0 0
        %873 = vmatpush.bf16.msra.mxu0 0
        %874 = vmatpush.bf16.msra.mxu0 0
        %875 = vmatpush.bf16.msra.mxu0 %v565
        %876 = vmatpush.bf16.msra.mxu0 %v549
        %877 = vmatpush.bf16.msra.mxu0 %v533
        %878 = vmatmul.bf16.gmra.mxu0 %v618
        %v879 = vpop.f32.mrf.mxu0
        %v880 = vadd.f32 0.0, %v879
        %v881 = vpop.f32.mrf.mxu0
        %v882 = vadd.f32 0.0, %v881
        %883 = vmatmul.bf16.gmra.mxu0 %v621
        %v884 = vpop.f32.mrf.mxu0
        %v885 = vadd.f32 0.0, %v884
        %v886 = vpop.f32.mrf.mxu0
        %v887 = vadd.f32 0.0, %v886
        %888 = vdwg.mxu0
        %889 = vmatpush.bf16.msra.mxu0 0
        %890 = vmatpush.bf16.msra.mxu0 0
        %891 = vmatpush.bf16.msra.mxu0 0
        %892 = vmatpush.bf16.msra.mxu0 0
        %893 = vmatpush.bf16.msra.mxu0 0
        %894 = vmatpush.bf16.msra.mxu0 %v566
        %895 = vmatpush.bf16.msra.mxu0 %v550
        %896 = vmatpush.bf16.msra.mxu0 %v534
        %897 = vmatmul.bf16.gmra.mxu0 %v618
        %v898 = vpop.f32.mrf.mxu0
        %v899 = vadd.f32 0.0, %v898
        %v900 = vpop.f32.mrf.mxu0
        %v901 = vadd.f32 0.0, %v900
        %902 = vmatmul.bf16.gmra.mxu0 %v621
        %v903 = vpop.f32.mrf.mxu0
        %v904 = vadd.f32 0.0, %v903
        %v905 = vpop.f32.mrf.mxu0
        %v906 = vadd.f32 0.0, %v905
        %907 = vdwg.mxu0
        %908 = vmatpush.bf16.msra.mxu0 0
        %909 = vmatpush.bf16.msra.mxu0 0
        %910 = vmatpush.bf16.msra.mxu0 0
        %911 = vmatpush.bf16.msra.mxu0 0
        %912 = vmatpush.bf16.msra.mxu0 0
        %913 = vmatpush.bf16.msra.mxu0 %v567
        %914 = vmatpush.bf16.msra.mxu0 %v551
        %915 = vmatpush.bf16.msra.mxu0 %v535
        %916 = vmatmul.bf16.gmra.mxu0 %v618
        %v917 = vpop.f32.mrf.mxu0
        %v918 = vadd.f32 0.0, %v917
        %v919 = vpop.f32.mrf.mxu0
        %v920 = vadd.f32 0.0, %v919
        %921 = vmatmul.bf16.gmra.mxu0 %v621
        %v922 = vpop.f32.mrf.mxu0
        %v923 = vadd.f32 0.0, %v922
        %v924 = vpop.f32.mrf.mxu0
        %v925 = vadd.f32 0.0, %v924
        %926 = vdwg.mxu0
        %v927 = vmax.f32 %v633, %v635
        %v928 = vmax.f32 %v652, %v654
        %v929 = vmax.f32 %v671, %v673
        %v930 = vmax.f32 %v690, %v692
        %v931 = vmax.f32 %v709, %v711
        %v932 = vmax.f32 %v728, %v730
        %v933 = vmax.f32 %v747, %v749
        %v934 = vmax.f32 %v766, %v768
        %v935 = vmax.f32 %v785, %v787
        %v936 = vmax.f32 %v804, %v806
        %v937 = vmax.f32 %v823, %v825
        %v938 = vmax.f32 %v842, %v844
        %v939 = vmax.f32 %v861, %v863
        %v940 = vmax.f32 %v880, %v882
        %v941 = vmax.f32 %v899, %v901
        %v942 = vmax.f32 %v918, %v920
        %v943 = vmax.f32 %v638, %v640
        %v944 = vmax.f32 %v657, %v659
        %v945 = vmax.f32 %v676, %v678
        %v946 = vmax.f32 %v695, %v697
        %v947 = vmax.f32 %v714, %v716
        %v948 = vmax.f32 %v733, %v735
        %v949 = vmax.f32 %v752, %v754
        %v950 = vmax.f32 %v771, %v773
        %v951 = vmax.f32 %v790, %v792
        %v952 = vmax.f32 %v809, %v811
        %v953 = vmax.f32 %v828, %v830
        %v954 = vmax.f32 %v847, %v849
        %v955 = vmax.f32 %v866, %v868
        %v956 = vmax.f32 %v885, %v887
        %v957 = vmax.f32 %v904, %v906
        %v958 = vmax.f32 %v923, %v925
        %v959 = vmax.f32 %v927, %v943
        %v960 = vmax.f32 %v928, %v944
        %v961 = vmax.f32 %v929, %v945
        %v962 = vmax.f32 %v930, %v946
        %v963 = vmax.f32 %v931, %v947
        %v964 = vmax.f32 %v932, %v948
        %v965 = vmax.f32 %v933, %v949
        %v966 = vmax.f32 %v934, %v950
        %v967 = vmax.f32 %v935, %v951
        %v968 = vmax.f32 %v936, %v952
        %v969 = vmax.f32 %v937, %v953
        %v970 = vmax.f32 %v938, %v954
        %v971 = vmax.f32 %v939, %v955
        %v972 = vmax.f32 %v940, %v956
        %v973 = vmax.f32 %v941, %v957
        %v974 = vmax.f32 %v942, %v958
        %v975 = vld [vmem:[%s2] sm:$0xff]
        %977 = vset.pattern.permute.xlu0 0
        %978 = vperm.xlu0 %977, %v975
        %v979 = vpop.permute.xlu0 %978
        %v981 = vadd.f32 %v959, %v979
        %v982 = vadd.f32 %v960, %v979
        %v983 = vadd.f32 %v961, %v979
        %v984 = vadd.f32 %v962, %v979
        %v985 = vadd.f32 %v963, %v979
        %v986 = vadd.f32 %v964, %v979
        %v987 = vadd.f32 %v965, %v979
        %v988 = vadd.f32 %v966, %v979
        %v989 = vadd.f32 %v967, %v979
        %v990 = vadd.f32 %v968, %v979
        %v991 = vadd.f32 %v969, %v979
        %v992 = vadd.f32 %v970, %v979
        %v993 = vadd.f32 %v971, %v979
        %v994 = vadd.f32 %v972, %v979
        %v995 = vadd.f32 %v973, %v979
        %v996 = vadd.f32 %v974, %v979
        %v997 = vmax.f32 %v981, 0.0
        %v998 = vmax.f32 %v982, 0.0
        %v999 = vmax.f32 %v983, 0.0
        %v1000 = vmax.f32 %v984, 0.0
        %v1001 = vmax.f32 %v985, 0.0
        %v1002 = vmax.f32 %v986, 0.0
        %v1003 = vmax.f32 %v987, 0.0
        %v1004 = vmax.f32 %v988, 0.0
        %v1005 = vmax.f32 %v989, 0.0
        %v1006 = vmax.f32 %v990, 0.0
        %v1007 = vmax.f32 %v991, 0.0
        %v1008 = vmax.f32 %v992, 0.0
        %v1009 = vmax.f32 %v993, 0.0
        %v1010 = vmax.f32 %v994, 0.0
        %v1011 = vmax.f32 %v995, 0.0
        %v1012 = vmax.f32 %v996, 0.0
        %v1013 = vpack.c.bf16 %v998, %v997
        %v1014 = vpack.c.bf16 %v1000, %v999
        %v1015 = vpack.c.bf16 %v1002, %v1001
        %v1016 = vpack.c.bf16 %v1004, %v1003
        %v1017 = vpack.c.bf16 %v1006, %v1005
        %v1018 = vpack.c.bf16 %v1008, %v1007
        %v1019 = vpack.c.bf16 %v1010, %v1009
        %v1020 = vpack.c.bf16 %v1012, %v1011
        %1021 = vst [vmem:[%s311] sm:$0xff] %v1013
        %1022 = vst [vmem:[%s311 + $0x8] sm:$0xff] %v1014
        %1023 = vst [vmem:[%s311 + $0x10] sm:$0xff] %v1015
        %1024 = vst [vmem:[%s311 + $0x18] sm:$0xff] %v1016
        %1025 = vst [vmem:[%s311 + $0x20] sm:$0xff] %v1017
        %1026 = vst [vmem:[%s311 + $0x28] sm:$0xff] %v1018
        %1027 = vst [vmem:[%s311 + $0x30] sm:$0xff] %v1019
        %1028 = vst [vmem:[%s311 + $0x38] sm:$0xff] %v1020
        %s1029 = smul.u32 16, %s19
        %p1030 = scmp.lt.s32.totalorder %s18, 1
        %s1031 = scalar_select %p1030, %s18, 1
        %p1032 = scmp.lt.s32.totalorder %s1029, 31
        %s1033 = scalar_select %p1032, %s1029, 31
        %s1034 = smul.addr %s1031, 32
        %s1035 = sadd.s32 %s1033, %s1034
        %s1036 = smul.addr %s1035, 4
        %s1037 = scalar_lea.vmem %s3, %s1036
        // Predicated region
        $region56: #{model_forward.6} parent=50 // pred_check
          %p1038 = pneg %p116
        $region57: #{model_forward.6} parent=50 // pred_check_branch
          %1040 = sbr.rel (%p1038) target = $region59
        $region58: #{model_forward.6} parent=50 // pred_region
          %s1041 = smul.u32 16, %s19
        $region59: #{model_forward.6} parent=50 // pred_fallthru
          _
      $region51: #{model_forward.6} parent=5 // pred_fallthru
        _
      %p1042 = scmp.le.s32.totalorder 2, %s9
      // Predicated region
      $region60: #{model_forward.6} parent=5 // pred_check
        %p1043 = pneg %p1042
      $region61: #{model_forward.6} parent=5 // pred_check_branch
        %1045 = sbr.rel (%p1043) target = $region63
      $region62: #{model_forward.6} parent=5 // pred_region
        %s1046 = ssub.s32 %s9, 2
        // Predicated region
        $region64: #{model_forward.6} parent=62 // pred_check
          %p1047 = pneg %p122
        $region65: #{model_forward.6} parent=62 // pred_check_branch
          %1049 = sbr.rel (%p1047) target = $region67
        $region66: #{model_forward.6} parent=62 // pred_region
          %s1050 = smul.u32 16, %s21
          %p1051 = scmp.lt.s32.totalorder %s20, 1
          %s1052 = scalar_select %p1051, %s20, 1
          %p1053 = scmp.lt.s32.totalorder %s1050, 31
          %s1054 = scalar_select %p1053, %s1050, 31
          %s1055 = smul.addr %s1052, 32
          %s1056 = sadd.s32 %s1054, %s1055
          %s1057 = smul.addr %s1056, 4
          %s1058 = scalar_lea.vmem %s3, %s1057
        $region67: #{model_forward.6} parent=62 // pred_fallthru
          _
      $region63: #{model_forward.6} parent=5 // pred_fallthru
        _
    $region6: #{model_forward.6} parent=1 // loop_footer
      %s13 = sadd.s32 1, %s9
    $region7: #{model_forward.6} parent=1 // loop_footer_branch
      %8 = sbr.rel target = $region3
    $region8: #{model_forward.6} parent=1 // loop_exit
      _

// kernel: model_forward.7
$region0: #{model_forward.7}
  #allocation0 [shape = 'u32[]', space=smem, size = 0x4, offset = 0x4, fixed_abs, tag = 'smem constant byte address 0x4 - core index']
  #allocation1 [shape = 'u32[72,128]{1,0:T(1,128)}', space=vmem, size = 0x9000, scoped, tag = 'internal scratch']
  %s0 = inlined_call_operand.vmem [shape: bf16[2,128,1024], index: 0, kind: input, shape index: {}]
  %s1 = inlined_call_operand.vmem [shape: bf16[64,128], index: 1, kind: input, shape index: {}]
  %s2 = inlined_call_operand.vmem [shape: f32[16,1], index: 2, kind: input, shape index: {}]
  %s3 = inlined_call_operand.vmem [shape: bf16[2,16,1024], index: 3, kind: output, shape index: {}]
  %s4 = sld [smem:[#allocation0]]
  $region45: #{model_forward.7} parent=0
    _
  %s6 = ssub.s32 1, %s4
  %s7 = scalar_select 0, %s6, %s4
  loop: start=0, step=1, limit=4
  $region2: #{model_forward.7} parent=0 // loop_pre_header
    _
  $region3: #{model_forward.7} parent=0 // loop_header
    %s9 = sphi 0, %s13
    %p10 = scmp.ge.s32.totalorder %s9, 4
    %s16 = sphi 0, %s28
    %s17 = sphi 0, %s24
    %s18 = sphi 0, %s16
    %s19 = sphi 0, %s17
    %s20 = sphi 0, %s18
    %s21 = sphi 0, %s19
    %s33 = sphi 0, %s35
    %s36 = sphi 0, %s33
    %s37 = sphi 0, %s36
    %s53 = sphi 0, %s37
    %s57 = sphi 0, %s57
    %s59 = sphi 0, %s57
    %s60 = sphi 0, %s59
    %s74 = sphi 0, %s60
    %s78 = sphi 0, %s78
    %s80 = sphi 0, %s78
    %s81 = sphi 0, %s80
    %s95 = sphi 0, %s81
    %s103 = sphi 0, %s105
    %s106 = sphi 0, %s103
    %s107 = sphi 0, %s106
    %s123 = sphi 0, %s107
  $region4: #{model_forward.7} parent=0 // loop_header_branch
    %12 = sbr.rel (%p10) target = $region8
  $region5: #{model_forward.7} parent=0 // loop_body
    %s14 = ssub.s32 %s9, 1
    %s15 = ssub.s32 %s9, 2
    %s22 = sadd.s32 1, %s17
    %p23 = scmp.ge.s32.totalorder %s22, 1
    %s24 = scalar_select %p23, 0, %s22
    %s25 = sadd.s32 1, %s16
    %s26 = scalar_select %p23, %s25, %s16
    %p27 = scmp.ge.s32.totalorder %s26, 2
    %s28 = scalar_select %p27, 0, %s26
    %s29 = ssub.s32 %s16, %s28
    %s30 = ssub.s32 %s17, %s24
    %s31 = sor.u32 %s29, %s30
    %p32 = scmp.eq.s32.totalorder %s31, 0
    %s34 = sadd.s32 %s33, 1
    %s35 = scalar_select %p32, %s33, %s34
    %p38 = pneg %p32
    %p39 = scmp.eq.s32.totalorder %s9, 1
    %p40 = por %p38, %p39
    %p41 = scmp.ne.s32.totalorder %s33, %s36
    %p42 = scmp.eq.s32.totalorder %s9, 0
    %p43 = por %p41, %p42
    %p44 = scmp.ne.s32.totalorder %s33, %s36
    %p45 = scmp.eq.s32.totalorder %s14, 1
    %p46 = por %p44, %p45
    %p47 = scmp.ne.s32.totalorder %s36, %s37
    %p48 = scmp.eq.s32.totalorder %s14, 0
    %p49 = por %p47, %p48
    %p50 = scmp.ne.s32.totalorder %s36, %s37
    %p51 = scmp.eq.s32.totalorder %s15, 1
    %p52 = por %p50, %p51
    %p54 = scmp.ne.s32.totalorder %s37, %s53
    %p55 = scmp.eq.s32.totalorder %s15, 0
    %p56 = por %p54, %p55
    %s58 = sadd.s32 %s57, 1
    %p61 = scmp.eq.s32.totalorder %s9, 1
    %p62 = scmp.ne.s32.totalorder %s57, %s59
    %p63 = scmp.eq.s32.totalorder %s9, 0
    %p64 = por %p62, %p63
    %p65 = scmp.ne.s32.totalorder %s57, %s59
    %p66 = scmp.eq.s32.totalorder %s14, 1
    %p67 = por %p65, %p66
    %p68 = scmp.ne.s32.totalorder %s59, %s60
    %p69 = scmp.eq.s32.totalorder %s14, 0
    %p70 = por %p68, %p69
    %p71 = scmp.ne.s32.totalorder %s59, %s60
    %p72 = scmp.eq.s32.totalorder %s15, 1
    %p73 = por %p71, %p72
    %p75 = scmp.ne.s32.totalorder %s60, %s74
    %p76 = scmp.eq.s32.totalorder %s15, 0
    %p77 = por %p75, %p76
    %s79 = sadd.s32 %s78, 1
    %p82 = scmp.eq.s32.totalorder %s9, 1
    %p83 = scmp.ne.s32.totalorder %s78, %s80
    %p84 = scmp.eq.s32.totalorder %s9, 0
    %p85 = por %p83, %p84
    %p86 = scmp.ne.s32.totalorder %s78, %s80
    %p87 = scmp.eq.s32.totalorder %s14, 1
    %p88 = por %p86, %p87
    %p89 = scmp.ne.s32.totalorder %s80, %s81
    %p90 = scmp.eq.s32.totalorder %s14, 0
    %p91 = por %p89, %p90
    %p92 = scmp.ne.s32.totalorder %s80, %s81
    %p93 = scmp.eq.s32.totalorder %s15, 1
    %p94 = por %p92, %p93
    %p96 = scmp.ne.s32.totalorder %s81, %s95
    %p97 = scmp.eq.s32.totalorder %s15, 0
    %p98 = por %p96, %p97
    %s99 = ssub.s32 %s16, %s28
    %s100 = ssub.s32 %s17, %s24
    %s101 = sor.u32 %s99, %s100
    %p102 = scmp.eq.s32.totalorder %s101, 0
    %s104 = sadd.s32 %s103, 1
    %s105 = scalar_select %p102, %s103, %s104
    %p108 = pneg %p102
    %p109 = scmp.eq.s32.totalorder %s9, 1
    %p110 = por %p108, %p109
    %p111 = scmp.ne.s32.totalorder %s103, %s106
    %p112 = scmp.eq.s32.totalorder %s9, 0
    %p113 = por %p111, %p112
    %p114 = scmp.ne.s32.totalorder %s103, %s106
    %p115 = scmp.eq.s32.totalorder %s14, 1
    %p116 = por %p114, %p115
    %p117 = scmp.ne.s32.totalorder %s106, %s107
    %p118 = scmp.eq.s32.totalorder %s14, 0
    %p119 = por %p117, %p118
    %p120 = scmp.ne.s32.totalorder %s106, %s107
    %p121 = scmp.eq.s32.totalorder %s15, 1
    %p122 = por %p120, %p121
    %p124 = scmp.ne.s32.totalorder %s107, %s123
    %p125 = scmp.eq.s32.totalorder %s15, 0
    %p126 = por %p124, %p125
    %p127 = scmp.le.s32.totalorder 1, %s9
    %p128 = scmp.lt.s32.totalorder %s9, 3
    %p129 = pnand %p127, %p128
    %p130 = pneg %p129
    // Predicated region
    $region9: #{model_forward.7} parent=5 // pred_check
      _
    $region10: #{model_forward.7} parent=5 // pred_check_branch
      %132 = sbr.rel (%p129) target = $region12
    $region11: #{model_forward.7} parent=5 // pred_region
      %s133 = ssub.s32 %s9, 1
      // Predicated region
      $region13: #{model_forward.7} parent=11 // pred_check
        %p134 = pneg %p70
      $region14: #{model_forward.7} parent=11 // pred_check_branch
        %136 = sbr.rel (%p134) target = $region16
      $region15: #{model_forward.7} parent=11 // pred_region
        _
      $region16: #{model_forward.7} parent=11 // pred_fallthru
        _
      // Predicated region
      $region17: #{model_forward.7} parent=11 // pred_check
        %p137 = pneg %p91
      $region18: #{model_forward.7} parent=11 // pred_check_branch
        %139 = sbr.rel (%p137) target = $region20
      $region19: #{model_forward.7} parent=11 // pred_region
        _
      $region20: #{model_forward.7} parent=11 // pred_fallthru
        _
    $region12: #{model_forward.7} parent=5 // pred_fallthru
      _
    %p140 = scmp.lt.s32.totalorder %s9, 2
    // Predicated region
    $region21: #{model_forward.7} parent=5 // pred_check
      %p141 = pneg %p140
    $region22: #{model_forward.7} parent=5 // pred_check_branch
      %143 = sbr.rel (%p141) target = $region24
    $region23: #{model_forward.7} parent=5 // pred_region
      // Predicated region
      $region25: #{model_forward.7} parent=23 // pred_check
        %p144 = pneg %p43
      $region26: #{model_forward.7} parent=23 // pred_check_branch
        %146 = sbr.rel (%p144) target = $region28
      $region27: #{model_forward.7} parent=23 // pred_region
        %s147 = smul.u32 8, %s17
        %p148 = scmp.lt.s32.totalorder %s16, 1
        %s149 = scalar_select %p148, %s16, 1
        %p150 = scmp.lt.s32.totalorder %s147, 7
        %s151 = scalar_select %p150, %s147, 7
        %s152 = smul.addr %s149, 128
        %s153 = sadd.s32 %s151, %s152
        %s154 = smul.addr %s153, 4
        %s155 = scalar_lea.vmem %s0, %s154
        %s156 = smul.u32 8, %s17
      $region28: #{model_forward.7} parent=23 // pred_fallthru
        _
    $region24: #{model_forward.7} parent=5 // pred_fallthru
      _
    %p157 = scmp.le.s32.totalorder 1, %s9
    %p158 = scmp.lt.s32.totalorder %s9, 3
    %p159 = pnand %p157, %p158
    %p160 = pneg %p159
    // Predicated region
    $region29: #{model_forward.7} parent=5 // pred_check
      _
    $region30: #{model_forward.7} parent=5 // pred_check_branch
      %162 = sbr.rel (%p159) target = $region32
    $region31: #{model_forward.7} parent=5 // pred_region
      %s163 = ssub.s32 %s9, 1
      %s164 = smul.u32 8, %s19
      %p165 = scmp.lt.s32.totalorder %s18, 1
      %s166 = scalar_select %p165, %s18, 1
      %p167 = scmp.lt.s32.totalorder %s164, 7
      %s168 = scalar_select %p167, %s164, 7
      %s169 = smul.addr %s166, 128
      %s170 = sadd.s32 %s168, %s169
      %s171 = smul.addr %s170, 4
      %s172 = scalar_lea.vmem %s0, %s171
      %p173 = pneg %p49
      %p174 = pneg %p46
      %p175 = pneg %p70
      %p176 = pneg %p67
      %p177 = pneg %p91
      %p178 = pneg %p88
      %p179 = pneg %p119
      %p180 = pneg %p116
      %s181 = smul.u32 8, %s19
      %p182 = scmp.lt.s32.totalorder %s18, 1
      %s183 = scalar_select %p182, %s18, 1
      %p184 = scmp.lt.s32.totalorder %s181, 7
      %s185 = scalar_select %p184, %s181, 7
      %s186 = smul.addr %s183, 16
      %s187 = sadd.s32 %s185, %s186
      %s188 = smul.addr %s187, 4
      %s189 = scalar_lea.vmem %s3, %s188
      %s190 = smul.u32 8, %s19
      %p191 = scmp.lt.s32.totalorder %s18, 1
      %s192 = scalar_select %p191, %s18, 1
      %p193 = scmp.lt.s32.totalorder %s190, 7
      %s194 = scalar_select %p193, %s190, 7
      %s195 = smul.addr %s192, 128
      %s196 = sadd.s32 %s194, %s195
      %s197 = smul.addr %s196, 4
      %s198 = scalar_lea.vmem %s0, %s197
      %s199 = smul.u32 8, %s19
      %s200 = smul.u32 8, %s19
      %p201 = scmp.lt.s32.totalorder %s18, 1
      %s202 = scalar_select %p201, %s18, 1
      %p203 = scmp.lt.s32.totalorder %s200, 7
      %s204 = scalar_select %p203, %s200, 7
      %s205 = smul.addr %s202, 16
      %s206 = sadd.s32 %s204, %s205
      %s207 = smul.addr %s206, 4
      %s208 = scalar_lea.vmem %s3, %s207
      %s209 = smul.u32 8, %s19
      %v210 = vld [vmem:[%s1] sm:$0xf]
      %v211 = vld [vmem:[%s1 + $0x4] sm:$0xf]
      %v212 = vld [vmem:[%s1 + $0x8] sm:$0xf]
      %v213 = vld [vmem:[%s1 + $0xc] sm:$0xf]
      %v214 = vld [vmem:[%s1 + $0x10] sm:$0xf]
      %v215 = vld [vmem:[%s1 + $0x14] sm:$0xf]
      %v216 = vld [vmem:[%s1 + $0x18] sm:$0xf]
      %v217 = vld [vmem:[%s1 + $0x1c] sm:$0xf]
      %v218 = vld [vmem:[%s198] sm:$0xff]
      %v219 = vld [vmem:[%s198 + $0x8] sm:$0xff]
      %v220 = vld [vmem:[%s198 + $0x10] sm:$0xff]
      %v221 = vld [vmem:[%s198 + $0x18] sm:$0xff]
      %v222 = vld [vmem:[%s198 + $0x20] sm:$0xff]
      %v223 = vld [vmem:[%s198 + $0x28] sm:$0xff]
      %v224 = vld [vmem:[%s198 + $0x30] sm:$0xff]
      %v225 = vld [vmem:[%s198 + $0x38] sm:$0xff]
      %v226 = vld [vmem:[%s198 + $0x40] sm:$0xff]
      %v227 = vld [vmem:[%s198 + $0x48] sm:$0xff]
      %v228 = vld [vmem:[%s198 + $0x50] sm:$0xff]
      %v229 = vld [vmem:[%s198 + $0x58] sm:$0xff]
      %v230 = vld [vmem:[%s198 + $0x60] sm:$0xff]
      %v231 = vld [vmem:[%s198 + $0x68] sm:$0xff]
      %v232 = vld [vmem:[%s198 + $0x70] sm:$0xff]
      %v233 = vld [vmem:[%s198 + $0x78] sm:$0xff]
      %v234 = vld [vmem:[%s198 + $0x80] sm:$0xff]
      %v235 = vld [vmem:[%s198 + $0x88] sm:$0xff]
      %v236 = vld [vmem:[%s198 + $0x90] sm:$0xff]
      %v237 = vld [vmem:[%s198 + $0x98] sm:$0xff]
      %v238 = vld [vmem:[%s198 + $0xa0] sm:$0xff]
      %v239 = vld [vmem:[%s198 + $0xa8] sm:$0xff]
      %v240 = vld [vmem:[%s198 + $0xb0] sm:$0xff]
      %v241 = vld [vmem:[%s198 + $0xb8] sm:$0xff]
      %v242 = vld [vmem:[%s198 + $0xc0] sm:$0xff]
      %v243 = vld [vmem:[%s198 + $0xc8] sm:$0xff]
      %v244 = vld [vmem:[%s198 + $0xd0] sm:$0xff]
      %v245 = vld [vmem:[%s198 + $0xd8] sm:$0xff]
      %v246 = vld [vmem:[%s198 + $0xe0] sm:$0xff]
      %v247 = vld [vmem:[%s198 + $0xe8] sm:$0xff]
      %v248 = vld [vmem:[%s198 + $0xf0] sm:$0xff]
      %v249 = vld [vmem:[%s198 + $0xf8] sm:$0xff]
      %v250 = vld [vmem:[%s198 + $0x100] sm:$0xff]
      %v251 = vld [vmem:[%s198 + $0x108] sm:$0xff]
      %v252 = vld [vmem:[%s198 + $0x110] sm:$0xff]
      %v253 = vld [vmem:[%s198 + $0x118] sm:$0xff]
      %v254 = vld [vmem:[%s198 + $0x120] sm:$0xff]
      %v255 = vld [vmem:[%s198 + $0x128] sm:$0xff]
      %v256 = vld [vmem:[%s198 + $0x130] sm:$0xff]
      %v257 = vld [vmem:[%s198 + $0x138] sm:$0xff]
      %v258 = vld [vmem:[%s198 + $0x140] sm:$0xff]
      %v259 = vld [vmem:[%s198 + $0x148] sm:$0xff]
      %v260 = vld [vmem:[%s198 + $0x150] sm:$0xff]
      %v261 = vld [vmem:[%s198 + $0x158] sm:$0xff]
      %v262 = vld [vmem:[%s198 + $0x160] sm:$0xff]
      %v263 = vld [vmem:[%s198 + $0x168] sm:$0xff]
      %v264 = vld [vmem:[%s198 + $0x170] sm:$0xff]
      %v265 = vld [vmem:[%s198 + $0x178] sm:$0xff]
      %v266 = vld [vmem:[%s198 + $0x180] sm:$0xff]
      %v267 = vld [vmem:[%s198 + $0x188] sm:$0xff]
      %v268 = vld [vmem:[%s198 + $0x190] sm:$0xff]
      %v269 = vld [vmem:[%s198 + $0x198] sm:$0xff]
      %v270 = vld [vmem:[%s198 + $0x1a0] sm:$0xff]
      %v271 = vld [vmem:[%s198 + $0x1a8] sm:$0xff]
      %v272 = vld [vmem:[%s198 + $0x1b0] sm:$0xff]
      %v273 = vld [vmem:[%s198 + $0x1b8] sm:$0xff]
      %v274 = vld [vmem:[%s198 + $0x1c0] sm:$0xff]
      %v275 = vld [vmem:[%s198 + $0x1c8] sm:$0xff]
      %v276 = vld [vmem:[%s198 + $0x1d0] sm:$0xff]
      %v277 = vld [vmem:[%s198 + $0x1d8] sm:$0xff]
      %v278 = vld [vmem:[%s198 + $0x1e0] sm:$0xff]
      %v279 = vld [vmem:[%s198 + $0x1e8] sm:$0xff]
      %v280 = vld [vmem:[%s198 + $0x1f0] sm:$0xff]
      %v281 = vld [vmem:[%s198 + $0x1f8] sm:$0xff]
      %v290 = vunpack.c.l.b16 %v210
      %v291 = vunpack.c.l.b16 %v211
      %v292 = vunpack.c.l.b16 %v212
      %v293 = vunpack.c.l.b16 %v213
      %v294 = vunpack.c.l.b16 %v214
      %v295 = vunpack.c.l.b16 %v215
      %v296 = vunpack.c.l.b16 %v216
      %v297 = vunpack.c.l.b16 %v217
      %v298 = vpack.c.b16 %v291, %v290
      %v299 = vpack.c.b16 %v293, %v292
      %v300 = vpack.c.b16 %v295, %v294
      %v301 = vpack.c.b16 %v297, %v296
      %v370 = vunpack.c.l.b16 %v218
      %v371 = vunpack.c.h.b16 %v218
      %v372 = vunpack.c.l.b16 %v219
      %v373 = vunpack.c.h.b16 %v219
      %v374 = vunpack.c.l.b16 %v220
      %v375 = vunpack.c.h.b16 %v220
      %v376 = vunpack.c.l.b16 %v221
      %v377 = vunpack.c.h.b16 %v221
      %v378 = vunpack.c.l.b16 %v222
      %v379 = vunpack.c.h.b16 %v222
      %v380 = vunpack.c.l.b16 %v223
      %v381 = vunpack.c.h.b16 %v223
      %v382 = vunpack.c.l.b16 %v224
      %v383 = vunpack.c.h.b16 %v224
      %v384 = vunpack.c.l.b16 %v225
      %v385 = vunpack.c.h.b16 %v225
      %v386 = vunpack.c.l.b16 %v226
      %v387 = vunpack.c.h.b16 %v226
      %v388 = vunpack.c.l.b16 %v227
      %v389 = vunpack.c.h.b16 %v227
      %v390 = vunpack.c.l.b16 %v228
      %v391 = vunpack.c.h.b16 %v228
      %v392 = vunpack.c.l.b16 %v229
      %v393 = vunpack.c.h.b16 %v229
      %v394 = vunpack.c.l.b16 %v230
      %v395 = vunpack.c.h.b16 %v230
      %v396 = vunpack.c.l.b16 %v231
      %v397 = vunpack.c.h.b16 %v231
      %v398 = vunpack.c.l.b16 %v232
      %v399 = vunpack.c.h.b16 %v232
      %v400 = vunpack.c.l.b16 %v233
      %v401 = vunpack.c.h.b16 %v233
      %v402 = vunpack.c.l.b16 %v234
      %v403 = vunpack.c.h.b16 %v234
      %v404 = vunpack.c.l.b16 %v235
      %v405 = vunpack.c.h.b16 %v235
      %v406 = vunpack.c.l.b16 %v236
      %v407 = vunpack.c.h.b16 %v236
      %v408 = vunpack.c.l.b16 %v237
      %v409 = vunpack.c.h.b16 %v237
      %v410 = vunpack.c.l.b16 %v238
      %v411 = vunpack.c.h.b16 %v238
      %v412 = vunpack.c.l.b16 %v239
      %v413 = vunpack.c.h.b16 %v239
      %v414 = vunpack.c.l.b16 %v240
      %v415 = vunpack.c.h.b16 %v240
      %v416 = vunpack.c.l.b16 %v241
      %v417 = vunpack.c.h.b16 %v241
      %v418 = vunpack.c.l.b16 %v242
      %v419 = vunpack.c.h.b16 %v242
      %v420 = vunpack.c.l.b16 %v243
      %v421 = vunpack.c.h.b16 %v243
      %v422 = vunpack.c.l.b16 %v244
      %v423 = vunpack.c.h.b16 %v244
      %v424 = vunpack.c.l.b16 %v245
      %v425 = vunpack.c.h.b16 %v245
      %v426 = vunpack.c.l.b16 %v246
      %v427 = vunpack.c.h.b16 %v246
      %v428 = vunpack.c.l.b16 %v247
      %v429 = vunpack.c.h.b16 %v247
      %v430 = vunpack.c.l.b16 %v248
      %v431 = vunpack.c.h.b16 %v248
      %v432 = vunpack.c.l.b16 %v249
      %v433 = vunpack.c.h.b16 %v249
      %v434 = vunpack.c.l.b16 %v250
      %v435 = vunpack.c.h.b16 %v250
      %v436 = vunpack.c.l.b16 %v251
      %v437 = vunpack.c.h.b16 %v251
      %v438 = vunpack.c.l.b16 %v252
      %v439 = vunpack.c.h.b16 %v252
      %v440 = vunpack.c.l.b16 %v253
      %v441 = vunpack.c.h.b16 %v253
      %v442 = vunpack.c.l.b16 %v254
      %v443 = vunpack.c.h.b16 %v254
      %v444 = vunpack.c.l.b16 %v255
      %v445 = vunpack.c.h.b16 %v255
      %v446 = vunpack.c.l.b16 %v256
      %v447 = vunpack.c.h.b16 %v256
      %v448 = vunpack.c.l.b16 %v257
      %v449 = vunpack.c.h.b16 %v257
      %v450 = vunpack.c.l.b16 %v258
      %v451 = vunpack.c.h.b16 %v258
      %v452 = vunpack.c.l.b16 %v259
      %v453 = vunpack.c.h.b16 %v259
      %v454 = vunpack.c.l.b16 %v260
      %v455 = vunpack.c.h.b16 %v260
      %v456 = vunpack.c.l.b16 %v261
      %v457 = vunpack.c.h.b16 %v261
      %v458 = vunpack.c.l.b16 %v262
      %v459 = vunpack.c.h.b16 %v262
      %v460 = vunpack.c.l.b16 %v263
      %v461 = vunpack.c.h.b16 %v263
      %v462 = vunpack.c.l.b16 %v264
      %v463 = vunpack.c.h.b16 %v264
      %v464 = vunpack.c.l.b16 %v265
      %v465 = vunpack.c.h.b16 %v265
      %v466 = vunpack.c.l.b16 %v266
      %v467 = vunpack.c.h.b16 %v266
      %v468 = vunpack.c.l.b16 %v267
      %v469 = vunpack.c.h.b16 %v267
      %v470 = vunpack.c.l.b16 %v268
      %v471 = vunpack.c.h.b16 %v268
      %v472 = vunpack.c.l.b16 %v269
      %v473 = vunpack.c.h.b16 %v269
      %v474 = vunpack.c.l.b16 %v270
      %v475 = vunpack.c.h.b16 %v270
      %v476 = vunpack.c.l.b16 %v271
      %v477 = vunpack.c.h.b16 %v271
      %v478 = vunpack.c.l.b16 %v272
      %v479 = vunpack.c.h.b16 %v272
      %v480 = vunpack.c.l.b16 %v273
      %v481 = vunpack.c.h.b16 %v273
      %v482 = vunpack.c.l.b16 %v274
      %v483 = vunpack.c.h.b16 %v274
      %v484 = vunpack.c.l.b16 %v275
      %v485 = vunpack.c.h.b16 %v275
      %v486 = vunpack.c.l.b16 %v276
      %v487 = vunpack.c.h.b16 %v276
      %v488 = vunpack.c.l.b16 %v277
      %v489 = vunpack.c.h.b16 %v277
      %v490 = vunpack.c.l.b16 %v278
      %v491 = vunpack.c.h.b16 %v278
      %v492 = vunpack.c.l.b16 %v279
      %v493 = vunpack.c.h.b16 %v279
      %v494 = vunpack.c.l.b16 %v280
      %v495 = vunpack.c.h.b16 %v280
      %v496 = vunpack.c.l.b16 %v281
      %v497 = vunpack.c.h.b16 %v281
      %v498 = vpack.c.b16 %v378, %v370
      %v499 = vpack.c.b16 %v379, %v371
      %v500 = vpack.c.b16 %v380, %v372
      %v501 = vpack.c.b16 %v381, %v373
      %v502 = vpack.c.b16 %v382, %v374
      %v503 = vpack.c.b16 %v383, %v375
      %v504 = vpack.c.b16 %v384, %v376
      %v505 = vpack.c.b16 %v385, %v377
      %v506 = vpack.c.b16 %v394, %v386
      %v507 = vpack.c.b16 %v395, %v387
      %v508 = vpack.c.b16 %v396, %v388
      %v509 = vpack.c.b16 %v397, %v389
      %v510 = vpack.c.b16 %v398, %v390
      %v511 = vpack.c.b16 %v399, %v391
      %v512 = vpack.c.b16 %v400, %v392
      %v513 = vpack.c.b16 %v401, %v393
      %v514 = vpack.c.b16 %v410, %v402
      %v515 = vpack.c.b16 %v411, %v403
      %v516 = vpack.c.b16 %v412, %v404
      %v517 = vpack.c.b16 %v413, %v405
      %v518 = vpack.c.b16 %v414, %v406
      %v519 = vpack.c.b16 %v415, %v407
      %v520 = vpack.c.b16 %v416, %v408
      %v521 = vpack.c.b16 %v417, %v409
      %v522 = vpack.c.b16 %v426, %v418
      %v523 = vpack.c.b16 %v427, %v419
      %v524 = vpack.c.b16 %v428, %v420
      %v525 = vpack.c.b16 %v429, %v421
      %v526 = vpack.c.b16 %v430, %v422
      %v527 = vpack.c.b16 %v431, %v423
      %v528 = vpack.c.b16 %v432, %v424
      %v529 = vpack.c.b16 %v433, %v425
      %v530 = vpack.c.b16 %v442, %v434
      %v531 = vpack.c.b16 %v443, %v435
      %v532 = vpack.c.b16 %v444, %v436
      %v533 = vpack.c.b16 %v445, %v437
      %v534 = vpack.c.b16 %v446, %v438
      %v535 = vpack.c.b16 %v447, %v439
      %v536 = vpack.c.b16 %v448, %v440
      %v537 = vpack.c.b16 %v449, %v441
      %v538 = vpack.c.b16 %v458, %v450
      %v539 = vpack.c.b16 %v459, %v451
      %v540 = vpack.c.b16 %v460, %v452
      %v541 = vpack.c.b16 %v461, %v453
      %v542 = vpack.c.b16 %v462, %v454
      %v543 = vpack.c.b16 %v463, %v455
      %v544 = vpack.c.b16 %v464, %v456
      %v545 = vpack.c.b16 %v465, %v457
      %v546 = vpack.c.b16 %v474, %v466
      %v547 = vpack.c.b16 %v475, %v467
      %v548 = vpack.c.b16 %v476, %v468
      %v549 = vpack.c.b16 %v477, %v469
      %v550 = vpack.c.b16 %v478, %v470
      %v551 = vpack.c.b16 %v479, %v471
      %v552 = vpack.c.b16 %v480, %v472
      %v553 = vpack.c.b16 %v481, %v473
      %v554 = vpack.c.b16 %v490, %v482
      %v555 = vpack.c.b16 %v491, %v483
      %v556 = vpack.c.b16 %v492, %v484
      %v557 = vpack.c.b16 %v493, %v485
      %v558 = vpack.c.b16 %v494, %v486
      %v559 = vpack.c.b16 %v495, %v487
      %v560 = vpack.c.b16 %v496, %v488
      %v561 = vpack.c.b16 %v497, %v489
      %626 = vmatpush.bf16.msra.mxu0 %v554
      %627 = vmatpush.bf16.msra.mxu0 %v546
      %628 = vmatpush.bf16.msra.mxu0 %v538
      %629 = vmatpush.bf16.msra.mxu0 %v530
      %630 = vmatpush.bf16.msra.mxu0 %v522
      %631 = vmatpush.bf16.msra.mxu0 %v514
      %632 = vmatpush.bf16.msra.mxu0 %v506
      %633 = vmatpush.bf16.msra.mxu0 %v498
      %634 = vmatmul.bf16.gmra.mxu0 %v298
      %v635 = vpop.f32.mrf.mxu0
      %v636 = vadd.f32 0.0, %v635
      %v637 = vpop.f32.mrf.mxu0
      %v638 = vadd.f32 0.0, %v637
      %639 = vmatmul.bf16.gmra.mxu0 %v299
      %v640 = vpop.f32.mrf.mxu0
      %v641 = vadd.f32 0.0, %v640
      %v642 = vpop.f32.mrf.mxu0
      %v643 = vadd.f32 0.0, %v642
      %644 = vmatmul.bf16.gmra.mxu0 %v300
      %v645 = vpop.f32.mrf.mxu0
      %v646 = vadd.f32 0.0, %v645
      %v647 = vpop.f32.mrf.mxu0
      %v648 = vadd.f32 0.0, %v647
      %649 = vmatmul.bf16.gmra.mxu0 %v301
      %v650 = vpop.f32.mrf.mxu0
      %v651 = vadd.f32 0.0, %v650
      %v652 = vpop.f32.mrf.mxu0
      %v653 = vadd.f32 0.0, %v652
      %654 = vdwg.mxu0
      %655 = vmatpush.bf16.msra.mxu0 %v555
      %656 = vmatpush.bf16.msra.mxu0 %v547
      %657 = vmatpush.bf16.msra.mxu0 %v539
      %658 = vmatpush.bf16.msra.mxu0 %v531
      %659 = vmatpush.bf16.msra.mxu0 %v523
      %660 = vmatpush.bf16.msra.mxu0 %v515
      %661 = vmatpush.bf16.msra.mxu0 %v507
      %662 = vmatpush.bf16.msra.mxu0 %v499
      %663 = vmatmul.bf16.gmra.mxu0 %v298
      %v664 = vpop.f32.mrf.mxu0
      %v665 = vadd.f32 0.0, %v664
      %v666 = vpop.f32.mrf.mxu0
      %v667 = vadd.f32 0.0, %v666
      %668 = vmatmul.bf16.gmra.mxu0 %v299
      %v669 = vpop.f32.mrf.mxu0
      %v670 = vadd.f32 0.0, %v669
      %v671 = vpop.f32.mrf.mxu0
      %v672 = vadd.f32 0.0, %v671
      %673 = vmatmul.bf16.gmra.mxu0 %v300
      %v674 = vpop.f32.mrf.mxu0
      %v675 = vadd.f32 0.0, %v674
      %v676 = vpop.f32.mrf.mxu0
      %v677 = vadd.f32 0.0, %v676
      %678 = vmatmul.bf16.gmra.mxu0 %v301
      %v679 = vpop.f32.mrf.mxu0
      %v680 = vadd.f32 0.0, %v679
      %v681 = vpop.f32.mrf.mxu0
      %v682 = vadd.f32 0.0, %v681
      %683 = vdwg.mxu0
      %684 = vmatpush.bf16.msra.mxu0 %v556
      %685 = vmatpush.bf16.msra.mxu0 %v548
      %686 = vmatpush.bf16.msra.mxu0 %v540
      %687 = vmatpush.bf16.msra.mxu0 %v532
      %688 = vmatpush.bf16.msra.mxu0 %v524
      %689 = vmatpush.bf16.msra.mxu0 %v516
      %690 = vmatpush.bf16.msra.mxu0 %v508
      %691 = vmatpush.bf16.msra.mxu0 %v500
      %692 = vmatmul.bf16.gmra.mxu0 %v298
      %v693 = vpop.f32.mrf.mxu0
      %v694 = vadd.f32 0.0, %v693
      %v695 = vpop.f32.mrf.mxu0
      %v696 = vadd.f32 0.0, %v695
      %697 = vmatmul.bf16.gmra.mxu0 %v299
      %v698 = vpop.f32.mrf.mxu0
      %v699 = vadd.f32 0.0, %v698
      %v700 = vpop.f32.mrf.mxu0
      %v701 = vadd.f32 0.0, %v700
      %702 = vmatmul.bf16.gmra.mxu0 %v300
      %v703 = vpop.f32.mrf.mxu0
      %v704 = vadd.f32 0.0, %v703
      %v705 = vpop.f32.mrf.mxu0
      %v706 = vadd.f32 0.0, %v705
      %707 = vmatmul.bf16.gmra.mxu0 %v301
      %v708 = vpop.f32.mrf.mxu0
      %v709 = vadd.f32 0.0, %v708
      %v710 = vpop.f32.mrf.mxu0
      %v711 = vadd.f32 0.0, %v710
      %712 = vdwg.mxu0
      %713 = vmatpush.bf16.msra.mxu0 %v557
      %714 = vmatpush.bf16.msra.mxu0 %v549
      %715 = vmatpush.bf16.msra.mxu0 %v541
      %716 = vmatpush.bf16.msra.mxu0 %v533
      %717 = vmatpush.bf16.msra.mxu0 %v525
      %718 = vmatpush.bf16.msra.mxu0 %v517
      %719 = vmatpush.bf16.msra.mxu0 %v509
      %720 = vmatpush.bf16.msra.mxu0 %v501
      %721 = vmatmul.bf16.gmra.mxu0 %v298
      %v722 = vpop.f32.mrf.mxu0
      %v723 = vadd.f32 0.0, %v722
      %v724 = vpop.f32.mrf.mxu0
      %v725 = vadd.f32 0.0, %v724
      %726 = vmatmul.bf16.gmra.mxu0 %v299
      %v727 = vpop.f32.mrf.mxu0
      %v728 = vadd.f32 0.0, %v727
      %v729 = vpop.f32.mrf.mxu0
      %v730 = vadd.f32 0.0, %v729
      %731 = vmatmul.bf16.gmra.mxu0 %v300
      %v732 = vpop.f32.mrf.mxu0
      %v733 = vadd.f32 0.0, %v732
      %v734 = vpop.f32.mrf.mxu0
      %v735 = vadd.f32 0.0, %v734
      %736 = vmatmul.bf16.gmra.mxu0 %v301
      %v737 = vpop.f32.mrf.mxu0
      %v738 = vadd.f32 0.0, %v737
      %v739 = vpop.f32.mrf.mxu0
      %v740 = vadd.f32 0.0, %v739
      %741 = vdwg.mxu0
      %742 = vmatpush.bf16.msra.mxu0 %v558
      %743 = vmatpush.bf16.msra.mxu0 %v550
      %744 = vmatpush.bf16.msra.mxu0 %v542
      %745 = vmatpush.bf16.msra.mxu0 %v534
      %746 = vmatpush.bf16.msra.mxu0 %v526
      %747 = vmatpush.bf16.msra.mxu0 %v518
      %748 = vmatpush.bf16.msra.mxu0 %v510
      %749 = vmatpush.bf16.msra.mxu0 %v502
      %750 = vmatmul.bf16.gmra.mxu0 %v298
      %v751 = vpop.f32.mrf.mxu0
      %v752 = vadd.f32 0.0, %v751
      %v753 = vpop.f32.mrf.mxu0
      %v754 = vadd.f32 0.0, %v753
      %755 = vmatmul.bf16.gmra.mxu0 %v299
      %v756 = vpop.f32.mrf.mxu0
      %v757 = vadd.f32 0.0, %v756
      %v758 = vpop.f32.mrf.mxu0
      %v759 = vadd.f32 0.0, %v758
      %760 = vmatmul.bf16.gmra.mxu0 %v300
      %v761 = vpop.f32.mrf.mxu0
      %v762 = vadd.f32 0.0, %v761
      %v763 = vpop.f32.mrf.mxu0
      %v764 = vadd.f32 0.0, %v763
      %765 = vmatmul.bf16.gmra.mxu0 %v301
      %v766 = vpop.f32.mrf.mxu0
      %v767 = vadd.f32 0.0, %v766
      %v768 = vpop.f32.mrf.mxu0
      %v769 = vadd.f32 0.0, %v768
      %770 = vdwg.mxu0
      %771 = vmatpush.bf16.msra.mxu0 %v559
      %772 = vmatpush.bf16.msra.mxu0 %v551
      %773 = vmatpush.bf16.msra.mxu0 %v543
      %774 = vmatpush.bf16.msra.mxu0 %v535
      %775 = vmatpush.bf16.msra.mxu0 %v527
      %776 = vmatpush.bf16.msra.mxu0 %v519
      %777 = vmatpush.bf16.msra.mxu0 %v511
      %778 = vmatpush.bf16.msra.mxu0 %v503
      %779 = vmatmul.bf16.gmra.mxu0 %v298
      %v780 = vpop.f32.mrf.mxu0
      %v781 = vadd.f32 0.0, %v780
      %v782 = vpop.f32.mrf.mxu0
      %v783 = vadd.f32 0.0, %v782
      %784 = vmatmul.bf16.gmra.mxu0 %v299
      %v785 = vpop.f32.mrf.mxu0
      %v786 = vadd.f32 0.0, %v785
      %v787 = vpop.f32.mrf.mxu0
      %v788 = vadd.f32 0.0, %v787
      %789 = vmatmul.bf16.gmra.mxu0 %v300
      %v790 = vpop.f32.mrf.mxu0
      %v791 = vadd.f32 0.0, %v790
      %v792 = vpop.f32.mrf.mxu0
      %v793 = vadd.f32 0.0, %v792
      %794 = vmatmul.bf16.gmra.mxu0 %v301
      %v795 = vpop.f32.mrf.mxu0
      %v796 = vadd.f32 0.0, %v795
      %v797 = vpop.f32.mrf.mxu0
      %v798 = vadd.f32 0.0, %v797
      %799 = vdwg.mxu0
      %800 = vmatpush.bf16.msra.mxu0 %v560
      %801 = vmatpush.bf16.msra.mxu0 %v552
      %802 = vmatpush.bf16.msra.mxu0 %v544
      %803 = vmatpush.bf16.msra.mxu0 %v536
      %804 = vmatpush.bf16.msra.mxu0 %v528
      %805 = vmatpush.bf16.msra.mxu0 %v520
      %806 = vmatpush.bf16.msra.mxu0 %v512
      %807 = vmatpush.bf16.msra.mxu0 %v504
      %808 = vmatmul.bf16.gmra.mxu0 %v298
      %v809 = vpop.f32.mrf.mxu0
      %v810 = vadd.f32 0.0, %v809
      %v811 = vpop.f32.mrf.mxu0
      %v812 = vadd.f32 0.0, %v811
      %813 = vmatmul.bf16.gmra.mxu0 %v299
      %v814 = vpop.f32.mrf.mxu0
      %v815 = vadd.f32 0.0, %v814
      %v816 = vpop.f32.mrf.mxu0
      %v817 = vadd.f32 0.0, %v816
      %818 = vmatmul.bf16.gmra.mxu0 %v300
      %v819 = vpop.f32.mrf.mxu0
      %v820 = vadd.f32 0.0, %v819
      %v821 = vpop.f32.mrf.mxu0
      %v822 = vadd.f32 0.0, %v821
      %823 = vmatmul.bf16.gmra.mxu0 %v301
      %v824 = vpop.f32.mrf.mxu0
      %v825 = vadd.f32 0.0, %v824
      %v826 = vpop.f32.mrf.mxu0
      %v827 = vadd.f32 0.0, %v826
      %828 = vdwg.mxu0
      %829 = vmatpush.bf16.msra.mxu0 %v561
      %830 = vmatpush.bf16.msra.mxu0 %v553
      %831 = vmatpush.bf16.msra.mxu0 %v545
      %832 = vmatpush.bf16.msra.mxu0 %v537
      %833 = vmatpush.bf16.msra.mxu0 %v529
      %834 = vmatpush.bf16.msra.mxu0 %v521
      %835 = vmatpush.bf16.msra.mxu0 %v513
      %836 = vmatpush.bf16.msra.mxu0 %v505
      %837 = vmatmul.bf16.gmra.mxu0 %v298
      %v838 = vpop.f32.mrf.mxu0
      %v839 = vadd.f32 0.0, %v838
      %v840 = vpop.f32.mrf.mxu0
      %v841 = vadd.f32 0.0, %v840
      %842 = vmatmul.bf16.gmra.mxu0 %v299
      %v843 = vpop.f32.mrf.mxu0
      %v844 = vadd.f32 0.0, %v843
      %v845 = vpop.f32.mrf.mxu0
      %v846 = vadd.f32 0.0, %v845
      %847 = vmatmul.bf16.gmra.mxu0 %v300
      %v848 = vpop.f32.mrf.mxu0
      %v849 = vadd.f32 0.0, %v848
      %v850 = vpop.f32.mrf.mxu0
      %v851 = vadd.f32 0.0, %v850
      %852 = vmatmul.bf16.gmra.mxu0 %v301
      %v853 = vpop.f32.mrf.mxu0
      %v854 = vadd.f32 0.0, %v853
      %v855 = vpop.f32.mrf.mxu0
      %v856 = vadd.f32 0.0, %v855
      %857 = vdwg.mxu0
      %v858 = vmax.f32 %v636, %v641
      %v859 = vmax.f32 %v665, %v670
      %v860 = vmax.f32 %v694, %v699
      %v861 = vmax.f32 %v723, %v728
      %v862 = vmax.f32 %v752, %v757
      %v863 = vmax.f32 %v781, %v786
      %v864 = vmax.f32 %v810, %v815
      %v865 = vmax.f32 %v839, %v844
      %v866 = vmax.f32 %v638, %v643
      %v867 = vmax.f32 %v667, %v672
      %v868 = vmax.f32 %v696, %v701
      %v869 = vmax.f32 %v725, %v730
      %v870 = vmax.f32 %v754, %v759
      %v871 = vmax.f32 %v783, %v788
      %v872 = vmax.f32 %v812, %v817
      %v873 = vmax.f32 %v841, %v846
      %v874 = vmax.f32 %v646, %v651
      %v875 = vmax.f32 %v675, %v680
      %v876 = vmax.f32 %v704, %v709
      %v877 = vmax.f32 %v733, %v738
      %v878 = vmax.f32 %v762, %v767
      %v879 = vmax.f32 %v791, %v796
      %v880 = vmax.f32 %v820, %v825
      %v881 = vmax.f32 %v849, %v854
      %v882 = vmax.f32 %v648, %v653
      %v883 = vmax.f32 %v677, %v682
      %v884 = vmax.f32 %v706, %v711
      %v885 = vmax.f32 %v735, %v740
      %v886 = vmax.f32 %v764, %v769
      %v887 = vmax.f32 %v793, %v798
      %v888 = vmax.f32 %v822, %v827
      %v889 = vmax.f32 %v851, %v856
      %v890 = vmax.f32 %v858, %v874
      %v891 = vmax.f32 %v859, %v875
      %v892 = vmax.f32 %v860, %v876
      %v893 = vmax.f32 %v861, %v877
      %v894 = vmax.f32 %v862, %v878
      %v895 = vmax.f32 %v863, %v879
      %v896 = vmax.f32 %v864, %v880
      %v897 = vmax.f32 %v865, %v881
      %v898 = vmax.f32 %v866, %v882
      %v899 = vmax.f32 %v867, %v883
      %v900 = vmax.f32 %v868, %v884
      %v901 = vmax.f32 %v869, %v885
      %v902 = vmax.f32 %v870, %v886
      %v903 = vmax.f32 %v871, %v887
      %v904 = vmax.f32 %v872, %v888
      %v905 = vmax.f32 %v873, %v889
      %v906 = vld [vmem:[%s2] sm:$0xff]
      %v907 = vld [vmem:[%s2 + $0x8] sm:$0xff]
      %909 = vset.pattern.permute.xlu0 0
      %910 = vperm.xlu0 %909, %v906
      %v911 = vpop.permute.xlu0 %910
      %914 = vset.pattern.permute.xlu0 0
      %915 = vperm.xlu0 %914, %v907
      %v916 = vpop.permute.xlu0 %915
      %v918 = vadd.f32 %v890, %v911
      %v919 = vadd.f32 %v891, %v911
      %v920 = vadd.f32 %v892, %v911
      %v921 = vadd.f32 %v893, %v911
      %v922 = vadd.f32 %v894, %v911
      %v923 = vadd.f32 %v895, %v911
      %v924 = vadd.f32 %v896, %v911
      %v925 = vadd.f32 %v897, %v911
      %v926 = vadd.f32 %v898, %v916
      %v927 = vadd.f32 %v899, %v916
      %v928 = vadd.f32 %v900, %v916
      %v929 = vadd.f32 %v901, %v916
      %v930 = vadd.f32 %v902, %v916
      %v931 = vadd.f32 %v903, %v916
      %v932 = vadd.f32 %v904, %v916
      %v933 = vadd.f32 %v905, %v916
      %v934 = vmax.f32 %v918, 0.0
      %v935 = vmax.f32 %v919, 0.0
      %v936 = vmax.f32 %v920, 0.0
      %v937 = vmax.f32 %v921, 0.0
      %v938 = vmax.f32 %v922, 0.0
      %v939 = vmax.f32 %v923, 0.0
      %v940 = vmax.f32 %v924, 0.0
      %v941 = vmax.f32 %v925, 0.0
      %v942 = vmax.f32 %v926, 0.0
      %v943 = vmax.f32 %v927, 0.0
      %v944 = vmax.f32 %v928, 0.0
      %v945 = vmax.f32 %v929, 0.0
      %v946 = vmax.f32 %v930, 0.0
      %v947 = vmax.f32 %v931, 0.0
      %v948 = vmax.f32 %v932, 0.0
      %v949 = vmax.f32 %v933, 0.0
      %v950 = vpack.c.bf16 %v935, %v934
      %v951 = vpack.c.bf16 %v937, %v936
      %v952 = vpack.c.bf16 %v939, %v938
      %v953 = vpack.c.bf16 %v941, %v940
      %v954 = vpack.c.bf16 %v943, %v942
      %v955 = vpack.c.bf16 %v945, %v944
      %v956 = vpack.c.bf16 %v947, %v946
      %v957 = vpack.c.bf16 %v949, %v948
      %958 = vst [vmem:[%s208] sm:$0xff] %v950
      %959 = vst [vmem:[%s208 + $0x8] sm:$0xff] %v951
      %960 = vst [vmem:[%s208 + $0x10] sm:$0xff] %v952
      %961 = vst [vmem:[%s208 + $0x18] sm:$0xff] %v953
      %962 = vst [vmem:[%s208 + $0x20] sm:$0xff] %v954
      %963 = vst [vmem:[%s208 + $0x28] sm:$0xff] %v955
      %964 = vst [vmem:[%s208 + $0x30] sm:$0xff] %v956
      %965 = vst [vmem:[%s208 + $0x38] sm:$0xff] %v957
      %s966 = smul.u32 8, %s19
      %p967 = scmp.lt.s32.totalorder %s18, 1
      %s968 = scalar_select %p967, %s18, 1
      %p969 = scmp.lt.s32.totalorder %s966, 7
      %s970 = scalar_select %p969, %s966, 7
      %s971 = smul.addr %s968, 16
      %s972 = sadd.s32 %s970, %s971
      %s973 = smul.addr %s972, 4
      %s974 = scalar_lea.vmem %s3, %s973
      // Predicated region
      $region33: #{model_forward.7} parent=31 // pred_check
        %p975 = pneg %p116
      $region34: #{model_forward.7} parent=31 // pred_check_branch
        %977 = sbr.rel (%p975) target = $region36
      $region35: #{model_forward.7} parent=31 // pred_region
        %s978 = smul.u32 8, %s19
      $region36: #{model_forward.7} parent=31 // pred_fallthru
        _
    $region32: #{model_forward.7} parent=5 // pred_fallthru
      _
    %p979 = scmp.le.s32.totalorder 2, %s9
    // Predicated region
    $region37: #{model_forward.7} parent=5 // pred_check
      %p980 = pneg %p979
    $region38: #{model_forward.7} parent=5 // pred_check_branch
      %982 = sbr.rel (%p980) target = $region40
    $region39: #{model_forward.7} parent=5 // pred_region
      %s983 = ssub.s32 %s9, 2
      // Predicated region
      $region41: #{model_forward.7} parent=39 // pred_check
        %p984 = pneg %p122
      $region42: #{model_forward.7} parent=39 // pred_check_branch
        %986 = sbr.rel (%p984) target = $region44
      $region43: #{model_forward.7} parent=39 // pred_region
        %s987 = smul.u32 8, %s21
        %p988 = scmp.lt.s32.totalorder %s20, 1
        %s989 = scalar_select %p988, %s20, 1
        %p990 = scmp.lt.s32.totalorder %s987, 7
        %s991 = scalar_select %p990, %s987, 7
        %s992 = smul.addr %s989, 16
        %s993 = sadd.s32 %s991, %s992
        %s994 = smul.addr %s993, 4
        %s995 = scalar_lea.vmem %s3, %s994
      $region44: #{model_forward.7} parent=39 // pred_fallthru
        _
    $region40: #{model_forward.7} parent=5 // pred_fallthru
      _
  $region6: #{model_forward.7} parent=0 // loop_footer
    %s13 = sadd.s32 1, %s9
  $region7: #{model_forward.7} parent=0 // loop_footer_branch
    %8 = sbr.rel target = $region3
  $region8: #{model_forward.7} parent=0 // loop_exit
    _

// kernel: model_forward.8
$region0: #{model_forward.8}
  #allocation0 [shape = 'u32[]', space=smem, size = 0x4, offset = 0x4, fixed_abs, tag = 'smem constant byte address 0x4 - core index']
  #allocation1 [shape = 'u32[72,128]{1,0:T(1,128)}', space=vmem, size = 0x9000, scoped, tag = 'internal scratch']
  %s0 = inlined_call_operand.vmem [shape: bf16[2,256,256], index: 0, kind: input, shape index: {}]
  %s1 = inlined_call_operand.vmem [shape: bf16[128,256], index: 1, kind: input, shape index: {}]
  %s2 = inlined_call_operand.vmem [shape: f32[32,1], index: 2, kind: input, shape index: {}]
  %s3 = inlined_call_operand.vmem [shape: bf16[2,32,256], index: 3, kind: output, shape index: {}]
  %s4 = sld [smem:[#allocation0]]
  $region45: #{model_forward.8} parent=0
    _
  %s6 = ssub.s32 1, %s4
  %s7 = scalar_select 0, %s6, %s4
  loop: start=0, step=1, limit=4
  $region2: #{model_forward.8} parent=0 // loop_pre_header
    _
  $region3: #{model_forward.8} parent=0 // loop_header
    %s9 = sphi 0, %s13
    %p10 = scmp.ge.s32.totalorder %s9, 4
    %s16 = sphi 0, %s28
    %s17 = sphi 0, %s24
    %s18 = sphi 0, %s16
    %s19 = sphi 0, %s17
    %s20 = sphi 0, %s18
    %s21 = sphi 0, %s19
    %s33 = sphi 0, %s35
    %s36 = sphi 0, %s33
    %s37 = sphi 0, %s36
    %s53 = sphi 0, %s37
    %s57 = sphi 0, %s57
    %s59 = sphi 0, %s57
    %s60 = sphi 0, %s59
    %s74 = sphi 0, %s60
    %s78 = sphi 0, %s78
    %s80 = sphi 0, %s78
    %s81 = sphi 0, %s80
    %s95 = sphi 0, %s81
    %s103 = sphi 0, %s105
    %s106 = sphi 0, %s103
    %s107 = sphi 0, %s106
    %s123 = sphi 0, %s107
  $region4: #{model_forward.8} parent=0 // loop_header_branch
    %12 = sbr.rel (%p10) target = $region8
  $region5: #{model_forward.8} parent=0 // loop_body
    %s14 = ssub.s32 %s9, 1
    %s15 = ssub.s32 %s9, 2
    %s22 = sadd.s32 1, %s17
    %p23 = scmp.ge.s32.totalorder %s22, 1
    %s24 = scalar_select %p23, 0, %s22
    %s25 = sadd.s32 1, %s16
    %s26 = scalar_select %p23, %s25, %s16
    %p27 = scmp.ge.s32.totalorder %s26, 2
    %s28 = scalar_select %p27, 0, %s26
    %s29 = ssub.s32 %s16, %s28
    %s30 = ssub.s32 %s17, %s24
    %s31 = sor.u32 %s29, %s30
    %p32 = scmp.eq.s32.totalorder %s31, 0
    %s34 = sadd.s32 %s33, 1
    %s35 = scalar_select %p32, %s33, %s34
    %p38 = pneg %p32
    %p39 = scmp.eq.s32.totalorder %s9, 1
    %p40 = por %p38, %p39
    %p41 = scmp.ne.s32.totalorder %s33, %s36
    %p42 = scmp.eq.s32.totalorder %s9, 0
    %p43 = por %p41, %p42
    %p44 = scmp.ne.s32.totalorder %s33, %s36
    %p45 = scmp.eq.s32.totalorder %s14, 1
    %p46 = por %p44, %p45
    %p47 = scmp.ne.s32.totalorder %s36, %s37
    %p48 = scmp.eq.s32.totalorder %s14, 0
    %p49 = por %p47, %p48
    %p50 = scmp.ne.s32.totalorder %s36, %s37
    %p51 = scmp.eq.s32.totalorder %s15, 1
    %p52 = por %p50, %p51
    %p54 = scmp.ne.s32.totalorder %s37, %s53
    %p55 = scmp.eq.s32.totalorder %s15, 0
    %p56 = por %p54, %p55
    %s58 = sadd.s32 %s57, 1
    %p61 = scmp.eq.s32.totalorder %s9, 1
    %p62 = scmp.ne.s32.totalorder %s57, %s59
    %p63 = scmp.eq.s32.totalorder %s9, 0
    %p64 = por %p62, %p63
    %p65 = scmp.ne.s32.totalorder %s57, %s59
    %p66 = scmp.eq.s32.totalorder %s14, 1
    %p67 = por %p65, %p66
    %p68 = scmp.ne.s32.totalorder %s59, %s60
    %p69 = scmp.eq.s32.totalorder %s14, 0
    %p70 = por %p68, %p69
    %p71 = scmp.ne.s32.totalorder %s59, %s60
    %p72 = scmp.eq.s32.totalorder %s15, 1
    %p73 = por %p71, %p72
    %p75 = scmp.ne.s32.totalorder %s60, %s74
    %p76 = scmp.eq.s32.totalorder %s15, 0
    %p77 = por %p75, %p76
    %s79 = sadd.s32 %s78, 1
    %p82 = scmp.eq.s32.totalorder %s9, 1
    %p83 = scmp.ne.s32.totalorder %s78, %s80
    %p84 = scmp.eq.s32.totalorder %s9, 0
    %p85 = por %p83, %p84
    %p86 = scmp.ne.s32.totalorder %s78, %s80
    %p87 = scmp.eq.s32.totalorder %s14, 1
    %p88 = por %p86, %p87
    %p89 = scmp.ne.s32.totalorder %s80, %s81
    %p90 = scmp.eq.s32.totalorder %s14, 0
    %p91 = por %p89, %p90
    %p92 = scmp.ne.s32.totalorder %s80, %s81
    %p93 = scmp.eq.s32.totalorder %s15, 1
    %p94 = por %p92, %p93
    %p96 = scmp.ne.s32.totalorder %s81, %s95
    %p97 = scmp.eq.s32.totalorder %s15, 0
    %p98 = por %p96, %p97
    %s99 = ssub.s32 %s16, %s28
    %s100 = ssub.s32 %s17, %s24
    %s101 = sor.u32 %s99, %s100
    %p102 = scmp.eq.s32.totalorder %s101, 0
    %s104 = sadd.s32 %s103, 1
    %s105 = scalar_select %p102, %s103, %s104
    %p108 = pneg %p102
    %p109 = scmp.eq.s32.totalorder %s9, 1
    %p110 = por %p108, %p109
    %p111 = scmp.ne.s32.totalorder %s103, %s106
    %p112 = scmp.eq.s32.totalorder %s9, 0
    %p113 = por %p111, %p112
    %p114 = scmp.ne.s32.totalorder %s103, %s106
    %p115 = scmp.eq.s32.totalorder %s14, 1
    %p116 = por %p114, %p115
    %p117 = scmp.ne.s32.totalorder %s106, %s107
    %p118 = scmp.eq.s32.totalorder %s14, 0
    %p119 = por %p117, %p118
    %p120 = scmp.ne.s32.totalorder %s106, %s107
    %p121 = scmp.eq.s32.totalorder %s15, 1
    %p122 = por %p120, %p121
    %p124 = scmp.ne.s32.totalorder %s107, %s123
    %p125 = scmp.eq.s32.totalorder %s15, 0
    %p126 = por %p124, %p125
    %p127 = scmp.le.s32.totalorder 1, %s9
    %p128 = scmp.lt.s32.totalorder %s9, 3
    %p129 = pnand %p127, %p128
    %p130 = pneg %p129
    // Predicated region
    $region9: #{model_forward.8} parent=5 // pred_check
      _
    $region10: #{model_forward.8} parent=5 // pred_check_branch
      %132 = sbr.rel (%p129) target = $region12
    $region11: #{model_forward.8} parent=5 // pred_region
      %s133 = ssub.s32 %s9, 1
      // Predicated region
      $region13: #{model_forward.8} parent=11 // pred_check
        %p134 = pneg %p70
      $region14: #{model_forward.8} parent=11 // pred_check_branch
        %136 = sbr.rel (%p134) target = $region16
      $region15: #{model_forward.8} parent=11 // pred_region
        _
      $region16: #{model_forward.8} parent=11 // pred_fallthru
        _
      // Predicated region
      $region17: #{model_forward.8} parent=11 // pred_check
        %p137 = pneg %p91
      $region18: #{model_forward.8} parent=11 // pred_check_branch
        %139 = sbr.rel (%p137) target = $region20
      $region19: #{model_forward.8} parent=11 // pred_region
        _
      $region20: #{model_forward.8} parent=11 // pred_fallthru
        _
    $region12: #{model_forward.8} parent=5 // pred_fallthru
      _
    %p140 = scmp.lt.s32.totalorder %s9, 2
    // Predicated region
    $region21: #{model_forward.8} parent=5 // pred_check
      %p141 = pneg %p140
    $region22: #{model_forward.8} parent=5 // pred_check_branch
      %143 = sbr.rel (%p141) target = $region24
    $region23: #{model_forward.8} parent=5 // pred_region
      // Predicated region
      $region25: #{model_forward.8} parent=23 // pred_check
        %p144 = pneg %p43
      $region26: #{model_forward.8} parent=23 // pred_check_branch
        %146 = sbr.rel (%p144) target = $region28
      $region27: #{model_forward.8} parent=23 // pred_region
        %s147 = smul.u32 2, %s17
        %p148 = scmp.lt.s32.totalorder %s16, 1
        %s149 = scalar_select %p148, %s16, 1
        %p150 = scmp.lt.s32.totalorder %s147, 1
        %s151 = scalar_select %p150, %s147, 1
        %s152 = smul.addr %s149, 64
        %s153 = sadd.s32 %s151, %s152
        %s154 = smul.addr %s153, 4
        %s155 = scalar_lea.vmem %s0, %s154
        %s156 = smul.u32 2, %s17
      $region28: #{model_forward.8} parent=23 // pred_fallthru
        _
    $region24: #{model_forward.8} parent=5 // pred_fallthru
      _
    %p157 = scmp.le.s32.totalorder 1, %s9
    %p158 = scmp.lt.s32.totalorder %s9, 3
    %p159 = pnand %p157, %p158
    %p160 = pneg %p159
    // Predicated region
    $region29: #{model_forward.8} parent=5 // pred_check
      _
    $region30: #{model_forward.8} parent=5 // pred_check_branch
      %162 = sbr.rel (%p159) target = $region32
    $region31: #{model_forward.8} parent=5 // pred_region
      %s163 = ssub.s32 %s9, 1
      %s164 = smul.u32 2, %s19
      %p165 = scmp.lt.s32.totalorder %s18, 1
      %s166 = scalar_select %p165, %s18, 1
      %p167 = scmp.lt.s32.totalorder %s164, 1
      %s168 = scalar_select %p167, %s164, 1
      %s169 = smul.addr %s166, 64
      %s170 = sadd.s32 %s168, %s169
      %s171 = smul.addr %s170, 4
      %s172 = scalar_lea.vmem %s0, %s171
      %p173 = pneg %p49
      %p174 = pneg %p46
      %p175 = pneg %p70
      %p176 = pneg %p67
      %p177 = pneg %p91
      %p178 = pneg %p88
      %p179 = pneg %p119
      %p180 = pneg %p116
      %s181 = smul.u32 2, %s19
      %p182 = scmp.lt.s32.totalorder %s18, 1
      %s183 = scalar_select %p182, %s18, 1
      %p184 = scmp.lt.s32.totalorder %s181, 1
      %s185 = scalar_select %p184, %s181, 1
      %s186 = smul.addr %s183, 8
      %s187 = sadd.s32 %s185, %s186
      %s188 = smul.addr %s187, 4
      %s189 = scalar_lea.vmem %s3, %s188
      %s190 = smul.u32 2, %s19
      %p191 = scmp.lt.s32.totalorder %s18, 1
      %s192 = scalar_select %p191, %s18, 1
      %p193 = scmp.lt.s32.totalorder %s190, 1
      %s194 = scalar_select %p193, %s190, 1
      %s195 = smul.addr %s192, 64
      %s196 = sadd.s32 %s194, %s195
      %s197 = smul.addr %s196, 4
      %s198 = scalar_lea.vmem %s0, %s197
      %s199 = smul.u32 2, %s19
      %s200 = smul.u32 2, %s19
      %p201 = scmp.lt.s32.totalorder %s18, 1
      %s202 = scalar_select %p201, %s18, 1
      %p203 = scmp.lt.s32.totalorder %s200, 1
      %s204 = scalar_select %p203, %s200, 1
      %s205 = smul.addr %s202, 8
      %s206 = sadd.s32 %s204, %s205
      %s207 = smul.addr %s206, 4
      %s208 = scalar_lea.vmem %s3, %s207
      %s209 = smul.u32 2, %s19
      %v210 = vld [vmem:[%s1] sm:$0xff]
      %v211 = vld [vmem:[%s1 + $0x8] sm:$0xff]
      %v212 = vld [vmem:[%s1 + $0x10] sm:$0xff]
      %v213 = vld [vmem:[%s1 + $0x18] sm:$0xff]
      %v214 = vld [vmem:[%s1 + $0x20] sm:$0xff]
      %v215 = vld [vmem:[%s1 + $0x28] sm:$0xff]
      %v216 = vld [vmem:[%s1 + $0x30] sm:$0xff]
      %v217 = vld [vmem:[%s1 + $0x38] sm:$0xff]
      %v218 = vld [vmem:[%s1 + $0x40] sm:$0xff]
      %v219 = vld [vmem:[%s1 + $0x48] sm:$0xff]
      %v220 = vld [vmem:[%s1 + $0x50] sm:$0xff]
      %v221 = vld [vmem:[%s1 + $0x58] sm:$0xff]
      %v222 = vld [vmem:[%s1 + $0x60] sm:$0xff]
      %v223 = vld [vmem:[%s1 + $0x68] sm:$0xff]
      %v224 = vld [vmem:[%s1 + $0x70] sm:$0xff]
      %v225 = vld [vmem:[%s1 + $0x78] sm:$0xff]
      %v226 = vld [vmem:[%s198] sm:$0xff]
      %v227 = vld [vmem:[%s198 + $0x8] sm:$0xff]
      %v228 = vld [vmem:[%s198 + $0x10] sm:$0xff]
      %v229 = vld [vmem:[%s198 + $0x18] sm:$0xff]
      %v230 = vld [vmem:[%s198 + $0x20] sm:$0xff]
      %v231 = vld [vmem:[%s198 + $0x28] sm:$0xff]
      %v232 = vld [vmem:[%s198 + $0x30] sm:$0xff]
      %v233 = vld [vmem:[%s198 + $0x38] sm:$0xff]
      %v234 = vld [vmem:[%s198 + $0x40] sm:$0xff]
      %v235 = vld [vmem:[%s198 + $0x48] sm:$0xff]
      %v236 = vld [vmem:[%s198 + $0x50] sm:$0xff]
      %v237 = vld [vmem:[%s198 + $0x58] sm:$0xff]
      %v238 = vld [vmem:[%s198 + $0x60] sm:$0xff]
      %v239 = vld [vmem:[%s198 + $0x68] sm:$0xff]
      %v240 = vld [vmem:[%s198 + $0x70] sm:$0xff]
      %v241 = vld [vmem:[%s198 + $0x78] sm:$0xff]
      %v242 = vld [vmem:[%s198 + $0x80] sm:$0xff]
      %v243 = vld [vmem:[%s198 + $0x88] sm:$0xff]
      %v244 = vld [vmem:[%s198 + $0x90] sm:$0xff]
      %v245 = vld [vmem:[%s198 + $0x98] sm:$0xff]
      %v246 = vld [vmem:[%s198 + $0xa0] sm:$0xff]
      %v247 = vld [vmem:[%s198 + $0xa8] sm:$0xff]
      %v248 = vld [vmem:[%s198 + $0xb0] sm:$0xff]
      %v249 = vld [vmem:[%s198 + $0xb8] sm:$0xff]
      %v250 = vld [vmem:[%s198 + $0xc0] sm:$0xff]
      %v251 = vld [vmem:[%s198 + $0xc8] sm:$0xff]
      %v252 = vld [vmem:[%s198 + $0xd0] sm:$0xff]
      %v253 = vld [vmem:[%s198 + $0xd8] sm:$0xff]
      %v254 = vld [vmem:[%s198 + $0xe0] sm:$0xff]
      %v255 = vld [vmem:[%s198 + $0xe8] sm:$0xff]
      %v256 = vld [vmem:[%s198 + $0xf0] sm:$0xff]
      %v257 = vld [vmem:[%s198 + $0xf8] sm:$0xff]
      %v274 = vunpack.c.l.b16 %v210
      %v275 = vunpack.c.h.b16 %v210
      %v276 = vunpack.c.l.b16 %v211
      %v277 = vunpack.c.h.b16 %v211
      %v278 = vunpack.c.l.b16 %v212
      %v279 = vunpack.c.h.b16 %v212
      %v280 = vunpack.c.l.b16 %v213
      %v281 = vunpack.c.h.b16 %v213
      %v282 = vunpack.c.l.b16 %v214
      %v283 = vunpack.c.h.b16 %v214
      %v284 = vunpack.c.l.b16 %v215
      %v285 = vunpack.c.h.b16 %v215
      %v286 = vunpack.c.l.b16 %v216
      %v287 = vunpack.c.h.b16 %v216
      %v288 = vunpack.c.l.b16 %v217
      %v289 = vunpack.c.h.b16 %v217
      %v290 = vunpack.c.l.b16 %v218
      %v291 = vunpack.c.h.b16 %v218
      %v292 = vunpack.c.l.b16 %v219
      %v293 = vunpack.c.h.b16 %v219
      %v294 = vunpack.c.l.b16 %v220
      %v295 = vunpack.c.h.b16 %v220
      %v296 = vunpack.c.l.b16 %v221
      %v297 = vunpack.c.h.b16 %v221
      %v298 = vunpack.c.l.b16 %v222
      %v299 = vunpack.c.h.b16 %v222
      %v300 = vunpack.c.l.b16 %v223
      %v301 = vunpack.c.h.b16 %v223
      %v302 = vunpack.c.l.b16 %v224
      %v303 = vunpack.c.h.b16 %v224
      %v304 = vunpack.c.l.b16 %v225
      %v305 = vunpack.c.h.b16 %v225
      %v306 = vpack.c.b16 %v276, %v274
      %v307 = vpack.c.b16 %v277, %v275
      %v308 = vpack.c.b16 %v280, %v278
      %v309 = vpack.c.b16 %v281, %v279
      %v310 = vpack.c.b16 %v284, %v282
      %v311 = vpack.c.b16 %v285, %v283
      %v312 = vpack.c.b16 %v288, %v286
      %v313 = vpack.c.b16 %v289, %v287
      %v314 = vpack.c.b16 %v292, %v290
      %v315 = vpack.c.b16 %v293, %v291
      %v316 = vpack.c.b16 %v296, %v294
      %v317 = vpack.c.b16 %v297, %v295
      %v318 = vpack.c.b16 %v300, %v298
      %v319 = vpack.c.b16 %v301, %v299
      %v320 = vpack.c.b16 %v304, %v302
      %v321 = vpack.c.b16 %v305, %v303
      %v370 = vunpack.c.l.b16 %v226
      %v371 = vunpack.c.h.b16 %v226
      %v372 = vunpack.c.l.b16 %v227
      %v373 = vunpack.c.h.b16 %v227
      %v374 = vunpack.c.l.b16 %v228
      %v375 = vunpack.c.h.b16 %v228
      %v376 = vunpack.c.l.b16 %v229
      %v377 = vunpack.c.h.b16 %v229
      %v378 = vunpack.c.l.b16 %v230
      %v379 = vunpack.c.h.b16 %v230
      %v380 = vunpack.c.l.b16 %v231
      %v381 = vunpack.c.h.b16 %v231
      %v382 = vunpack.c.l.b16 %v232
      %v383 = vunpack.c.h.b16 %v232
      %v384 = vunpack.c.l.b16 %v233
      %v385 = vunpack.c.h.b16 %v233
      %v386 = vunpack.c.l.b16 %v234
      %v387 = vunpack.c.h.b16 %v234
      %v388 = vunpack.c.l.b16 %v235
      %v389 = vunpack.c.h.b16 %v235
      %v390 = vunpack.c.l.b16 %v236
      %v391 = vunpack.c.h.b16 %v236
      %v392 = vunpack.c.l.b16 %v237
      %v393 = vunpack.c.h.b16 %v237
      %v394 = vunpack.c.l.b16 %v238
      %v395 = vunpack.c.h.b16 %v238
      %v396 = vunpack.c.l.b16 %v239
      %v397 = vunpack.c.h.b16 %v239
      %v398 = vunpack.c.l.b16 %v240
      %v399 = vunpack.c.h.b16 %v240
      %v400 = vunpack.c.l.b16 %v241
      %v401 = vunpack.c.h.b16 %v241
      %v402 = vunpack.c.l.b16 %v242
      %v403 = vunpack.c.h.b16 %v242
      %v404 = vunpack.c.l.b16 %v243
      %v405 = vunpack.c.h.b16 %v243
      %v406 = vunpack.c.l.b16 %v244
      %v407 = vunpack.c.h.b16 %v244
      %v408 = vunpack.c.l.b16 %v245
      %v409 = vunpack.c.h.b16 %v245
      %v410 = vunpack.c.l.b16 %v246
      %v411 = vunpack.c.h.b16 %v246
      %v412 = vunpack.c.l.b16 %v247
      %v413 = vunpack.c.h.b16 %v247
      %v414 = vunpack.c.l.b16 %v248
      %v415 = vunpack.c.h.b16 %v248
      %v416 = vunpack.c.l.b16 %v249
      %v417 = vunpack.c.h.b16 %v249
      %v418 = vunpack.c.l.b16 %v250
      %v419 = vunpack.c.h.b16 %v250
      %v420 = vunpack.c.l.b16 %v251
      %v421 = vunpack.c.h.b16 %v251
      %v422 = vunpack.c.l.b16 %v252
      %v423 = vunpack.c.h.b16 %v252
      %v424 = vunpack.c.l.b16 %v253
      %v425 = vunpack.c.h.b16 %v253
      %v426 = vunpack.c.l.b16 %v254
      %v427 = vunpack.c.h.b16 %v254
      %v428 = vunpack.c.l.b16 %v255
      %v429 = vunpack.c.h.b16 %v255
      %v430 = vunpack.c.l.b16 %v256
      %v431 = vunpack.c.h.b16 %v256
      %v432 = vunpack.c.l.b16 %v257
      %v433 = vunpack.c.h.b16 %v257
      %v434 = vpack.c.b16 %v372, %v370
      %v435 = vpack.c.b16 %v373, %v371
      %v436 = vpack.c.b16 %v376, %v374
      %v437 = vpack.c.b16 %v377, %v375
      %v438 = vpack.c.b16 %v380, %v378
      %v439 = vpack.c.b16 %v381, %v379
      %v440 = vpack.c.b16 %v384, %v382
      %v441 = vpack.c.b16 %v385, %v383
      %v442 = vpack.c.b16 %v388, %v386
      %v443 = vpack.c.b16 %v389, %v387
      %v444 = vpack.c.b16 %v392, %v390
      %v445 = vpack.c.b16 %v393, %v391
      %v446 = vpack.c.b16 %v396, %v394
      %v447 = vpack.c.b16 %v397, %v395
      %v448 = vpack.c.b16 %v400, %v398
      %v449 = vpack.c.b16 %v401, %v399
      %v450 = vpack.c.b16 %v404, %v402
      %v451 = vpack.c.b16 %v405, %v403
      %v452 = vpack.c.b16 %v408, %v406
      %v453 = vpack.c.b16 %v409, %v407
      %v454 = vpack.c.b16 %v412, %v410
      %v455 = vpack.c.b16 %v413, %v411
      %v456 = vpack.c.b16 %v416, %v414
      %v457 = vpack.c.b16 %v417, %v415
      %v458 = vpack.c.b16 %v420, %v418
      %v459 = vpack.c.b16 %v421, %v419
      %v460 = vpack.c.b16 %v424, %v422
      %v461 = vpack.c.b16 %v425, %v423
      %v462 = vpack.c.b16 %v428, %v426
      %v463 = vpack.c.b16 %v429, %v427
      %v464 = vpack.c.b16 %v432, %v430
      %v465 = vpack.c.b16 %v433, %v431
      %498 = vmatpush.bf16.msra.mxu0 %v448
      %499 = vmatpush.bf16.msra.mxu0 %v446
      %500 = vmatpush.bf16.msra.mxu0 %v444
      %501 = vmatpush.bf16.msra.mxu0 %v442
      %502 = vmatpush.bf16.msra.mxu0 %v440
      %503 = vmatpush.bf16.msra.mxu0 %v438
      %504 = vmatpush.bf16.msra.mxu0 %v436
      %505 = vmatpush.bf16.msra.mxu0 %v434
      %506 = vmatmul.bf16.gmra.mxu0 %v306
      %v507 = vpop.f32.mrf.mxu0
      %v508 = vadd.f32 0.0, %v507
      %v509 = vpop.f32.mrf.mxu0
      %v510 = vadd.f32 0.0, %v509
      %511 = vmatmul.bf16.gmra.mxu0 %v308
      %v512 = vpop.f32.mrf.mxu0
      %v513 = vadd.f32 0.0, %v512
      %v514 = vpop.f32.mrf.mxu0
      %v515 = vadd.f32 0.0, %v514
      %516 = vmatmul.bf16.gmra.mxu0 %v310
      %v517 = vpop.f32.mrf.mxu0
      %v518 = vadd.f32 0.0, %v517
      %v519 = vpop.f32.mrf.mxu0
      %v520 = vadd.f32 0.0, %v519
      %521 = vmatmul.bf16.gmra.mxu0 %v312
      %v522 = vpop.f32.mrf.mxu0
      %v523 = vadd.f32 0.0, %v522
      %v524 = vpop.f32.mrf.mxu0
      %v525 = vadd.f32 0.0, %v524
      %526 = vmatmul.bf16.gmra.mxu0 %v314
      %v527 = vpop.f32.mrf.mxu0
      %v528 = vadd.f32 0.0, %v527
      %v529 = vpop.f32.mrf.mxu0
      %v530 = vadd.f32 0.0, %v529
      %531 = vmatmul.bf16.gmra.mxu0 %v316
      %v532 = vpop.f32.mrf.mxu0
      %v533 = vadd.f32 0.0, %v532
      %v534 = vpop.f32.mrf.mxu0
      %v535 = vadd.f32 0.0, %v534
      %536 = vmatmul.bf16.gmra.mxu0 %v318
      %v537 = vpop.f32.mrf.mxu0
      %v538 = vadd.f32 0.0, %v537
      %v539 = vpop.f32.mrf.mxu0
      %v540 = vadd.f32 0.0, %v539
      %541 = vmatmul.bf16.gmra.mxu0 %v320
      %v542 = vpop.f32.mrf.mxu0
      %v543 = vadd.f32 0.0, %v542
      %v544 = vpop.f32.mrf.mxu0
      %v545 = vadd.f32 0.0, %v544
      %546 = vdwg.mxu0
      %547 = vmatpush.bf16.msra.mxu0 %v464
      %548 = vmatpush.bf16.msra.mxu0 %v462
      %549 = vmatpush.bf16.msra.mxu0 %v460
      %550 = vmatpush.bf16.msra.mxu0 %v458
      %551 = vmatpush.bf16.msra.mxu0 %v456
      %552 = vmatpush.bf16.msra.mxu0 %v454
      %553 = vmatpush.bf16.msra.mxu0 %v452
      %554 = vmatpush.bf16.msra.mxu0 %v450
      %555 = vmatmul.bf16.gmra.mxu0 %v307
      %v556 = vpop.f32.mrf.mxu0
      %v557 = vadd.f32 %v508, %v556
      %v558 = vpop.f32.mrf.mxu0
      %v559 = vadd.f32 %v510, %v558
      %560 = vmatmul.bf16.gmra.mxu0 %v309
      %v561 = vpop.f32.mrf.mxu0
      %v562 = vadd.f32 %v513, %v561
      %v563 = vpop.f32.mrf.mxu0
      %v564 = vadd.f32 %v515, %v563
      %565 = vmatmul.bf16.gmra.mxu0 %v311
      %v566 = vpop.f32.mrf.mxu0
      %v567 = vadd.f32 %v518, %v566
      %v568 = vpop.f32.mrf.mxu0
      %v569 = vadd.f32 %v520, %v568
      %570 = vmatmul.bf16.gmra.mxu0 %v313
      %v571 = vpop.f32.mrf.mxu0
      %v572 = vadd.f32 %v523, %v571
      %v573 = vpop.f32.mrf.mxu0
      %v574 = vadd.f32 %v525, %v573
      %575 = vmatmul.bf16.gmra.mxu0 %v315
      %v576 = vpop.f32.mrf.mxu0
      %v577 = vadd.f32 %v528, %v576
      %v578 = vpop.f32.mrf.mxu0
      %v579 = vadd.f32 %v530, %v578
      %580 = vmatmul.bf16.gmra.mxu0 %v317
      %v581 = vpop.f32.mrf.mxu0
      %v582 = vadd.f32 %v533, %v581
      %v583 = vpop.f32.mrf.mxu0
      %v584 = vadd.f32 %v535, %v583
      %585 = vmatmul.bf16.gmra.mxu0 %v319
      %v586 = vpop.f32.mrf.mxu0
      %v587 = vadd.f32 %v538, %v586
      %v588 = vpop.f32.mrf.mxu0
      %v589 = vadd.f32 %v540, %v588
      %590 = vmatmul.bf16.gmra.mxu0 %v321
      %v591 = vpop.f32.mrf.mxu0
      %v592 = vadd.f32 %v543, %v591
      %v593 = vpop.f32.mrf.mxu0
      %v594 = vadd.f32 %v545, %v593
      %595 = vdwg.mxu0
      %596 = vmatpush.bf16.msra.mxu0 %v449
      %597 = vmatpush.bf16.msra.mxu0 %v447
      %598 = vmatpush.bf16.msra.mxu0 %v445
      %599 = vmatpush.bf16.msra.mxu0 %v443
      %600 = vmatpush.bf16.msra.mxu0 %v441
      %601 = vmatpush.bf16.msra.mxu0 %v439
      %602 = vmatpush.bf16.msra.mxu0 %v437
      %603 = vmatpush.bf16.msra.mxu0 %v435
      %604 = vmatmul.bf16.gmra.mxu0 %v306
      %v605 = vpop.f32.mrf.mxu0
      %v606 = vadd.f32 0.0, %v605
      %v607 = vpop.f32.mrf.mxu0
      %v608 = vadd.f32 0.0, %v607
      %609 = vmatmul.bf16.gmra.mxu0 %v308
      %v610 = vpop.f32.mrf.mxu0
      %v611 = vadd.f32 0.0, %v610
      %v612 = vpop.f32.mrf.mxu0
      %v613 = vadd.f32 0.0, %v612
      %614 = vmatmul.bf16.gmra.mxu0 %v310
      %v615 = vpop.f32.mrf.mxu0
      %v616 = vadd.f32 0.0, %v615
      %v617 = vpop.f32.mrf.mxu0
      %v618 = vadd.f32 0.0, %v617
      %619 = vmatmul.bf16.gmra.mxu0 %v312
      %v620 = vpop.f32.mrf.mxu0
      %v621 = vadd.f32 0.0, %v620
      %v622 = vpop.f32.mrf.mxu0
      %v623 = vadd.f32 0.0, %v622
      %624 = vmatmul.bf16.gmra.mxu0 %v314
      %v625 = vpop.f32.mrf.mxu0
      %v626 = vadd.f32 0.0, %v625
      %v627 = vpop.f32.mrf.mxu0
      %v628 = vadd.f32 0.0, %v627
      %629 = vmatmul.bf16.gmra.mxu0 %v316
      %v630 = vpop.f32.mrf.mxu0
      %v631 = vadd.f32 0.0, %v630
      %v632 = vpop.f32.mrf.mxu0
      %v633 = vadd.f32 0.0, %v632
      %634 = vmatmul.bf16.gmra.mxu0 %v318
      %v635 = vpop.f32.mrf.mxu0
      %v636 = vadd.f32 0.0, %v635
      %v637 = vpop.f32.mrf.mxu0
      %v638 = vadd.f32 0.0, %v637
      %639 = vmatmul.bf16.gmra.mxu0 %v320
      %v640 = vpop.f32.mrf.mxu0
      %v641 = vadd.f32 0.0, %v640
      %v642 = vpop.f32.mrf.mxu0
      %v643 = vadd.f32 0.0, %v642
      %644 = vdwg.mxu0
      %645 = vmatpush.bf16.msra.mxu0 %v465
      %646 = vmatpush.bf16.msra.mxu0 %v463
      %647 = vmatpush.bf16.msra.mxu0 %v461
      %648 = vmatpush.bf16.msra.mxu0 %v459
      %649 = vmatpush.bf16.msra.mxu0 %v457
      %650 = vmatpush.bf16.msra.mxu0 %v455
      %651 = vmatpush.bf16.msra.mxu0 %v453
      %652 = vmatpush.bf16.msra.mxu0 %v451
      %653 = vmatmul.bf16.gmra.mxu0 %v307
      %v654 = vpop.f32.mrf.mxu0
      %v655 = vadd.f32 %v606, %v654
      %v656 = vpop.f32.mrf.mxu0
      %v657 = vadd.f32 %v608, %v656
      %658 = vmatmul.bf16.gmra.mxu0 %v309
      %v659 = vpop.f32.mrf.mxu0
      %v660 = vadd.f32 %v611, %v659
      %v661 = vpop.f32.mrf.mxu0
      %v662 = vadd.f32 %v613, %v661
      %663 = vmatmul.bf16.gmra.mxu0 %v311
      %v664 = vpop.f32.mrf.mxu0
      %v665 = vadd.f32 %v616, %v664
      %v666 = vpop.f32.mrf.mxu0
      %v667 = vadd.f32 %v618, %v666
      %668 = vmatmul.bf16.gmra.mxu0 %v313
      %v669 = vpop.f32.mrf.mxu0
      %v670 = vadd.f32 %v621, %v669
      %v671 = vpop.f32.mrf.mxu0
      %v672 = vadd.f32 %v623, %v671
      %673 = vmatmul.bf16.gmra.mxu0 %v315
      %v674 = vpop.f32.mrf.mxu0
      %v675 = vadd.f32 %v626, %v674
      %v676 = vpop.f32.mrf.mxu0
      %v677 = vadd.f32 %v628, %v676
      %678 = vmatmul.bf16.gmra.mxu0 %v317
      %v679 = vpop.f32.mrf.mxu0
      %v680 = vadd.f32 %v631, %v679
      %v681 = vpop.f32.mrf.mxu0
      %v682 = vadd.f32 %v633, %v681
      %683 = vmatmul.bf16.gmra.mxu0 %v319
      %v684 = vpop.f32.mrf.mxu0
      %v685 = vadd.f32 %v636, %v684
      %v686 = vpop.f32.mrf.mxu0
      %v687 = vadd.f32 %v638, %v686
      %688 = vmatmul.bf16.gmra.mxu0 %v321
      %v689 = vpop.f32.mrf.mxu0
      %v690 = vadd.f32 %v641, %v689
      %v691 = vpop.f32.mrf.mxu0
      %v692 = vadd.f32 %v643, %v691
      %693 = vdwg.mxu0
      %v694 = vmax.f32 %v557, %v567
      %v695 = vmax.f32 %v655, %v665
      %v696 = vmax.f32 %v559, %v569
      %v697 = vmax.f32 %v657, %v667
      %v698 = vmax.f32 %v562, %v572
      %v699 = vmax.f32 %v660, %v670
      %v700 = vmax.f32 %v564, %v574
      %v701 = vmax.f32 %v662, %v672
      %v702 = vmax.f32 %v577, %v587
      %v703 = vmax.f32 %v675, %v685
      %v704 = vmax.f32 %v579, %v589
      %v705 = vmax.f32 %v677, %v687
      %v706 = vmax.f32 %v582, %v592
      %v707 = vmax.f32 %v680, %v690
      %v708 = vmax.f32 %v584, %v594
      %v709 = vmax.f32 %v682, %v692
      %v710 = vmax.f32 %v694, %v702
      %v711 = vmax.f32 %v695, %v703
      %v712 = vmax.f32 %v696, %v704
      %v713 = vmax.f32 %v697, %v705
      %v714 = vmax.f32 %v698, %v706
      %v715 = vmax.f32 %v699, %v707
      %v716 = vmax.f32 %v700, %v708
      %v717 = vmax.f32 %v701, %v709
      %v718 = vld [vmem:[%s2] sm:$0xff]
      %v719 = vld [vmem:[%s2 + $0x8] sm:$0xff]
      %v720 = vld [vmem:[%s2 + $0x10] sm:$0xff]
      %v721 = vld [vmem:[%s2 + $0x18] sm:$0xff]
      %723 = vset.pattern.permute.xlu0 0
      %724 = vperm.xlu0 %723, %v718
      %v725 = vpop.permute.xlu0 %724
      %728 = vset.pattern.permute.xlu0 0
      %729 = vperm.xlu0 %728, %v719
      %v730 = vpop.permute.xlu0 %729
      %733 = vset.pattern.permute.xlu0 0
      %734 = vperm.xlu0 %733, %v720
      %v735 = vpop.permute.xlu0 %734
      %738 = vset.pattern.permute.xlu0 0
      %739 = vperm.xlu0 %738, %v721
      %v740 = vpop.permute.xlu0 %739
      %v742 = vadd.f32 %v710, %v725
      %v743 = vadd.f32 %v711, %v725
      %v744 = vadd.f32 %v712, %v730
      %v745 = vadd.f32 %v713, %v730
      %v746 = vadd.f32 %v714, %v735
      %v747 = vadd.f32 %v715, %v735
      %v748 = vadd.f32 %v716, %v740
      %v749 = vadd.f32 %v717, %v740
      %v750 = vmax.f32 %v742, 0.0
      %v751 = vmax.f32 %v743, 0.0
      %v752 = vmax.f32 %v744, 0.0
      %v753 = vmax.f32 %v745, 0.0
      %v754 = vmax.f32 %v746, 0.0
      %v755 = vmax.f32 %v747, 0.0
      %v756 = vmax.f32 %v748, 0.0
      %v757 = vmax.f32 %v749, 0.0
      %v758 = vpack.c.bf16 %v751, %v750
      %v759 = vpack.c.bf16 %v753, %v752
      %v760 = vpack.c.bf16 %v755, %v754
      %v761 = vpack.c.bf16 %v757, %v756
      %762 = vst [vmem:[%s208] sm:$0xff] %v758
      %763 = vst [vmem:[%s208 + $0x8] sm:$0xff] %v759
      %764 = vst [vmem:[%s208 + $0x10] sm:$0xff] %v760
      %765 = vst [vmem:[%s208 + $0x18] sm:$0xff] %v761
      %s766 = smul.u32 2, %s19
      %p767 = scmp.lt.s32.totalorder %s18, 1
      %s768 = scalar_select %p767, %s18, 1
      %p769 = scmp.lt.s32.totalorder %s766, 1
      %s770 = scalar_select %p769, %s766, 1
      %s771 = smul.addr %s768, 8
      %s772 = sadd.s32 %s770, %s771
      %s773 = smul.addr %s772, 4
      %s774 = scalar_lea.vmem %s3, %s773
      // Predicated region
      $region33: #{model_forward.8} parent=31 // pred_check
        %p775 = pneg %p116
      $region34: #{model_forward.8} parent=31 // pred_check_branch
        %777 = sbr.rel (%p775) target = $region36
      $region35: #{model_forward.8} parent=31 // pred_region
        %s778 = smul.u32 2, %s19
      $region36: #{model_forward.8} parent=31 // pred_fallthru
        _
    $region32: #{model_forward.8} parent=5 // pred_fallthru
      _
    %p779 = scmp.le.s32.totalorder 2, %s9
    // Predicated region
    $region37: #{model_forward.8} parent=5 // pred_check
      %p780 = pneg %p779
    $region38: #{model_forward.8} parent=5 // pred_check_branch
      %782 = sbr.rel (%p780) target = $region40
    $region39: #{model_forward.8} parent=5 // pred_region
      %s783 = ssub.s32 %s9, 2
      // Predicated region
      $region41: #{model_forward.8} parent=39 // pred_check
        %p784 = pneg %p122
      $region42: #{model_forward.8} parent=39 // pred_check_branch
        %786 = sbr.rel (%p784) target = $region44
      $region43: #{model_forward.8} parent=39 // pred_region
        %s787 = smul.u32 2, %s21
        %p788 = scmp.lt.s32.totalorder %s20, 1
        %s789 = scalar_select %p788, %s20, 1
        %p790 = scmp.lt.s32.totalorder %s787, 1
        %s791 = scalar_select %p790, %s787, 1
        %s792 = smul.addr %s789, 8
        %s793 = sadd.s32 %s791, %s792
        %s794 = smul.addr %s793, 4
        %s795 = scalar_lea.vmem %s3, %s794
      $region44: #{model_forward.8} parent=39 // pred_fallthru
        _
    $region40: #{model_forward.8} parent=5 // pred_fallthru
      _
  $region6: #{model_forward.8} parent=0 // loop_footer
    %s13 = sadd.s32 1, %s9
  $region7: #{model_forward.8} parent=0 // loop_footer_branch
    %8 = sbr.rel target = $region3
  $region8: #{model_forward.8} parent=0 // loop_exit
    _

// kernel: model_forward.9
$region0: #{model_forward.9}
  #allocation0 [shape = 'u32[]', space=smem, size = 0x4, offset = 0x4, fixed_abs, tag = 'smem constant byte address 0x4 - core index']
  #allocation1 [shape = 'u32[72,128]{1,0:T(1,128)}', space=vmem, size = 0x9000, scoped, tag = 'internal scratch']
  %s0 = inlined_call_operand.vmem [shape: bf16[2,512,64], index: 0, kind: input, shape index: {}]
  %s1 = inlined_call_operand.vmem [shape: bf16[256,512], index: 1, kind: input, shape index: {}]
  %s2 = inlined_call_operand.vmem [shape: f32[64,1], index: 2, kind: input, shape index: {}]
  %s3 = inlined_call_operand.vmem [shape: bf16[2,64,64], index: 3, kind: output, shape index: {}]
  %s4 = sld [smem:[#allocation0]]
  $region45: #{model_forward.9} parent=0
    _
  %s6 = ssub.s32 1, %s4
  %s7 = scalar_select 0, %s6, %s4
  loop: start=0, step=1, limit=4
  $region2: #{model_forward.9} parent=0 // loop_pre_header
    _
  $region3: #{model_forward.9} parent=0 // loop_header
    %s9 = sphi 0, %s13
    %p10 = scmp.ge.s32.totalorder %s9, 4
    %s16 = sphi 0, %s28
    %s17 = sphi 0, %s24
    %s18 = sphi 0, %s16
    %s19 = sphi 0, %s17
    %s20 = sphi 0, %s18
    %s21 = sphi 0, %s19
    %s33 = sphi 0, %s35
    %s36 = sphi 0, %s33
    %s37 = sphi 0, %s36
    %s53 = sphi 0, %s37
    %s57 = sphi 0, %s57
    %s59 = sphi 0, %s57
    %s60 = sphi 0, %s59
    %s74 = sphi 0, %s60
    %s78 = sphi 0, %s78
    %s80 = sphi 0, %s78
    %s81 = sphi 0, %s80
    %s95 = sphi 0, %s81
    %s103 = sphi 0, %s105
    %s106 = sphi 0, %s103
    %s107 = sphi 0, %s106
    %s123 = sphi 0, %s107
  $region4: #{model_forward.9} parent=0 // loop_header_branch
    %12 = sbr.rel (%p10) target = $region8
  $region5: #{model_forward.9} parent=0 // loop_body
    %s14 = ssub.s32 %s9, 1
    %s15 = ssub.s32 %s9, 2
    %s22 = sadd.s32 1, %s17
    %p23 = scmp.ge.s32.totalorder %s22, 1
    %s24 = scalar_select %p23, 0, %s22
    %s25 = sadd.s32 1, %s16
    %s26 = scalar_select %p23, %s25, %s16
    %p27 = scmp.ge.s32.totalorder %s26, 2
    %s28 = scalar_select %p27, 0, %s26
    %s29 = ssub.s32 %s16, %s28
    %s30 = ssub.s32 %s17, %s24
    %s31 = sor.u32 %s29, %s30
    %p32 = scmp.eq.s32.totalorder %s31, 0
    %s34 = sadd.s32 %s33, 1
    %s35 = scalar_select %p32, %s33, %s34
    %p38 = pneg %p32
    %p39 = scmp.eq.s32.totalorder %s9, 1
    %p40 = por %p38, %p39
    %p41 = scmp.ne.s32.totalorder %s33, %s36
    %p42 = scmp.eq.s32.totalorder %s9, 0
    %p43 = por %p41, %p42
    %p44 = scmp.ne.s32.totalorder %s33, %s36
    %p45 = scmp.eq.s32.totalorder %s14, 1
    %p46 = por %p44, %p45
    %p47 = scmp.ne.s32.totalorder %s36, %s37
    %p48 = scmp.eq.s32.totalorder %s14, 0
    %p49 = por %p47, %p48
    %p50 = scmp.ne.s32.totalorder %s36, %s37
    %p51 = scmp.eq.s32.totalorder %s15, 1
    %p52 = por %p50, %p51
    %p54 = scmp.ne.s32.totalorder %s37, %s53
    %p55 = scmp.eq.s32.totalorder %s15, 0
    %p56 = por %p54, %p55
    %s58 = sadd.s32 %s57, 1
    %p61 = scmp.eq.s32.totalorder %s9, 1
    %p62 = scmp.ne.s32.totalorder %s57, %s59
    %p63 = scmp.eq.s32.totalorder %s9, 0
    %p64 = por %p62, %p63
    %p65 = scmp.ne.s32.totalorder %s57, %s59
    %p66 = scmp.eq.s32.totalorder %s14, 1
    %p67 = por %p65, %p66
    %p68 = scmp.ne.s32.totalorder %s59, %s60
    %p69 = scmp.eq.s32.totalorder %s14, 0
    %p70 = por %p68, %p69
    %p71 = scmp.ne.s32.totalorder %s59, %s60
    %p72 = scmp.eq.s32.totalorder %s15, 1
    %p73 = por %p71, %p72
    %p75 = scmp.ne.s32.totalorder %s60, %s74
    %p76 = scmp.eq.s32.totalorder %s15, 0
    %p77 = por %p75, %p76
    %s79 = sadd.s32 %s78, 1
    %p82 = scmp.eq.s32.totalorder %s9, 1
    %p83 = scmp.ne.s32.totalorder %s78, %s80
    %p84 = scmp.eq.s32.totalorder %s9, 0
    %p85 = por %p83, %p84
    %p86 = scmp.ne.s32.totalorder %s78, %s80
    %p87 = scmp.eq.s32.totalorder %s14, 1
    %p88 = por %p86, %p87
    %p89 = scmp.ne.s32.totalorder %s80, %s81
    %p90 = scmp.eq.s32.totalorder %s14, 0
    %p91 = por %p89, %p90
    %p92 = scmp.ne.s32.totalorder %s80, %s81
    %p93 = scmp.eq.s32.totalorder %s15, 1
    %p94 = por %p92, %p93
    %p96 = scmp.ne.s32.totalorder %s81, %s95
    %p97 = scmp.eq.s32.totalorder %s15, 0
    %p98 = por %p96, %p97
    %s99 = ssub.s32 %s16, %s28
    %s100 = ssub.s32 %s17, %s24
    %s101 = sor.u32 %s99, %s100
    %p102 = scmp.eq.s32.totalorder %s101, 0
    %s104 = sadd.s32 %s103, 1
    %s105 = scalar_select %p102, %s103, %s104
    %p108 = pneg %p102
    %p109 = scmp.eq.s32.totalorder %s9, 1
    %p110 = por %p108, %p109
    %p111 = scmp.ne.s32.totalorder %s103, %s106
    %p112 = scmp.eq.s32.totalorder %s9, 0
    %p113 = por %p111, %p112
    %p114 = scmp.ne.s32.totalorder %s103, %s106
    %p115 = scmp.eq.s32.totalorder %s14, 1
    %p116 = por %p114, %p115
    %p117 = scmp.ne.s32.totalorder %s106, %s107
    %p118 = scmp.eq.s32.totalorder %s14, 0
    %p119 = por %p117, %p118
    %p120 = scmp.ne.s32.totalorder %s106, %s107
    %p121 = scmp.eq.s32.totalorder %s15, 1
    %p122 = por %p120, %p121
    %p124 = scmp.ne.s32.totalorder %s107, %s123
    %p125 = scmp.eq.s32.totalorder %s15, 0
    %p126 = por %p124, %p125
    %p127 = scmp.le.s32.totalorder 1, %s9
    %p128 = scmp.lt.s32.totalorder %s9, 3
    %p129 = pnand %p127, %p128
    %p130 = pneg %p129
    // Predicated region
    $region9: #{model_forward.9} parent=5 // pred_check
      _
    $region10: #{model_forward.9} parent=5 // pred_check_branch
      %132 = sbr.rel (%p129) target = $region12
    $region11: #{model_forward.9} parent=5 // pred_region
      %s133 = ssub.s32 %s9, 1
      // Predicated region
      $region13: #{model_forward.9} parent=11 // pred_check
        %p134 = pneg %p70
      $region14: #{model_forward.9} parent=11 // pred_check_branch
        %136 = sbr.rel (%p134) target = $region16
      $region15: #{model_forward.9} parent=11 // pred_region
        _
      $region16: #{model_forward.9} parent=11 // pred_fallthru
        _
      // Predicated region
      $region17: #{model_forward.9} parent=11 // pred_check
        %p137 = pneg %p91
      $region18: #{model_forward.9} parent=11 // pred_check_branch
        %139 = sbr.rel (%p137) target = $region20
      $region19: #{model_forward.9} parent=11 // pred_region
        _
      $region20: #{model_forward.9} parent=11 // pred_fallthru
        _
    $region12: #{model_forward.9} parent=5 // pred_fallthru
      _
    %p140 = scmp.lt.s32.totalorder %s9, 2
    // Predicated region
    $region21: #{model_forward.9} parent=5 // pred_check
      %p141 = pneg %p140
    $region22: #{model_forward.9} parent=5 // pred_check_branch
      %143 = sbr.rel (%p141) target = $region24
    $region23: #{model_forward.9} parent=5 // pred_region
      // Predicated region
      $region25: #{model_forward.9} parent=23 // pred_check
        %p144 = pneg %p43
      $region26: #{model_forward.9} parent=23 // pred_check_branch
        %146 = sbr.rel (%p144) target = $region28
      $region27: #{model_forward.9} parent=23 // pred_region
        %p147 = scmp.lt.s32.totalorder %s16, 1
        %s148 = scalar_select %p147, %s16, 1
        %p149 = scmp.lt.s32.totalorder %s17, 0
        %s150 = scalar_select %p149, %s17, 0
        %s151 = smul.addr %s148, 64
        %s152 = sadd.s32 %s150, %s151
        %s153 = smul.addr %s152, 4
        %s154 = scalar_lea.vmem %s0, %s153
      $region28: #{model_forward.9} parent=23 // pred_fallthru
        _
    $region24: #{model_forward.9} parent=5 // pred_fallthru
      _
    %p155 = scmp.le.s32.totalorder 1, %s9
    %p156 = scmp.lt.s32.totalorder %s9, 3
    %p157 = pnand %p155, %p156
    %p158 = pneg %p157
    // Predicated region
    $region29: #{model_forward.9} parent=5 // pred_check
      _
    $region30: #{model_forward.9} parent=5 // pred_check_branch
      %160 = sbr.rel (%p157) target = $region32
    $region31: #{model_forward.9} parent=5 // pred_region
      %s161 = ssub.s32 %s9, 1
      %p162 = scmp.lt.s32.totalorder %s18, 1
      %s163 = scalar_select %p162, %s18, 1
      %p164 = scmp.lt.s32.totalorder %s19, 0
      %s165 = scalar_select %p164, %s19, 0
      %s166 = smul.addr %s163, 64
      %s167 = sadd.s32 %s165, %s166
      %s168 = smul.addr %s167, 4
      %s169 = scalar_lea.vmem %s0, %s168
      %p170 = pneg %p49
      %p171 = pneg %p46
      %p172 = pneg %p70
      %p173 = pneg %p67
      %p174 = pneg %p91
      %p175 = pneg %p88
      %p176 = pneg %p119
      %p177 = pneg %p116
      %p178 = scmp.lt.s32.totalorder %s18, 1
      %s179 = scalar_select %p178, %s18, 1
      %p180 = scmp.lt.s32.totalorder %s19, 0
      %s181 = scalar_select %p180, %s19, 0
      %s182 = smul.addr %s179, 8
      %s183 = sadd.s32 %s181, %s182
      %s184 = smul.addr %s183, 4
      %s185 = scalar_lea.vmem %s3, %s184
      %p186 = scmp.lt.s32.totalorder %s18, 1
      %s187 = scalar_select %p186, %s18, 1
      %p188 = scmp.lt.s32.totalorder %s19, 0
      %s189 = scalar_select %p188, %s19, 0
      %s190 = smul.addr %s187, 64
      %s191 = sadd.s32 %s189, %s190
      %s192 = smul.addr %s191, 4
      %s193 = scalar_lea.vmem %s0, %s192
      %p194 = scmp.lt.s32.totalorder %s18, 1
      %s195 = scalar_select %p194, %s18, 1
      %p196 = scmp.lt.s32.totalorder %s19, 0
      %s197 = scalar_select %p196, %s19, 0
      %s198 = smul.addr %s195, 8
      %s199 = sadd.s32 %s197, %s198
      %s200 = smul.addr %s199, 4
      %s201 = scalar_lea.vmem %s3, %s200
      %v202 = vld [vmem:[%s1] sm:$0xff]
      %v203 = vld [vmem:[%s1 + $0x8] sm:$0xff]
      %v204 = vld [vmem:[%s1 + $0x10] sm:$0xff]
      %v205 = vld [vmem:[%s1 + $0x18] sm:$0xff]
      %v206 = vld [vmem:[%s1 + $0x20] sm:$0xff]
      %v207 = vld [vmem:[%s1 + $0x28] sm:$0xff]
      %v208 = vld [vmem:[%s1 + $0x30] sm:$0xff]
      %v209 = vld [vmem:[%s1 + $0x38] sm:$0xff]
      %v210 = vld [vmem:[%s1 + $0x40] sm:$0xff]
      %v211 = vld [vmem:[%s1 + $0x48] sm:$0xff]
      %v212 = vld [vmem:[%s1 + $0x50] sm:$0xff]
      %v213 = vld [vmem:[%s1 + $0x58] sm:$0xff]
      %v214 = vld [vmem:[%s1 + $0x60] sm:$0xff]
      %v215 = vld [vmem:[%s1 + $0x68] sm:$0xff]
      %v216 = vld [vmem:[%s1 + $0x70] sm:$0xff]
      %v217 = vld [vmem:[%s1 + $0x78] sm:$0xff]
      %v218 = vld [vmem:[%s1 + $0x80] sm:$0xff]
      %v219 = vld [vmem:[%s1 + $0x88] sm:$0xff]
      %v220 = vld [vmem:[%s1 + $0x90] sm:$0xff]
      %v221 = vld [vmem:[%s1 + $0x98] sm:$0xff]
      %v222 = vld [vmem:[%s1 + $0xa0] sm:$0xff]
      %v223 = vld [vmem:[%s1 + $0xa8] sm:$0xff]
      %v224 = vld [vmem:[%s1 + $0xb0] sm:$0xff]
      %v225 = vld [vmem:[%s1 + $0xb8] sm:$0xff]
      %v226 = vld [vmem:[%s1 + $0xc0] sm:$0xff]
      %v227 = vld [vmem:[%s1 + $0xc8] sm:$0xff]
      %v228 = vld [vmem:[%s1 + $0xd0] sm:$0xff]
      %v229 = vld [vmem:[%s1 + $0xd8] sm:$0xff]
      %v230 = vld [vmem:[%s1 + $0xe0] sm:$0xff]
      %v231 = vld [vmem:[%s1 + $0xe8] sm:$0xff]
      %v232 = vld [vmem:[%s1 + $0xf0] sm:$0xff]
      %v233 = vld [vmem:[%s1 + $0xf8] sm:$0xff]
      %v234 = vld [vmem:[%s1 + $0x100] sm:$0xff]
      %v235 = vld [vmem:[%s1 + $0x108] sm:$0xff]
      %v236 = vld [vmem:[%s1 + $0x110] sm:$0xff]
      %v237 = vld [vmem:[%s1 + $0x118] sm:$0xff]
      %v238 = vld [vmem:[%s1 + $0x120] sm:$0xff]
      %v239 = vld [vmem:[%s1 + $0x128] sm:$0xff]
      %v240 = vld [vmem:[%s1 + $0x130] sm:$0xff]
      %v241 = vld [vmem:[%s1 + $0x138] sm:$0xff]
      %v242 = vld [vmem:[%s1 + $0x140] sm:$0xff]
      %v243 = vld [vmem:[%s1 + $0x148] sm:$0xff]
      %v244 = vld [vmem:[%s1 + $0x150] sm:$0xff]
      %v245 = vld [vmem:[%s1 + $0x158] sm:$0xff]
      %v246 = vld [vmem:[%s1 + $0x160] sm:$0xff]
      %v247 = vld [vmem:[%s1 + $0x168] sm:$0xff]
      %v248 = vld [vmem:[%s1 + $0x170] sm:$0xff]
      %v249 = vld [vmem:[%s1 + $0x178] sm:$0xff]
      %v250 = vld [vmem:[%s1 + $0x180] sm:$0xff]
      %v251 = vld [vmem:[%s1 + $0x188] sm:$0xff]
      %v252 = vld [vmem:[%s1 + $0x190] sm:$0xff]
      %v253 = vld [vmem:[%s1 + $0x198] sm:$0xff]
      %v254 = vld [vmem:[%s1 + $0x1a0] sm:$0xff]
      %v255 = vld [vmem:[%s1 + $0x1a8] sm:$0xff]
      %v256 = vld [vmem:[%s1 + $0x1b0] sm:$0xff]
      %v257 = vld [vmem:[%s1 + $0x1b8] sm:$0xff]
      %v258 = vld [vmem:[%s1 + $0x1c0] sm:$0xff]
      %v259 = vld [vmem:[%s1 + $0x1c8] sm:$0xff]
      %v260 = vld [vmem:[%s1 + $0x1d0] sm:$0xff]
      %v261 = vld [vmem:[%s1 + $0x1d8] sm:$0xff]
      %v262 = vld [vmem:[%s1 + $0x1e0] sm:$0xff]
      %v263 = vld [vmem:[%s1 + $0x1e8] sm:$0xff]
      %v264 = vld [vmem:[%s1 + $0x1f0] sm:$0xff]
      %v265 = vld [vmem:[%s1 + $0x1f8] sm:$0xff]
      %v266 = vld [vmem:[%s193] sm:$0xf]
      %v267 = vld [vmem:[%s193 + $0x4] sm:$0xf]
      %v268 = vld [vmem:[%s193 + $0x8] sm:$0xf]
      %v269 = vld [vmem:[%s193 + $0xc] sm:$0xf]
      %v270 = vld [vmem:[%s193 + $0x10] sm:$0xf]
      %v271 = vld [vmem:[%s193 + $0x14] sm:$0xf]
      %v272 = vld [vmem:[%s193 + $0x18] sm:$0xf]
      %v273 = vld [vmem:[%s193 + $0x1c] sm:$0xf]
      %v274 = vld [vmem:[%s193 + $0x20] sm:$0xf]
      %v275 = vld [vmem:[%s193 + $0x24] sm:$0xf]
      %v276 = vld [vmem:[%s193 + $0x28] sm:$0xf]
      %v277 = vld [vmem:[%s193 + $0x2c] sm:$0xf]
      %v278 = vld [vmem:[%s193 + $0x30] sm:$0xf]
      %v279 = vld [vmem:[%s193 + $0x34] sm:$0xf]
      %v280 = vld [vmem:[%s193 + $0x38] sm:$0xf]
      %v281 = vld [vmem:[%s193 + $0x3c] sm:$0xf]
      %v282 = vld [vmem:[%s193 + $0x40] sm:$0xf]
      %v283 = vld [vmem:[%s193 + $0x44] sm:$0xf]
      %v284 = vld [vmem:[%s193 + $0x48] sm:$0xf]
      %v285 = vld [vmem:[%s193 + $0x4c] sm:$0xf]
      %v286 = vld [vmem:[%s193 + $0x50] sm:$0xf]
      %v287 = vld [vmem:[%s193 + $0x54] sm:$0xf]
      %v288 = vld [vmem:[%s193 + $0x58] sm:$0xf]
      %v289 = vld [vmem:[%s193 + $0x5c] sm:$0xf]
      %v290 = vld [vmem:[%s193 + $0x60] sm:$0xf]
      %v291 = vld [vmem:[%s193 + $0x64] sm:$0xf]
      %v292 = vld [vmem:[%s193 + $0x68] sm:$0xf]
      %v293 = vld [vmem:[%s193 + $0x6c] sm:$0xf]
      %v294 = vld [vmem:[%s193 + $0x70] sm:$0xf]
      %v295 = vld [vmem:[%s193 + $0x74] sm:$0xf]
      %v296 = vld [vmem:[%s193 + $0x78] sm:$0xf]
      %v297 = vld [vmem:[%s193 + $0x7c] sm:$0xf]
      %v298 = vld [vmem:[%s193 + $0x80] sm:$0xf]
      %v299 = vld [vmem:[%s193 + $0x84] sm:$0xf]
      %v300 = vld [vmem:[%s193 + $0x88] sm:$0xf]
      %v301 = vld [vmem:[%s193 + $0x8c] sm:$0xf]
      %v302 = vld [vmem:[%s193 + $0x90] sm:$0xf]
      %v303 = vld [vmem:[%s193 + $0x94] sm:$0xf]
      %v304 = vld [vmem:[%s193 + $0x98] sm:$0xf]
      %v305 = vld [vmem:[%s193 + $0x9c] sm:$0xf]
      %v306 = vld [vmem:[%s193 + $0xa0] sm:$0xf]
      %v307 = vld [vmem:[%s193 + $0xa4] sm:$0xf]
      %v308 = vld [vmem:[%s193 + $0xa8] sm:$0xf]
      %v309 = vld [vmem:[%s193 + $0xac] sm:$0xf]
      %v310 = vld [vmem:[%s193 + $0xb0] sm:$0xf]
      %v311 = vld [vmem:[%s193 + $0xb4] sm:$0xf]
      %v312 = vld [vmem:[%s193 + $0xb8] sm:$0xf]
      %v313 = vld [vmem:[%s193 + $0xbc] sm:$0xf]
      %v314 = vld [vmem:[%s193 + $0xc0] sm:$0xf]
      %v315 = vld [vmem:[%s193 + $0xc4] sm:$0xf]
      %v316 = vld [vmem:[%s193 + $0xc8] sm:$0xf]
      %v317 = vld [vmem:[%s193 + $0xcc] sm:$0xf]
      %v318 = vld [vmem:[%s193 + $0xd0] sm:$0xf]
      %v319 = vld [vmem:[%s193 + $0xd4] sm:$0xf]
      %v320 = vld [vmem:[%s193 + $0xd8] sm:$0xf]
      %v321 = vld [vmem:[%s193 + $0xdc] sm:$0xf]
      %v322 = vld [vmem:[%s193 + $0xe0] sm:$0xf]
      %v323 = vld [vmem:[%s193 + $0xe4] sm:$0xf]
      %v324 = vld [vmem:[%s193 + $0xe8] sm:$0xf]
      %v325 = vld [vmem:[%s193 + $0xec] sm:$0xf]
      %v326 = vld [vmem:[%s193 + $0xf0] sm:$0xf]
      %v327 = vld [vmem:[%s193 + $0xf4] sm:$0xf]
      %v328 = vld [vmem:[%s193 + $0xf8] sm:$0xf]
      %v329 = vld [vmem:[%s193 + $0xfc] sm:$0xf]
      %v394 = vunpack.c.l.b16 %v202
      %v395 = vunpack.c.h.b16 %v202
      %v396 = vunpack.c.l.b16 %v203
      %v397 = vunpack.c.h.b16 %v203
      %v398 = vunpack.c.l.b16 %v204
      %v399 = vunpack.c.h.b16 %v204
      %v400 = vunpack.c.l.b16 %v205
      %v401 = vunpack.c.h.b16 %v205
      %v402 = vunpack.c.l.b16 %v206
      %v403 = vunpack.c.h.b16 %v206
      %v404 = vunpack.c.l.b16 %v207
      %v405 = vunpack.c.h.b16 %v207
      %v406 = vunpack.c.l.b16 %v208
      %v407 = vunpack.c.h.b16 %v208
      %v408 = vunpack.c.l.b16 %v209
      %v409 = vunpack.c.h.b16 %v209
      %v410 = vunpack.c.l.b16 %v210
      %v411 = vunpack.c.h.b16 %v210
      %v412 = vunpack.c.l.b16 %v211
      %v413 = vunpack.c.h.b16 %v211
      %v414 = vunpack.c.l.b16 %v212
      %v415 = vunpack.c.h.b16 %v212
      %v416 = vunpack.c.l.b16 %v213
      %v417 = vunpack.c.h.b16 %v213
      %v418 = vunpack.c.l.b16 %v214
      %v419 = vunpack.c.h.b16 %v214
      %v420 = vunpack.c.l.b16 %v215
      %v421 = vunpack.c.h.b16 %v215
      %v422 = vunpack.c.l.b16 %v216
      %v423 = vunpack.c.h.b16 %v216
      %v424 = vunpack.c.l.b16 %v217
      %v425 = vunpack.c.h.b16 %v217
      %v426 = vunpack.c.l.b16 %v218
      %v427 = vunpack.c.h.b16 %v218
      %v428 = vunpack.c.l.b16 %v219
      %v429 = vunpack.c.h.b16 %v219
      %v430 = vunpack.c.l.b16 %v220
      %v431 = vunpack.c.h.b16 %v220
      %v432 = vunpack.c.l.b16 %v221
      %v433 = vunpack.c.h.b16 %v221
      %v434 = vunpack.c.l.b16 %v222
      %v435 = vunpack.c.h.b16 %v222
      %v436 = vunpack.c.l.b16 %v223
      %v437 = vunpack.c.h.b16 %v223
      %v438 = vunpack.c.l.b16 %v224
      %v439 = vunpack.c.h.b16 %v224
      %v440 = vunpack.c.l.b16 %v225
      %v441 = vunpack.c.h.b16 %v225
      %v442 = vunpack.c.l.b16 %v226
      %v443 = vunpack.c.h.b16 %v226
      %v444 = vunpack.c.l.b16 %v227
      %v445 = vunpack.c.h.b16 %v227
      %v446 = vunpack.c.l.b16 %v228
      %v447 = vunpack.c.h.b16 %v228
      %v448 = vunpack.c.l.b16 %v229
      %v449 = vunpack.c.h.b16 %v229
      %v450 = vunpack.c.l.b16 %v230
      %v451 = vunpack.c.h.b16 %v230
      %v452 = vunpack.c.l.b16 %v231
      %v453 = vunpack.c.h.b16 %v231
      %v454 = vunpack.c.l.b16 %v232
      %v455 = vunpack.c.h.b16 %v232
      %v456 = vunpack.c.l.b16 %v233
      %v457 = vunpack.c.h.b16 %v233
      %v458 = vunpack.c.l.b16 %v234
      %v459 = vunpack.c.h.b16 %v234
      %v460 = vunpack.c.l.b16 %v235
      %v461 = vunpack.c.h.b16 %v235
      %v462 = vunpack.c.l.b16 %v236
      %v463 = vunpack.c.h.b16 %v236
      %v464 = vunpack.c.l.b16 %v237
      %v465 = vunpack.c.h.b16 %v237
      %v466 = vunpack.c.l.b16 %v238
      %v467 = vunpack.c.h.b16 %v238
      %v468 = vunpack.c.l.b16 %v239
      %v469 = vunpack.c.h.b16 %v239
      %v470 = vunpack.c.l.b16 %v240
      %v471 = vunpack.c.h.b16 %v240
      %v472 = vunpack.c.l.b16 %v241
      %v473 = vunpack.c.h.b16 %v241
      %v474 = vunpack.c.l.b16 %v242
      %v475 = vunpack.c.h.b16 %v242
      %v476 = vunpack.c.l.b16 %v243
      %v477 = vunpack.c.h.b16 %v243
      %v478 = vunpack.c.l.b16 %v244
      %v479 = vunpack.c.h.b16 %v244
      %v480 = vunpack.c.l.b16 %v245
      %v481 = vunpack.c.h.b16 %v245
      %v482 = vunpack.c.l.b16 %v246
      %v483 = vunpack.c.h.b16 %v246
      %v484 = vunpack.c.l.b16 %v247
      %v485 = vunpack.c.h.b16 %v247
      %v486 = vunpack.c.l.b16 %v248
      %v487 = vunpack.c.h.b16 %v248
      %v488 = vunpack.c.l.b16 %v249
      %v489 = vunpack.c.h.b16 %v249
      %v490 = vunpack.c.l.b16 %v250
      %v491 = vunpack.c.h.b16 %v250
      %v492 = vunpack.c.l.b16 %v251
      %v493 = vunpack.c.h.b16 %v251
      %v494 = vunpack.c.l.b16 %v252
      %v495 = vunpack.c.h.b16 %v252
      %v496 = vunpack.c.l.b16 %v253
      %v497 = vunpack.c.h.b16 %v253
      %v498 = vunpack.c.l.b16 %v254
      %v499 = vunpack.c.h.b16 %v254
      %v500 = vunpack.c.l.b16 %v255
      %v501 = vunpack.c.h.b16 %v255
      %v502 = vunpack.c.l.b16 %v256
      %v503 = vunpack.c.h.b16 %v256
      %v504 = vunpack.c.l.b16 %v257
      %v505 = vunpack.c.h.b16 %v257
      %v506 = vunpack.c.l.b16 %v258
      %v507 = vunpack.c.h.b16 %v258
      %v508 = vunpack.c.l.b16 %v259
      %v509 = vunpack.c.h.b16 %v259
      %v510 = vunpack.c.l.b16 %v260
      %v511 = vunpack.c.h.b16 %v260
      %v512 = vunpack.c.l.b16 %v261
      %v513 = vunpack.c.h.b16 %v261
      %v514 = vunpack.c.l.b16 %v262
      %v515 = vunpack.c.h.b16 %v262
      %v516 = vunpack.c.l.b16 %v263
      %v517 = vunpack.c.h.b16 %v263
      %v518 = vunpack.c.l.b16 %v264
      %v519 = vunpack.c.h.b16 %v264
      %v520 = vunpack.c.l.b16 %v265
      %v521 = vunpack.c.h.b16 %v265
      %v522 = vpack.c.b16 %v398, %v394
      %v523 = vpack.c.b16 %v399, %v395
      %v524 = vpack.c.b16 %v400, %v396
      %v525 = vpack.c.b16 %v401, %v397
      %v526 = vpack.c.b16 %v406, %v402
      %v527 = vpack.c.b16 %v407, %v403
      %v528 = vpack.c.b16 %v408, %v404
      %v529 = vpack.c.b16 %v409, %v405
      %v530 = vpack.c.b16 %v414, %v410
      %v531 = vpack.c.b16 %v415, %v411
      %v532 = vpack.c.b16 %v416, %v412
      %v533 = vpack.c.b16 %v417, %v413
      %v534 = vpack.c.b16 %v422, %v418
      %v535 = vpack.c.b16 %v423, %v419
      %v536 = vpack.c.b16 %v424, %v420
      %v537 = vpack.c.b16 %v425, %v421
      %v538 = vpack.c.b16 %v430, %v426
      %v539 = vpack.c.b16 %v431, %v427
      %v540 = vpack.c.b16 %v432, %v428
      %v541 = vpack.c.b16 %v433, %v429
      %v542 = vpack.c.b16 %v438, %v434
      %v543 = vpack.c.b16 %v439, %v435
      %v544 = vpack.c.b16 %v440, %v436
      %v545 = vpack.c.b16 %v441, %v437
      %v546 = vpack.c.b16 %v446, %v442
      %v547 = vpack.c.b16 %v447, %v443
      %v548 = vpack.c.b16 %v448, %v444
      %v549 = vpack.c.b16 %v449, %v445
      %v550 = vpack.c.b16 %v454, %v450
      %v551 = vpack.c.b16 %v455, %v451
      %v552 = vpack.c.b16 %v456, %v452
      %v553 = vpack.c.b16 %v457, %v453
      %v554 = vpack.c.b16 %v462, %v458
      %v555 = vpack.c.b16 %v463, %v459
      %v556 = vpack.c.b16 %v464, %v460
      %v557 = vpack.c.b16 %v465, %v461
      %v558 = vpack.c.b16 %v470, %v466
      %v559 = vpack.c.b16 %v471, %v467
      %v560 = vpack.c.b16 %v472, %v468
      %v561 = vpack.c.b16 %v473, %v469
      %v562 = vpack.c.b16 %v478, %v474
      %v563 = vpack.c.b16 %v479, %v475
      %v564 = vpack.c.b16 %v480, %v476
      %v565 = vpack.c.b16 %v481, %v477
      %v566 = vpack.c.b16 %v486, %v482
      %v567 = vpack.c.b16 %v487, %v483
      %v568 = vpack.c.b16 %v488, %v484
      %v569 = vpack.c.b16 %v489, %v485
      %v570 = vpack.c.b16 %v494, %v490
      %v571 = vpack.c.b16 %v495, %v491
      %v572 = vpack.c.b16 %v496, %v492
      %v573 = vpack.c.b16 %v497, %v493
      %v574 = vpack.c.b16 %v502, %v498
      %v575 = vpack.c.b16 %v503, %v499
      %v576 = vpack.c.b16 %v504, %v500
      %v577 = vpack.c.b16 %v505, %v501
      %v578 = vpack.c.b16 %v510, %v506
      %v579 = vpack.c.b16 %v511, %v507
      %v580 = vpack.c.b16 %v512, %v508
      %v581 = vpack.c.b16 %v513, %v509
      %v582 = vpack.c.b16 %v518, %v514
      %v583 = vpack.c.b16 %v519, %v515
      %v584 = vpack.c.b16 %v520, %v516
      %v585 = vpack.c.b16 %v521, %v517
      %v714 = vunpack.c.l.b16 %v266
      %v715 = vunpack.c.l.b16 %v267
      %v716 = vunpack.c.l.b16 %v268
      %v717 = vunpack.c.l.b16 %v269
      %v718 = vunpack.c.l.b16 %v270
      %v719 = vunpack.c.l.b16 %v271
      %v720 = vunpack.c.l.b16 %v272
      %v721 = vunpack.c.l.b16 %v273
      %v722 = vunpack.c.l.b16 %v274
      %v723 = vunpack.c.l.b16 %v275
      %v724 = vunpack.c.l.b16 %v276
      %v725 = vunpack.c.l.b16 %v277
      %v726 = vunpack.c.l.b16 %v278
      %v727 = vunpack.c.l.b16 %v279
      %v728 = vunpack.c.l.b16 %v280
      %v729 = vunpack.c.l.b16 %v281
      %v730 = vunpack.c.l.b16 %v282
      %v731 = vunpack.c.l.b16 %v283
      %v732 = vunpack.c.l.b16 %v284
      %v733 = vunpack.c.l.b16 %v285
      %v734 = vunpack.c.l.b16 %v286
      %v735 = vunpack.c.l.b16 %v287
      %v736 = vunpack.c.l.b16 %v288
      %v737 = vunpack.c.l.b16 %v289
      %v738 = vunpack.c.l.b16 %v290
      %v739 = vunpack.c.l.b16 %v291
      %v740 = vunpack.c.l.b16 %v292
      %v741 = vunpack.c.l.b16 %v293
      %v742 = vunpack.c.l.b16 %v294
      %v743 = vunpack.c.l.b16 %v295
      %v744 = vunpack.c.l.b16 %v296
      %v745 = vunpack.c.l.b16 %v297
      %v746 = vunpack.c.l.b16 %v298
      %v747 = vunpack.c.l.b16 %v299
      %v748 = vunpack.c.l.b16 %v300
      %v749 = vunpack.c.l.b16 %v301
      %v750 = vunpack.c.l.b16 %v302
      %v751 = vunpack.c.l.b16 %v303
      %v752 = vunpack.c.l.b16 %v304
      %v753 = vunpack.c.l.b16 %v305
      %v754 = vunpack.c.l.b16 %v306
      %v755 = vunpack.c.l.b16 %v307
      %v756 = vunpack.c.l.b16 %v308
      %v757 = vunpack.c.l.b16 %v309
      %v758 = vunpack.c.l.b16 %v310
      %v759 = vunpack.c.l.b16 %v311
      %v760 = vunpack.c.l.b16 %v312
      %v761 = vunpack.c.l.b16 %v313
      %v762 = vunpack.c.l.b16 %v314
      %v763 = vunpack.c.l.b16 %v315
      %v764 = vunpack.c.l.b16 %v316
      %v765 = vunpack.c.l.b16 %v317
      %v766 = vunpack.c.l.b16 %v318
      %v767 = vunpack.c.l.b16 %v319
      %v768 = vunpack.c.l.b16 %v320
      %v769 = vunpack.c.l.b16 %v321
      %v770 = vunpack.c.l.b16 %v322
      %v771 = vunpack.c.l.b16 %v323
      %v772 = vunpack.c.l.b16 %v324
      %v773 = vunpack.c.l.b16 %v325
      %v774 = vunpack.c.l.b16 %v326
      %v775 = vunpack.c.l.b16 %v327
      %v776 = vunpack.c.l.b16 %v328
      %v777 = vunpack.c.l.b16 %v329
      %v778 = vpack.c.b16 %v715, %v714
      %v779 = vpack.c.b16 %v717, %v716
      %v780 = vpack.c.b16 %v719, %v718
      %v781 = vpack.c.b16 %v721, %v720
      %v782 = vpack.c.b16 %v723, %v722
      %v783 = vpack.c.b16 %v725, %v724
      %v784 = vpack.c.b16 %v727, %v726
      %v785 = vpack.c.b16 %v729, %v728
      %v786 = vpack.c.b16 %v731, %v730
      %v787 = vpack.c.b16 %v733, %v732
      %v788 = vpack.c.b16 %v735, %v734
      %v789 = vpack.c.b16 %v737, %v736
      %v790 = vpack.c.b16 %v739, %v738
      %v791 = vpack.c.b16 %v741, %v740
      %v792 = vpack.c.b16 %v743, %v742
      %v793 = vpack.c.b16 %v745, %v744
      %v794 = vpack.c.b16 %v747, %v746
      %v795 = vpack.c.b16 %v749, %v748
      %v796 = vpack.c.b16 %v751, %v750
      %v797 = vpack.c.b16 %v753, %v752
      %v798 = vpack.c.b16 %v755, %v754
      %v799 = vpack.c.b16 %v757, %v756
      %v800 = vpack.c.b16 %v759, %v758
      %v801 = vpack.c.b16 %v761, %v760
      %v802 = vpack.c.b16 %v763, %v762
      %v803 = vpack.c.b16 %v765, %v764
      %v804 = vpack.c.b16 %v767, %v766
      %v805 = vpack.c.b16 %v769, %v768
      %v806 = vpack.c.b16 %v771, %v770
      %v807 = vpack.c.b16 %v773, %v772
      %v808 = vpack.c.b16 %v775, %v774
      %v809 = vpack.c.b16 %v777, %v776
      %842 = vmatpush.bf16.msra.mxu0 %v785
      %843 = vmatpush.bf16.msra.mxu0 %v784
      %844 = vmatpush.bf16.msra.mxu0 %v783
      %845 = vmatpush.bf16.msra.mxu0 %v782
      %846 = vmatpush.bf16.msra.mxu0 %v781
      %847 = vmatpush.bf16.msra.mxu0 %v780
      %848 = vmatpush.bf16.msra.mxu0 %v779
      %849 = vmatpush.bf16.msra.mxu0 %v778
      %850 = vmatmul.bf16.gmra.mxu0 %v522
      %v851 = vpop.f32.mrf.mxu0
      %v852 = vadd.f32 0.0, %v851
      %v853 = vpop.f32.mrf.mxu0
      %v854 = vadd.f32 0.0, %v853
      %855 = vmatmul.bf16.gmra.mxu0 %v526
      %v856 = vpop.f32.mrf.mxu0
      %v857 = vadd.f32 0.0, %v856
      %v858 = vpop.f32.mrf.mxu0
      %v859 = vadd.f32 0.0, %v858
      %860 = vmatmul.bf16.gmra.mxu0 %v530
      %v861 = vpop.f32.mrf.mxu0
      %v862 = vadd.f32 0.0, %v861
      %v863 = vpop.f32.mrf.mxu0
      %v864 = vadd.f32 0.0, %v863
      %865 = vmatmul.bf16.gmra.mxu0 %v534
      %v866 = vpop.f32.mrf.mxu0
      %v867 = vadd.f32 0.0, %v866
      %v868 = vpop.f32.mrf.mxu0
      %v869 = vadd.f32 0.0, %v868
      %870 = vmatmul.bf16.gmra.mxu0 %v538
      %v871 = vpop.f32.mrf.mxu0
      %v872 = vadd.f32 0.0, %v871
      %v873 = vpop.f32.mrf.mxu0
      %v874 = vadd.f32 0.0, %v873
      %875 = vmatmul.bf16.gmra.mxu0 %v542
      %v876 = vpop.f32.mrf.mxu0
      %v877 = vadd.f32 0.0, %v876
      %v878 = vpop.f32.mrf.mxu0
      %v879 = vadd.f32 0.0, %v878
      %880 = vmatmul.bf16.gmra.mxu0 %v546
      %v881 = vpop.f32.mrf.mxu0
      %v882 = vadd.f32 0.0, %v881
      %v883 = vpop.f32.mrf.mxu0
      %v884 = vadd.f32 0.0, %v883
      %885 = vmatmul.bf16.gmra.mxu0 %v550
      %v886 = vpop.f32.mrf.mxu0
      %v887 = vadd.f32 0.0, %v886
      %v888 = vpop.f32.mrf.mxu0
      %v889 = vadd.f32 0.0, %v888
      %890 = vmatmul.bf16.gmra.mxu0 %v554
      %v891 = vpop.f32.mrf.mxu0
      %v892 = vadd.f32 0.0, %v891
      %v893 = vpop.f32.mrf.mxu0
      %v894 = vadd.f32 0.0, %v893
      %895 = vmatmul.bf16.gmra.mxu0 %v558
      %v896 = vpop.f32.mrf.mxu0
      %v897 = vadd.f32 0.0, %v896
      %v898 = vpop.f32.mrf.mxu0
      %v899 = vadd.f32 0.0, %v898
      %900 = vmatmul.bf16.gmra.mxu0 %v562
      %v901 = vpop.f32.mrf.mxu0
      %v902 = vadd.f32 0.0, %v901
      %v903 = vpop.f32.mrf.mxu0
      %v904 = vadd.f32 0.0, %v903
      %905 = vmatmul.bf16.gmra.mxu0 %v566
      %v906 = vpop.f32.mrf.mxu0
      %v907 = vadd.f32 0.0, %v906
      %v908 = vpop.f32.mrf.mxu0
      %v909 = vadd.f32 0.0, %v908
      %910 = vmatmul.bf16.gmra.mxu0 %v570
      %v911 = vpop.f32.mrf.mxu0
      %v912 = vadd.f32 0.0, %v911
      %v913 = vpop.f32.mrf.mxu0
      %v914 = vadd.f32 0.0, %v913
      %915 = vmatmul.bf16.gmra.mxu0 %v574
      %v916 = vpop.f32.mrf.mxu0
      %v917 = vadd.f32 0.0, %v916
      %v918 = vpop.f32.mrf.mxu0
      %v919 = vadd.f32 0.0, %v918
      %920 = vmatmul.bf16.gmra.mxu0 %v578
      %v921 = vpop.f32.mrf.mxu0
      %v922 = vadd.f32 0.0, %v921
      %v923 = vpop.f32.mrf.mxu0
      %v924 = vadd.f32 0.0, %v923
      %925 = vmatmul.bf16.gmra.mxu0 %v582
      %v926 = vpop.f32.mrf.mxu0
      %v927 = vadd.f32 0.0, %v926
      %v928 = vpop.f32.mrf.mxu0
      %v929 = vadd.f32 0.0, %v928
      %930 = vdwg.mxu0
      %931 = vmatpush.bf16.msra.mxu0 %v793
      %932 = vmatpush.bf16.msra.mxu0 %v792
      %933 = vmatpush.bf16.msra.mxu0 %v791
      %934 = vmatpush.bf16.msra.mxu0 %v790
      %935 = vmatpush.bf16.msra.mxu0 %v789
      %936 = vmatpush.bf16.msra.mxu0 %v788
      %937 = vmatpush.bf16.msra.mxu0 %v787
      %938 = vmatpush.bf16.msra.mxu0 %v786
      %939 = vmatmul.bf16.gmra.mxu0 %v523
      %v940 = vpop.f32.mrf.mxu0
      %v941 = vadd.f32 %v852, %v940
      %v942 = vpop.f32.mrf.mxu0
      %v943 = vadd.f32 %v854, %v942
      %944 = vmatmul.bf16.gmra.mxu0 %v527
      %v945 = vpop.f32.mrf.mxu0
      %v946 = vadd.f32 %v857, %v945
      %v947 = vpop.f32.mrf.mxu0
      %v948 = vadd.f32 %v859, %v947
      %949 = vmatmul.bf16.gmra.mxu0 %v531
      %v950 = vpop.f32.mrf.mxu0
      %v951 = vadd.f32 %v862, %v950
      %v952 = vpop.f32.mrf.mxu0
      %v953 = vadd.f32 %v864, %v952
      %954 = vmatmul.bf16.gmra.mxu0 %v535
      %v955 = vpop.f32.mrf.mxu0
      %v956 = vadd.f32 %v867, %v955
      %v957 = vpop.f32.mrf.mxu0
      %v958 = vadd.f32 %v869, %v957
      %959 = vmatmul.bf16.gmra.mxu0 %v539
      %v960 = vpop.f32.mrf.mxu0
      %v961 = vadd.f32 %v872, %v960
      %v962 = vpop.f32.mrf.mxu0
      %v963 = vadd.f32 %v874, %v962
      %964 = vmatmul.bf16.gmra.mxu0 %v543
      %v965 = vpop.f32.mrf.mxu0
      %v966 = vadd.f32 %v877, %v965
      %v967 = vpop.f32.mrf.mxu0
      %v968 = vadd.f32 %v879, %v967
      %969 = vmatmul.bf16.gmra.mxu0 %v547
      %v970 = vpop.f32.mrf.mxu0
      %v971 = vadd.f32 %v882, %v970
      %v972 = vpop.f32.mrf.mxu0
      %v973 = vadd.f32 %v884, %v972
      %974 = vmatmul.bf16.gmra.mxu0 %v551
      %v975 = vpop.f32.mrf.mxu0
      %v976 = vadd.f32 %v887, %v975
      %v977 = vpop.f32.mrf.mxu0
      %v978 = vadd.f32 %v889, %v977
      %979 = vmatmul.bf16.gmra.mxu0 %v555
      %v980 = vpop.f32.mrf.mxu0
      %v981 = vadd.f32 %v892, %v980
      %v982 = vpop.f32.mrf.mxu0
      %v983 = vadd.f32 %v894, %v982
      %984 = vmatmul.bf16.gmra.mxu0 %v559
      %v985 = vpop.f32.mrf.mxu0
      %v986 = vadd.f32 %v897, %v985
      %v987 = vpop.f32.mrf.mxu0
      %v988 = vadd.f32 %v899, %v987
      %989 = vmatmul.bf16.gmra.mxu0 %v563
      %v990 = vpop.f32.mrf.mxu0
      %v991 = vadd.f32 %v902, %v990
      %v992 = vpop.f32.mrf.mxu0
      %v993 = vadd.f32 %v904, %v992
      %994 = vmatmul.bf16.gmra.mxu0 %v567
      %v995 = vpop.f32.mrf.mxu0
      %v996 = vadd.f32 %v907, %v995
      %v997 = vpop.f32.mrf.mxu0
      %v998 = vadd.f32 %v909, %v997
      %999 = vmatmul.bf16.gmra.mxu0 %v571
      %v1000 = vpop.f32.mrf.mxu0
      %v1001 = vadd.f32 %v912, %v1000
      %v1002 = vpop.f32.mrf.mxu0
      %v1003 = vadd.f32 %v914, %v1002
      %1004 = vmatmul.bf16.gmra.mxu0 %v575
      %v1005 = vpop.f32.mrf.mxu0
      %v1006 = vadd.f32 %v917, %v1005
      %v1007 = vpop.f32.mrf.mxu0
      %v1008 = vadd.f32 %v919, %v1007
      %1009 = vmatmul.bf16.gmra.mxu0 %v579
      %v1010 = vpop.f32.mrf.mxu0
      %v1011 = vadd.f32 %v922, %v1010
      %v1012 = vpop.f32.mrf.mxu0
      %v1013 = vadd.f32 %v924, %v1012
      %1014 = vmatmul.bf16.gmra.mxu0 %v583
      %v1015 = vpop.f32.mrf.mxu0
      %v1016 = vadd.f32 %v927, %v1015
      %v1017 = vpop.f32.mrf.mxu0
      %v1018 = vadd.f32 %v929, %v1017
      %1019 = vdwg.mxu0
      %1020 = vmatpush.bf16.msra.mxu0 %v801
      %1021 = vmatpush.bf16.msra.mxu0 %v800
      %1022 = vmatpush.bf16.msra.mxu0 %v799
      %1023 = vmatpush.bf16.msra.mxu0 %v798
      %1024 = vmatpush.bf16.msra.mxu0 %v797
      %1025 = vmatpush.bf16.msra.mxu0 %v796
      %1026 = vmatpush.bf16.msra.mxu0 %v795
      %1027 = vmatpush.bf16.msra.mxu0 %v794
      %1028 = vmatmul.bf16.gmra.mxu0 %v524
      %v1029 = vpop.f32.mrf.mxu0
      %v1030 = vadd.f32 %v941, %v1029
      %v1031 = vpop.f32.mrf.mxu0
      %v1032 = vadd.f32 %v943, %v1031
      %1033 = vmatmul.bf16.gmra.mxu0 %v528
      %v1034 = vpop.f32.mrf.mxu0
      %v1035 = vadd.f32 %v946, %v1034
      %v1036 = vpop.f32.mrf.mxu0
      %v1037 = vadd.f32 %v948, %v1036
      %1038 = vmatmul.bf16.gmra.mxu0 %v532
      %v1039 = vpop.f32.mrf.mxu0
      %v1040 = vadd.f32 %v951, %v1039
      %v1041 = vpop.f32.mrf.mxu0
      %v1042 = vadd.f32 %v953, %v1041
      %1043 = vmatmul.bf16.gmra.mxu0 %v536
      %v1044 = vpop.f32.mrf.mxu0
      %v1045 = vadd.f32 %v956, %v1044
      %v1046 = vpop.f32.mrf.mxu0
      %v1047 = vadd.f32 %v958, %v1046
      %1048 = vmatmul.bf16.gmra.mxu0 %v540
      %v1049 = vpop.f32.mrf.mxu0
      %v1050 = vadd.f32 %v961, %v1049
      %v1051 = vpop.f32.mrf.mxu0
      %v1052 = vadd.f32 %v963, %v1051
      %1053 = vmatmul.bf16.gmra.mxu0 %v544
      %v1054 = vpop.f32.mrf.mxu0
      %v1055 = vadd.f32 %v966, %v1054
      %v1056 = vpop.f32.mrf.mxu0
      %v1057 = vadd.f32 %v968, %v1056
      %1058 = vmatmul.bf16.gmra.mxu0 %v548
      %v1059 = vpop.f32.mrf.mxu0
      %v1060 = vadd.f32 %v971, %v1059
      %v1061 = vpop.f32.mrf.mxu0
      %v1062 = vadd.f32 %v973, %v1061
      %1063 = vmatmul.bf16.gmra.mxu0 %v552
      %v1064 = vpop.f32.mrf.mxu0
      %v1065 = vadd.f32 %v976, %v1064
      %v1066 = vpop.f32.mrf.mxu0
      %v1067 = vadd.f32 %v978, %v1066
      %1068 = vmatmul.bf16.gmra.mxu0 %v556
      %v1069 = vpop.f32.mrf.mxu0
      %v1070 = vadd.f32 %v981, %v1069
      %v1071 = vpop.f32.mrf.mxu0
      %v1072 = vadd.f32 %v983, %v1071
      %1073 = vmatmul.bf16.gmra.mxu0 %v560
      %v1074 = vpop.f32.mrf.mxu0
      %v1075 = vadd.f32 %v986, %v1074
      %v1076 = vpop.f32.mrf.mxu0
      %v1077 = vadd.f32 %v988, %v1076
      %1078 = vmatmul.bf16.gmra.mxu0 %v564
      %v1079 = vpop.f32.mrf.mxu0
      %v1080 = vadd.f32 %v991, %v1079
      %v1081 = vpop.f32.mrf.mxu0
      %v1082 = vadd.f32 %v993, %v1081
      %1083 = vmatmul.bf16.gmra.mxu0 %v568
      %v1084 = vpop.f32.mrf.mxu0
      %v1085 = vadd.f32 %v996, %v1084
      %v1086 = vpop.f32.mrf.mxu0
      %v1087 = vadd.f32 %v998, %v1086
      %1088 = vmatmul.bf16.gmra.mxu0 %v572
      %v1089 = vpop.f32.mrf.mxu0
      %v1090 = vadd.f32 %v1001, %v1089
      %v1091 = vpop.f32.mrf.mxu0
      %v1092 = vadd.f32 %v1003, %v1091
      %1093 = vmatmul.bf16.gmra.mxu0 %v576
      %v1094 = vpop.f32.mrf.mxu0
      %v1095 = vadd.f32 %v1006, %v1094
      %v1096 = vpop.f32.mrf.mxu0
      %v1097 = vadd.f32 %v1008, %v1096
      %1098 = vmatmul.bf16.gmra.mxu0 %v580
      %v1099 = vpop.f32.mrf.mxu0
      %v1100 = vadd.f32 %v1011, %v1099
      %v1101 = vpop.f32.mrf.mxu0
      %v1102 = vadd.f32 %v1013, %v1101
      %1103 = vmatmul.bf16.gmra.mxu0 %v584
      %v1104 = vpop.f32.mrf.mxu0
      %v1105 = vadd.f32 %v1016, %v1104
      %v1106 = vpop.f32.mrf.mxu0
      %v1107 = vadd.f32 %v1018, %v1106
      %1108 = vdwg.mxu0
      %1109 = vmatpush.bf16.msra.mxu0 %v809
      %1110 = vmatpush.bf16.msra.mxu0 %v808
      %1111 = vmatpush.bf16.msra.mxu0 %v807
      %1112 = vmatpush.bf16.msra.mxu0 %v806
      %1113 = vmatpush.bf16.msra.mxu0 %v805
      %1114 = vmatpush.bf16.msra.mxu0 %v804
      %1115 = vmatpush.bf16.msra.mxu0 %v803
      %1116 = vmatpush.bf16.msra.mxu0 %v802
      %1117 = vmatmul.bf16.gmra.mxu0 %v525
      %v1118 = vpop.f32.mrf.mxu0
      %v1119 = vadd.f32 %v1030, %v1118
      %v1120 = vpop.f32.mrf.mxu0
      %v1121 = vadd.f32 %v1032, %v1120
      %1122 = vmatmul.bf16.gmra.mxu0 %v529
      %v1123 = vpop.f32.mrf.mxu0
      %v1124 = vadd.f32 %v1035, %v1123
      %v1125 = vpop.f32.mrf.mxu0
      %v1126 = vadd.f32 %v1037, %v1125
      %1127 = vmatmul.bf16.gmra.mxu0 %v533
      %v1128 = vpop.f32.mrf.mxu0
      %v1129 = vadd.f32 %v1040, %v1128
      %v1130 = vpop.f32.mrf.mxu0
      %v1131 = vadd.f32 %v1042, %v1130
      %1132 = vmatmul.bf16.gmra.mxu0 %v537
      %v1133 = vpop.f32.mrf.mxu0
      %v1134 = vadd.f32 %v1045, %v1133
      %v1135 = vpop.f32.mrf.mxu0
      %v1136 = vadd.f32 %v1047, %v1135
      %1137 = vmatmul.bf16.gmra.mxu0 %v541
      %v1138 = vpop.f32.mrf.mxu0
      %v1139 = vadd.f32 %v1050, %v1138
      %v1140 = vpop.f32.mrf.mxu0
      %v1141 = vadd.f32 %v1052, %v1140
      %1142 = vmatmul.bf16.gmra.mxu0 %v545
      %v1143 = vpop.f32.mrf.mxu0
      %v1144 = vadd.f32 %v1055, %v1143
      %v1145 = vpop.f32.mrf.mxu0
      %v1146 = vadd.f32 %v1057, %v1145
      %1147 = vmatmul.bf16.gmra.mxu0 %v549
      %v1148 = vpop.f32.mrf.mxu0
      %v1149 = vadd.f32 %v1060, %v1148
      %v1150 = vpop.f32.mrf.mxu0
      %v1151 = vadd.f32 %v1062, %v1150
      %1152 = vmatmul.bf16.gmra.mxu0 %v553
      %v1153 = vpop.f32.mrf.mxu0
      %v1154 = vadd.f32 %v1065, %v1153
      %v1155 = vpop.f32.mrf.mxu0
      %v1156 = vadd.f32 %v1067, %v1155
      %1157 = vmatmul.bf16.gmra.mxu0 %v557
      %v1158 = vpop.f32.mrf.mxu0
      %v1159 = vadd.f32 %v1070, %v1158
      %v1160 = vpop.f32.mrf.mxu0
      %v1161 = vadd.f32 %v1072, %v1160
      %1162 = vmatmul.bf16.gmra.mxu0 %v561
      %v1163 = vpop.f32.mrf.mxu0
      %v1164 = vadd.f32 %v1075, %v1163
      %v1165 = vpop.f32.mrf.mxu0
      %v1166 = vadd.f32 %v1077, %v1165
      %1167 = vmatmul.bf16.gmra.mxu0 %v565
      %v1168 = vpop.f32.mrf.mxu0
      %v1169 = vadd.f32 %v1080, %v1168
      %v1170 = vpop.f32.mrf.mxu0
      %v1171 = vadd.f32 %v1082, %v1170
      %1172 = vmatmul.bf16.gmra.mxu0 %v569
      %v1173 = vpop.f32.mrf.mxu0
      %v1174 = vadd.f32 %v1085, %v1173
      %v1175 = vpop.f32.mrf.mxu0
      %v1176 = vadd.f32 %v1087, %v1175
      %1177 = vmatmul.bf16.gmra.mxu0 %v573
      %v1178 = vpop.f32.mrf.mxu0
      %v1179 = vadd.f32 %v1090, %v1178
      %v1180 = vpop.f32.mrf.mxu0
      %v1181 = vadd.f32 %v1092, %v1180
      %1182 = vmatmul.bf16.gmra.mxu0 %v577
      %v1183 = vpop.f32.mrf.mxu0
      %v1184 = vadd.f32 %v1095, %v1183
      %v1185 = vpop.f32.mrf.mxu0
      %v1186 = vadd.f32 %v1097, %v1185
      %1187 = vmatmul.bf16.gmra.mxu0 %v581
      %v1188 = vpop.f32.mrf.mxu0
      %v1189 = vadd.f32 %v1100, %v1188
      %v1190 = vpop.f32.mrf.mxu0
      %v1191 = vadd.f32 %v1102, %v1190
      %1192 = vmatmul.bf16.gmra.mxu0 %v585
      %v1193 = vpop.f32.mrf.mxu0
      %v1194 = vadd.f32 %v1105, %v1193
      %v1195 = vpop.f32.mrf.mxu0
      %v1196 = vadd.f32 %v1107, %v1195
      %1197 = vdwg.mxu0
      %v1198 = vmax.f32 %v1119, %v1139
      %v1199 = vmax.f32 %v1121, %v1141
      %v1200 = vmax.f32 %v1124, %v1144
      %v1201 = vmax.f32 %v1126, %v1146
      %v1202 = vmax.f32 %v1129, %v1149
      %v1203 = vmax.f32 %v1131, %v1151
      %v1204 = vmax.f32 %v1134, %v1154
      %v1205 = vmax.f32 %v1136, %v1156
      %v1206 = vmax.f32 %v1159, %v1179
      %v1207 = vmax.f32 %v1161, %v1181
      %v1208 = vmax.f32 %v1164, %v1184
      %v1209 = vmax.f32 %v1166, %v1186
      %v1210 = vmax.f32 %v1169, %v1189
      %v1211 = vmax.f32 %v1171, %v1191
      %v1212 = vmax.f32 %v1174, %v1194
      %v1213 = vmax.f32 %v1176, %v1196
      %v1214 = vmax.f32 %v1198, %v1206
      %v1215 = vmax.f32 %v1199, %v1207
      %v1216 = vmax.f32 %v1200, %v1208
      %v1217 = vmax.f32 %v1201, %v1209
      %v1218 = vmax.f32 %v1202, %v1210
      %v1219 = vmax.f32 %v1203, %v1211
      %v1220 = vmax.f32 %v1204, %v1212
      %v1221 = vmax.f32 %v1205, %v1213
      %v1222 = vld [vmem:[%s2] sm:$0xff]
      %v1223 = vld [vmem:[%s2 + $0x8] sm:$0xff]
      %v1224 = vld [vmem:[%s2 + $0x10] sm:$0xff]
      %v1225 = vld [vmem:[%s2 + $0x18] sm:$0xff]
      %v1226 = vld [vmem:[%s2 + $0x20] sm:$0xff]
      %v1227 = vld [vmem:[%s2 + $0x28] sm:$0xff]
      %v1228 = vld [vmem:[%s2 + $0x30] sm:$0xff]
      %v1229 = vld [vmem:[%s2 + $0x38] sm:$0xff]
      %1231 = vset.pattern.permute.xlu0 0
      %1232 = vperm.xlu0 %1231, %v1222
      %v1233 = vpop.permute.xlu0 %1232
      %1236 = vset.pattern.permute.xlu0 0
      %1237 = vperm.xlu0 %1236, %v1223
      %v1238 = vpop.permute.xlu0 %1237
      %1241 = vset.pattern.permute.xlu0 0
      %1242 = vperm.xlu0 %1241, %v1224
      %v1243 = vpop.permute.xlu0 %1242
      %1246 = vset.pattern.permute.xlu0 0
      %1247 = vperm.xlu0 %1246, %v1225
      %v1248 = vpop.permute.xlu0 %1247
      %1251 = vset.pattern.permute.xlu0 0
      %1252 = vperm.xlu0 %1251, %v1226
      %v1253 = vpop.permute.xlu0 %1252
      %1256 = vset.pattern.permute.xlu0 0
      %1257 = vperm.xlu0 %1256, %v1227
      %v1258 = vpop.permute.xlu0 %1257
      %1261 = vset.pattern.permute.xlu0 0
      %1262 = vperm.xlu0 %1261, %v1228
      %v1263 = vpop.permute.xlu0 %1262
      %1266 = vset.pattern.permute.xlu0 0
      %1267 = vperm.xlu0 %1266, %v1229
      %v1268 = vpop.permute.xlu0 %1267
      %v1270 = vadd.f32 %v1214, %v1233
      %v1271 = vadd.f32 %v1215, %v1238
      %v1272 = vadd.f32 %v1216, %v1243
      %v1273 = vadd.f32 %v1217, %v1248
      %v1274 = vadd.f32 %v1218, %v1253
      %v1275 = vadd.f32 %v1219, %v1258
      %v1276 = vadd.f32 %v1220, %v1263
      %v1277 = vadd.f32 %v1221, %v1268
      %v1278 = vmax.f32 %v1270, 0.0
      %v1279 = vmax.f32 %v1271, 0.0
      %v1280 = vmax.f32 %v1272, 0.0
      %v1281 = vmax.f32 %v1273, 0.0
      %v1282 = vmax.f32 %v1274, 0.0
      %v1283 = vmax.f32 %v1275, 0.0
      %v1284 = vmax.f32 %v1276, 0.0
      %v1285 = vmax.f32 %v1277, 0.0
      %v1286 = vpack.c.bf16 %v1278, %v1278
      %v1287 = vpack.c.bf16 %v1279, %v1279
      %v1288 = vpack.c.bf16 %v1280, %v1280
      %v1289 = vpack.c.bf16 %v1281, %v1281
      %v1290 = vpack.c.bf16 %v1282, %v1282
      %v1291 = vpack.c.bf16 %v1283, %v1283
      %v1292 = vpack.c.bf16 %v1284, %v1284
      %v1293 = vpack.c.bf16 %v1285, %v1285
      %vm1294 = vcmask 519168
      %1295 = vst.msk [vmem:[%s201] sm:$0xf] %vm1294, %v1286
      %1296 = vst.msk [vmem:[%s201 + $0x4] sm:$0xf] %vm1294, %v1287
      %1297 = vst.msk [vmem:[%s201 + $0x8] sm:$0xf] %vm1294, %v1288
      %1298 = vst.msk [vmem:[%s201 + $0xc] sm:$0xf] %vm1294, %v1289
      %1299 = vst.msk [vmem:[%s201 + $0x10] sm:$0xf] %vm1294, %v1290
      %1300 = vst.msk [vmem:[%s201 + $0x14] sm:$0xf] %vm1294, %v1291
      %1301 = vst.msk [vmem:[%s201 + $0x18] sm:$0xf] %vm1294, %v1292
      %1302 = vst.msk [vmem:[%s201 + $0x1c] sm:$0xf] %vm1294, %v1293
      %p1303 = scmp.lt.s32.totalorder %s18, 1
      %s1304 = scalar_select %p1303, %s18, 1
      %p1305 = scmp.lt.s32.totalorder %s19, 0
      %s1306 = scalar_select %p1305, %s19, 0
      %s1307 = smul.addr %s1304, 8
      %s1308 = sadd.s32 %s1306, %s1307
      %s1309 = smul.addr %s1308, 4
      %s1310 = scalar_lea.vmem %s3, %s1309
      // Predicated region
      $region33: #{model_forward.9} parent=31 // pred_check
        %p1311 = pneg %p116
      $region34: #{model_forward.9} parent=31 // pred_check_branch
        %1313 = sbr.rel (%p1311) target = $region36
      $region35: #{model_forward.9} parent=31 // pred_region
        _
      $region36: #{model_forward.9} parent=31 // pred_fallthru
        _
    $region32: #{model_forward.9} parent=5 // pred_fallthru
      _
    %p1314 = scmp.le.s32.totalorder 2, %s9
    // Predicated region
    $region37: #{model_forward.9} parent=5 // pred_check
      %p1315 = pneg %p1314
    $region38: #{model_forward.9} parent=5 // pred_check_branch
      %1317 = sbr.rel (%p1315) target = $region40
    $region39: #{model_forward.9} parent=5 // pred_region
      %s1318 = ssub.s32 %s9, 2
      // Predicated region
      $region41: #{model_forward.9} parent=39 // pred_check
        %p1319 = pneg %p122
      $region42: #{model_forward.9} parent=39 // pred_check_branch
        %1321 = sbr.rel (%p1319) target = $region44
      $region43: #{model_forward.9} parent=39 // pred_region
        %p1322 = scmp.lt.s32.totalorder %s20, 1
        %s1323 = scalar_select %p1322, %s20, 1
        %p1324 = scmp.lt.s32.totalorder %s21, 0
        %s1325 = scalar_select %p1324, %s21, 0
        %s1326 = smul.addr %s1323, 8
        %s1327 = sadd.s32 %s1325, %s1326
        %s1328 = smul.addr %s1327, 4
        %s1329 = scalar_lea.vmem %s3, %s1328
      $region44: #{model_forward.9} parent=39 // pred_fallthru
        _
    $region40: #{model_forward.9} parent=5 // pred_fallthru
      _
  $region6: #{model_forward.9} parent=0 // loop_footer
    %s13 = sadd.s32 1, %s9
  $region7: #{model_forward.9} parent=0 // loop_footer_branch
    %8 = sbr.rel target = $region3
  $region8: #{model_forward.9} parent=0 // loop_exit
    _

// kernel: model_forward.11
$region0: #{model_forward.11}
  #allocation0 [shape = 'u32[]', space=smem, size = 0x4, offset = 0x4, fixed_abs, tag = 'smem constant byte address 0x4 - core index']
  #allocation1 [shape = 'u32[72,128]{1,0:T(1,128)}', space=vmem, size = 0x9000, scoped, tag = 'internal scratch']
  %s0 = inlined_call_operand.vmem [shape: f32[2,2,128], index: 0, kind: input, shape index: {}]
  %s1 = inlined_call_operand.vmem [shape: f32[1,128], index: 1, kind: input, shape index: {}]
  %s2 = inlined_call_operand.vmem [shape: f32[128,128], index: 2, kind: input, shape index: {}]
  %s3 = inlined_call_operand.vmem [shape: f32[1,128], index: 3, kind: input, shape index: {}]
  %s4 = inlined_call_operand.vmem [shape: f32[128,256], index: 4, kind: input, shape index: {}]
  %s5 = inlined_call_operand.vmem [shape: f32[1,256], index: 5, kind: input, shape index: {}]
  %s6 = inlined_call_operand.vmem [shape: f32[256,4], index: 6, kind: input, shape index: {}]
  %s7 = inlined_call_operand.vmem [shape: f32[1,4], index: 7, kind: input, shape index: {}]
  %s8 = inlined_call_operand.hbm [shape: f32[2,4], index: 8, kind: output, shape index: {}]
  %s9 = sld [smem:[#allocation0]]
  $region42: #{model_forward.11} parent=0
    _
  %s11 = ssub.s32 1, %s9
  %s12 = scalar_select 0, %s11, %s9
  $region1: #{model_forward.11} parent=0
    #allocation2 [shape = 'u8[1024]{0}', space=vmem, size = 0x400, scoped, tag = 'output window, operand 0, single buffered']
    #allocation3 [shape = 's32[1]{0}', space=sflag, size = 0x4, scoped, tag = 'scoped memory for model_forward.11']
    %13 = vsyncpa [#allocation3], 0
    // Predicated region
    $region2: #{model_forward.11} parent=1 // pred_check
      _
    $region3: #{model_forward.11} parent=1 // pred_check_branch
      %15 = sbr.rel (0) target = $region5
    $region4: #{model_forward.11} parent=1 // pred_region
      _
    $region5: #{model_forward.11} parent=1 // pred_fallthru
      _
    // Predicated region
    $region6: #{model_forward.11} parent=1 // pred_check
      _
    $region7: #{model_forward.11} parent=1 // pred_check_branch
      %17 = sbr.rel (0) target = $region9
    $region8: #{model_forward.11} parent=1 // pred_region
      _
    $region9: #{model_forward.11} parent=1 // pred_fallthru
      _
    // Predicated region
    $region10: #{model_forward.11} parent=1 // pred_check
      _
    $region11: #{model_forward.11} parent=1 // pred_check_branch
      %19 = sbr.rel (0) target = $region13
    $region12: #{model_forward.11} parent=1 // pred_region
      _
    $region13: #{model_forward.11} parent=1 // pred_fallthru
      _
    // Predicated region
    $region14: #{model_forward.11} parent=1 // pred_check
      _
    $region15: #{model_forward.11} parent=1 // pred_check_branch
      %21 = sbr.rel (0) target = $region17
    $region16: #{model_forward.11} parent=1 // pred_region
      _
    $region17: #{model_forward.11} parent=1 // pred_fallthru
      _
    // Predicated region
    $region18: #{model_forward.11} parent=1 // pred_check
      _
    $region19: #{model_forward.11} parent=1 // pred_check_branch
      %23 = sbr.rel (0) target = $region21
    $region20: #{model_forward.11} parent=1 // pred_region
      _
    $region21: #{model_forward.11} parent=1 // pred_fallthru
      _
    // Predicated region
    $region22: #{model_forward.11} parent=1 // pred_check
      _
    $region23: #{model_forward.11} parent=1 // pred_check_branch
      %25 = sbr.rel (0) target = $region25
    $region24: #{model_forward.11} parent=1 // pred_region
      _
    $region25: #{model_forward.11} parent=1 // pred_fallthru
      _
    // Predicated region
    $region26: #{model_forward.11} parent=1 // pred_check
      _
    $region27: #{model_forward.11} parent=1 // pred_check_branch
      %27 = sbr.rel (0) target = $region29
    $region28: #{model_forward.11} parent=1 // pred_region
      _
    $region29: #{model_forward.11} parent=1 // pred_fallthru
      _
    // Predicated region
    $region30: #{model_forward.11} parent=1 // pred_check
      _
    $region31: #{model_forward.11} parent=1 // pred_check_branch
      %29 = sbr.rel (0) target = $region33
    $region32: #{model_forward.11} parent=1 // pred_region
      _
    $region33: #{model_forward.11} parent=1 // pred_fallthru
      _
    %v30 = vld [vmem:[%s0] sm:$0x3]
    %s31 = scalar_lea.vmem %s0, 2
    %v32 = vld [vmem:[%s31] sm:$0x3]
    %v33 = vadd.f32 %v30, %v32
    %v34 = vld [vmem:[%s1] sm:$0x1]
    %v36 = vperm.slane %v34, 0
    %v38 = vadd.f32 %v33, %v36
    %v39 = vmax.f32 %v38, 0.0
    %v40 = vld [vmem:[%s2] sm:$0xff]
    %v41 = vld [vmem:[%s2 + $0x8] sm:$0xff]
    %v42 = vld [vmem:[%s2 + $0x10] sm:$0xff]
    %v43 = vld [vmem:[%s2 + $0x18] sm:$0xff]
    %v44 = vld [vmem:[%s2 + $0x20] sm:$0xff]
    %v45 = vld [vmem:[%s2 + $0x28] sm:$0xff]
    %v46 = vld [vmem:[%s2 + $0x30] sm:$0xff]
    %v47 = vld [vmem:[%s2 + $0x38] sm:$0xff]
    %v48 = vld [vmem:[%s2 + $0x40] sm:$0xff]
    %v49 = vld [vmem:[%s2 + $0x48] sm:$0xff]
    %v50 = vld [vmem:[%s2 + $0x50] sm:$0xff]
    %v51 = vld [vmem:[%s2 + $0x58] sm:$0xff]
    %v52 = vld [vmem:[%s2 + $0x60] sm:$0xff]
    %v53 = vld [vmem:[%s2 + $0x68] sm:$0xff]
    %v54 = vld [vmem:[%s2 + $0x70] sm:$0xff]
    %v55 = vld [vmem:[%s2 + $0x78] sm:$0xff]
    %v56 = vld [vmem:[%s3] sm:$0x1]
    %v58 = vperm.slane %v56, 0
    %60 = vmatpush.msra.mxu0 %v55
    %61 = vmatpush.msra.mxu0 %v54
    %62 = vmatpush.msra.mxu0 %v53
    %63 = vmatpush.msra.mxu0 %v52
    %64 = vmatpush.msra.mxu0 %v51
    %65 = vmatpush.msra.mxu0 %v50
    %66 = vmatpush.msra.mxu0 %v49
    %67 = vmatpush.msra.mxu0 %v48
    %68 = vmatpush.msra.mxu0 %v47
    %69 = vmatpush.msra.mxu0 %v46
    %70 = vmatpush.msra.mxu0 %v45
    %71 = vmatpush.msra.mxu0 %v44
    %72 = vmatpush.msra.mxu0 %v43
    %73 = vmatpush.msra.mxu0 %v42
    %74 = vmatpush.msra.mxu0 %v41
    %75 = vmatpush.msra.mxu0 %v40
    %76 = vmatmul.f32.gmra.mxu0 %v39
    %v77 = vpop.f32.mrf.mxu0
    %v78 = vadd.f32 %v58, %v77
    %79 = vdwg.mxu0
    %v80 = vmax.f32 %v78, 0.0
    %v81 = vld [vmem:[%s4] sm:$0xff]
    %v82 = vld [vmem:[%s4 + $0x8] sm:$0xff]
    %v83 = vld [vmem:[%s4 + $0x10] sm:$0xff]
    %v84 = vld [vmem:[%s4 + $0x18] sm:$0xff]
    %v85 = vld [vmem:[%s4 + $0x20] sm:$0xff]
    %v86 = vld [vmem:[%s4 + $0x28] sm:$0xff]
    %v87 = vld [vmem:[%s4 + $0x30] sm:$0xff]
    %v88 = vld [vmem:[%s4 + $0x38] sm:$0xff]
    %v89 = vld [vmem:[%s4 + $0x40] sm:$0xff]
    %v90 = vld [vmem:[%s4 + $0x48] sm:$0xff]
    %v91 = vld [vmem:[%s4 + $0x50] sm:$0xff]
    %v92 = vld [vmem:[%s4 + $0x58] sm:$0xff]
    %v93 = vld [vmem:[%s4 + $0x60] sm:$0xff]
    %v94 = vld [vmem:[%s4 + $0x68] sm:$0xff]
    %v95 = vld [vmem:[%s4 + $0x70] sm:$0xff]
    %v96 = vld [vmem:[%s4 + $0x78] sm:$0xff]
    %v97 = vld [vmem:[%s4 + $0x80] sm:$0xff]
    %v98 = vld [vmem:[%s4 + $0x88] sm:$0xff]
    %v99 = vld [vmem:[%s4 + $0x90] sm:$0xff]
    %v100 = vld [vmem:[%s4 + $0x98] sm:$0xff]
    %v101 = vld [vmem:[%s4 + $0xa0] sm:$0xff]
    %v102 = vld [vmem:[%s4 + $0xa8] sm:$0xff]
    %v103 = vld [vmem:[%s4 + $0xb0] sm:$0xff]
    %v104 = vld [vmem:[%s4 + $0xb8] sm:$0xff]
    %v105 = vld [vmem:[%s4 + $0xc0] sm:$0xff]
    %v106 = vld [vmem:[%s4 + $0xc8] sm:$0xff]
    %v107 = vld [vmem:[%s4 + $0xd0] sm:$0xff]
    %v108 = vld [vmem:[%s4 + $0xd8] sm:$0xff]
    %v109 = vld [vmem:[%s4 + $0xe0] sm:$0xff]
    %v110 = vld [vmem:[%s4 + $0xe8] sm:$0xff]
    %v111 = vld [vmem:[%s4 + $0xf0] sm:$0xff]
    %v112 = vld [vmem:[%s4 + $0xf8] sm:$0xff]
    %v113 = vld [vmem:[%s5] sm:$0x3]
    %v115 = vperm.slane %v113, 0
    %v116 = vperm.slane %v113, 1
    %119 = vmatpush.msra.mxu0 %v111
    %120 = vmatpush.msra.mxu0 %v109
    %121 = vmatpush.msra.mxu0 %v107
    %122 = vmatpush.msra.mxu0 %v105
    %123 = vmatpush.msra.mxu0 %v103
    %124 = vmatpush.msra.mxu0 %v101
    %125 = vmatpush.msra.mxu0 %v99
    %126 = vmatpush.msra.mxu0 %v97
    %127 = vmatpush.msra.mxu0 %v95
    %128 = vmatpush.msra.mxu0 %v93
    %129 = vmatpush.msra.mxu0 %v91
    %130 = vmatpush.msra.mxu0 %v89
    %131 = vmatpush.msra.mxu0 %v87
    %132 = vmatpush.msra.mxu0 %v85
    %133 = vmatpush.msra.mxu0 %v83
    %134 = vmatpush.msra.mxu0 %v81
    %135 = vmatmul.f32.gmra.mxu0 %v80
    %v136 = vpop.f32.mrf.mxu0
    %v137 = vadd.f32 %v115, %v136
    %138 = vdwg.mxu0
    %139 = vmatpush.msra.mxu0 %v112
    %140 = vmatpush.msra.mxu0 %v110
    %141 = vmatpush.msra.mxu0 %v108
    %142 = vmatpush.msra.mxu0 %v106
    %143 = vmatpush.msra.mxu0 %v104
    %144 = vmatpush.msra.mxu0 %v102
    %145 = vmatpush.msra.mxu0 %v100
    %146 = vmatpush.msra.mxu0 %v98
    %147 = vmatpush.msra.mxu0 %v96
    %148 = vmatpush.msra.mxu0 %v94
    %149 = vmatpush.msra.mxu0 %v92
    %150 = vmatpush.msra.mxu0 %v90
    %151 = vmatpush.msra.mxu0 %v88
    %152 = vmatpush.msra.mxu0 %v86
    %153 = vmatpush.msra.mxu0 %v84
    %154 = vmatpush.msra.mxu0 %v82
    %155 = vmatmul.f32.gmra.mxu0 %v80
    %v156 = vpop.f32.mrf.mxu0
    %v157 = vadd.f32 %v116, %v156
    %158 = vdwg.mxu0
    %v159 = vmax.f32 %v137, 0.0
    %v160 = vmax.f32 %v157, 0.0
    %v161 = vld [vmem:[%s6] sm:$0xff]
    %v162 = vld [vmem:[%s6 + $0x8] sm:$0xff]
    %v163 = vld [vmem:[%s6 + $0x10] sm:$0xff]
    %v164 = vld [vmem:[%s6 + $0x18] sm:$0xff]
    %v165 = vld [vmem:[%s6 + $0x20] sm:$0xff]
    %v166 = vld [vmem:[%s6 + $0x28] sm:$0xff]
    %v167 = vld [vmem:[%s6 + $0x30] sm:$0xff]
    %v168 = vld [vmem:[%s6 + $0x38] sm:$0xff]
    %v169 = vld [vmem:[%s6 + $0x40] sm:$0xff]
    %v170 = vld [vmem:[%s6 + $0x48] sm:$0xff]
    %v171 = vld [vmem:[%s6 + $0x50] sm:$0xff]
    %v172 = vld [vmem:[%s6 + $0x58] sm:$0xff]
    %v173 = vld [vmem:[%s6 + $0x60] sm:$0xff]
    %v174 = vld [vmem:[%s6 + $0x68] sm:$0xff]
    %v175 = vld [vmem:[%s6 + $0x70] sm:$0xff]
    %v176 = vld [vmem:[%s6 + $0x78] sm:$0xff]
    %v177 = vld [vmem:[%s6 + $0x80] sm:$0xff]
    %v178 = vld [vmem:[%s6 + $0x88] sm:$0xff]
    %v179 = vld [vmem:[%s6 + $0x90] sm:$0xff]
    %v180 = vld [vmem:[%s6 + $0x98] sm:$0xff]
    %v181 = vld [vmem:[%s6 + $0xa0] sm:$0xff]
    %v182 = vld [vmem:[%s6 + $0xa8] sm:$0xff]
    %v183 = vld [vmem:[%s6 + $0xb0] sm:$0xff]
    %v184 = vld [vmem:[%s6 + $0xb8] sm:$0xff]
    %v185 = vld [vmem:[%s6 + $0xc0] sm:$0xff]
    %v186 = vld [vmem:[%s6 + $0xc8] sm:$0xff]
    %v187 = vld [vmem:[%s6 + $0xd0] sm:$0xff]
    %v188 = vld [vmem:[%s6 + $0xd8] sm:$0xff]
    %v189 = vld [vmem:[%s6 + $0xe0] sm:$0xff]
    %v190 = vld [vmem:[%s6 + $0xe8] sm:$0xff]
    %v191 = vld [vmem:[%s6 + $0xf0] sm:$0xff]
    %v192 = vld [vmem:[%s6 + $0xf8] sm:$0xff]
    %v193 = vld [vmem:[%s7] sm:$0x1]
    %v195 = vperm.slane %v193, 0
    %197 = vmatpush.msra.mxu0 %v176
    %198 = vmatpush.msra.mxu0 %v175
    %199 = vmatpush.msra.mxu0 %v174
    %200 = vmatpush.msra.mxu0 %v173
    %201 = vmatpush.msra.mxu0 %v172
    %202 = vmatpush.msra.mxu0 %v171
    %203 = vmatpush.msra.mxu0 %v170
    %204 = vmatpush.msra.mxu0 %v169
    %205 = vmatpush.msra.mxu0 %v168
    %206 = vmatpush.msra.mxu0 %v167
    %207 = vmatpush.msra.mxu0 %v166
    %208 = vmatpush.msra.mxu0 %v165
    %209 = vmatpush.msra.mxu0 %v164
    %210 = vmatpush.msra.mxu0 %v163
    %211 = vmatpush.msra.mxu0 %v162
    %212 = vmatpush.msra.mxu0 %v161
    %213 = vmatmul.f32.gmra.mxu0 %v159
    %v214 = vpop.f32.mrf.mxu0
    %v215 = vadd.f32 %v195, %v214
    %216 = vdwg.mxu0
    %217 = vmatpush.msra.mxu0 %v192
    %218 = vmatpush.msra.mxu0 %v191
    %219 = vmatpush.msra.mxu0 %v190
    %220 = vmatpush.msra.mxu0 %v189
    %221 = vmatpush.msra.mxu0 %v188
    %222 = vmatpush.msra.mxu0 %v187
    %223 = vmatpush.msra.mxu0 %v186
    %224 = vmatpush.msra.mxu0 %v185
    %225 = vmatpush.msra.mxu0 %v184
    %226 = vmatpush.msra.mxu0 %v183
    %227 = vmatpush.msra.mxu0 %v182
    %228 = vmatpush.msra.mxu0 %v181
    %229 = vmatpush.msra.mxu0 %v180
    %230 = vmatpush.msra.mxu0 %v179
    %231 = vmatpush.msra.mxu0 %v178
    %232 = vmatpush.msra.mxu0 %v177
    %233 = vmatmul.f32.gmra.mxu0 %v160
    %v234 = vpop.f32.mrf.mxu0
    %v235 = vadd.f32 %v215, %v234
    %236 = vdwg.mxu0
    %vm237 = vcmask 25600
    %238 = vst.msk [vmem:[#allocation2] sm:$0x3] %vm237, %v235
    // Predicated region
    $region34: #{model_forward.11} parent=1 // pred_check
      _
    $region35: #{model_forward.11} parent=1 // pred_check_branch
      %240 = sbr.rel (0) target = $region37
    $region36: #{model_forward.11} parent=1 // pred_region
      %242 = vsyncadd [#allocation3], 0
      %s244 = sshll.u32 [#allocation2], 4
      %s245 = int_to_ptr.vmem [resolvable:$true] %s244
      %s246 = sshll.u32 %s8, 4
      %s247 = int_to_ptr.hbm [resolvable:$true] %s246
      %249 = dma.vmem_to_hbm [thread:$0]  %s245, 32, %s247, [#allocation3]
    $region37: #{model_forward.11} parent=1 // pred_fallthru
      _
    // Predicated region
    $region38: #{model_forward.11} parent=1 // pred_check
      _
    $region39: #{model_forward.11} parent=1 // pred_check_branch
      %251 = sbr.rel (0) target = $region41
    $region40: #{model_forward.11} parent=1 // pred_region
      %253 = dma.done [#allocation3], 32
    $region41: #{model_forward.11} parent=1 // pred_fallthru
      _
    %254 = vsyncpa [#allocation3], 1

// kernel: model_forward.10
$region0: #{model_forward.10}
  #allocation0 [shape = 'u32[]', space=smem, size = 0x4, offset = 0x4, fixed_abs, tag = 'smem constant byte address 0x4 - core index']
  #allocation1 [shape = 'u32[72,128]{1,0:T(1,128)}', space=vmem, size = 0x9000, scoped, tag = 'internal scratch']
  #allocation2 [shape = 'f32[2,128]{1,0:T(2,128)}', space=vmem, size = 0x400, scoped, tag = 'scratch operand']
  %s0 = inlined_call_operand.vmem [shape: bf16[2,4096], index: 0, kind: input, shape index: {}]
  %s1 = inlined_call_operand.vmem [shape: bf16[4096,128], index: 1, kind: input, shape index: {}]
  %s2 = inlined_call_operand.vmem [shape: f32[2,2,128], index: 2, kind: output, shape index: {}]
  %s3 = sld [smem:[#allocation0]]
  $region49: #{model_forward.10} parent=0
    _
  %s5 = ssub.s32 1, %s3
  %s6 = scalar_select 0, %s5, %s3
  loop: start=0, step=1, limit=4
  $region2: #{model_forward.10} parent=0 // loop_pre_header
    _
  $region3: #{model_forward.10} parent=0 // loop_header
    %s8 = sphi 0, %s12
    %p9 = scmp.ge.s32.totalorder %s8, 4
    %s15 = sphi 0, %s27
    %s16 = sphi 0, %s23
    %s17 = sphi 0, %s15
    %s18 = sphi 0, %s16
    %s19 = sphi 0, %s17
    %s20 = sphi 0, %s18
    %s32 = sphi 0, %s34
    %s35 = sphi 0, %s32
    %s36 = sphi 0, %s35
    %s52 = sphi 0, %s36
    %s60 = sphi 0, %s62
    %s63 = sphi 0, %s60
    %s64 = sphi 0, %s63
    %s80 = sphi 0, %s64
    %s86 = sphi 0, %s88
    %s89 = sphi 0, %s86
    %s90 = sphi 0, %s89
    %s106 = sphi 0, %s90
  $region4: #{model_forward.10} parent=0 // loop_header_branch
    %11 = sbr.rel (%p9) target = $region8
  $region5: #{model_forward.10} parent=0 // loop_body
    %s13 = ssub.s32 %s8, 1
    %s14 = ssub.s32 %s8, 2
    %s21 = sadd.s32 1, %s16
    %p22 = scmp.ge.s32.totalorder %s21, 1
    %s23 = scalar_select %p22, 0, %s21
    %s24 = sadd.s32 1, %s15
    %s25 = scalar_select %p22, %s24, %s15
    %p26 = scmp.ge.s32.totalorder %s25, 2
    %s27 = scalar_select %p26, 0, %s25
    %s28 = sadd.s32 %s15, %s16
    %s29 = sadd.s32 %s27, %s23
    %s30 = ssub.s32 %s28, %s29
    %p31 = scmp.eq.s32.totalorder %s30, 0
    %s33 = sadd.s32 %s32, 1
    %s34 = scalar_select %p31, %s32, %s33
    %p37 = pneg %p31
    %p38 = scmp.eq.s32.totalorder %s8, 1
    %p39 = por %p37, %p38
    %p40 = scmp.ne.s32.totalorder %s32, %s35
    %p41 = scmp.eq.s32.totalorder %s8, 0
    %p42 = por %p40, %p41
    %p43 = scmp.ne.s32.totalorder %s32, %s35
    %p44 = scmp.eq.s32.totalorder %s13, 1
    %p45 = por %p43, %p44
    %p46 = scmp.ne.s32.totalorder %s35, %s36
    %p47 = scmp.eq.s32.totalorder %s13, 0
    %p48 = por %p46, %p47
    %p49 = scmp.ne.s32.totalorder %s35, %s36
    %p50 = scmp.eq.s32.totalorder %s14, 1
    %p51 = por %p49, %p50
    %p53 = scmp.ne.s32.totalorder %s36, %s52
    %p54 = scmp.eq.s32.totalorder %s14, 0
    %p55 = por %p53, %p54
    %s56 = sadd.s32 %s15, %s16
    %s57 = sadd.s32 %s27, %s23
    %s58 = ssub.s32 %s56, %s57
    %p59 = scmp.eq.s32.totalorder %s58, 0
    %s61 = sadd.s32 %s60, 1
    %s62 = scalar_select %p59, %s60, %s61
    %p65 = pneg %p59
    %p66 = scmp.eq.s32.totalorder %s8, 1
    %p67 = por %p65, %p66
    %p68 = scmp.ne.s32.totalorder %s60, %s63
    %p69 = scmp.eq.s32.totalorder %s8, 0
    %p70 = por %p68, %p69
    %p71 = scmp.ne.s32.totalorder %s60, %s63
    %p72 = scmp.eq.s32.totalorder %s13, 1
    %p73 = por %p71, %p72
    %p74 = scmp.ne.s32.totalorder %s63, %s64
    %p75 = scmp.eq.s32.totalorder %s13, 0
    %p76 = por %p74, %p75
    %p77 = scmp.ne.s32.totalorder %s63, %s64
    %p78 = scmp.eq.s32.totalorder %s14, 1
    %p79 = por %p77, %p78
    %p81 = scmp.ne.s32.totalorder %s64, %s80
    %p82 = scmp.eq.s32.totalorder %s14, 0
    %p83 = por %p81, %p82
    %s84 = ssub.s32 %s15, %s27
    %p85 = scmp.eq.s32.totalorder %s84, 0
    %s87 = sadd.s32 %s86, 1
    %s88 = scalar_select %p85, %s86, %s87
    %p91 = pneg %p85
    %p92 = scmp.eq.s32.totalorder %s8, 1
    %p93 = por %p91, %p92
    %p94 = scmp.ne.s32.totalorder %s86, %s89
    %p95 = scmp.eq.s32.totalorder %s8, 0
    %p96 = por %p94, %p95
    %p97 = scmp.ne.s32.totalorder %s86, %s89
    %p98 = scmp.eq.s32.totalorder %s13, 1
    %p99 = por %p97, %p98
    %p100 = scmp.ne.s32.totalorder %s89, %s90
    %p101 = scmp.eq.s32.totalorder %s13, 0
    %p102 = por %p100, %p101
    %p103 = scmp.ne.s32.totalorder %s89, %s90
    %p104 = scmp.eq.s32.totalorder %s14, 1
    %p105 = por %p103, %p104
    %p107 = scmp.ne.s32.totalorder %s90, %s106
    %p108 = scmp.eq.s32.totalorder %s14, 0
    %p109 = por %p107, %p108
    %p110 = scmp.le.s32.totalorder 1, %s8
    %p111 = scmp.lt.s32.totalorder %s8, 3
    %p112 = pnand %p110, %p111
    %p113 = pneg %p112
    // Predicated region
    $region9: #{model_forward.10} parent=5 // pred_check
      _
    $region10: #{model_forward.10} parent=5 // pred_check_branch
      %115 = sbr.rel (%p112) target = $region12
    $region11: #{model_forward.10} parent=5 // pred_region
      %s116 = ssub.s32 %s8, 1
    $region12: #{model_forward.10} parent=5 // pred_fallthru
      _
    %p117 = scmp.lt.s32.totalorder %s8, 2
    // Predicated region
    $region13: #{model_forward.10} parent=5 // pred_check
      %p118 = pneg %p117
    $region14: #{model_forward.10} parent=5 // pred_check_branch
      %120 = sbr.rel (%p118) target = $region16
    $region15: #{model_forward.10} parent=5 // pred_region
      // Predicated region
      $region17: #{model_forward.10} parent=15 // pred_check
        %p121 = pneg %p42
      $region18: #{model_forward.10} parent=15 // pred_check_branch
        %123 = sbr.rel (%p121) target = $region20
      $region19: #{model_forward.10} parent=15 // pred_region
        %s124 = sadd.s32 %s15, %s16
        %s125 = smul.u32 16, %s124
        %p126 = scmp.lt.s32.totalorder %s125, 31
        %s127 = scalar_select %p126, %s125, 31
        %s128 = scalar_lea.vmem %s0, %s127
        %s129 = sadd.s32 %s15, %s16
        %s130 = smul.u32 16, %s129
      $region20: #{model_forward.10} parent=15 // pred_fallthru
        _
      // Predicated region
      $region21: #{model_forward.10} parent=15 // pred_check
        %p131 = pneg %p70
      $region22: #{model_forward.10} parent=15 // pred_check_branch
        %133 = sbr.rel (%p131) target = $region24
      $region23: #{model_forward.10} parent=15 // pred_region
        %s134 = sadd.s32 %s15, %s16
        %s135 = smul.u32 256, %s134
        %p136 = scmp.lt.s32.totalorder %s135, 511
        %s137 = scalar_select %p136, %s135, 511
        %s138 = smul.addr %s137, 4
        %s139 = scalar_lea.vmem %s1, %s138
        %s140 = sadd.s32 %s15, %s16
        %s141 = smul.u32 256, %s140
      $region24: #{model_forward.10} parent=15 // pred_fallthru
        _
    $region16: #{model_forward.10} parent=5 // pred_fallthru
      _
    %p142 = scmp.le.s32.totalorder 1, %s8
    %p143 = scmp.lt.s32.totalorder %s8, 3
    %p144 = pnand %p142, %p143
    %p145 = pneg %p144
    // Predicated region
    $region25: #{model_forward.10} parent=5 // pred_check
      _
    $region26: #{model_forward.10} parent=5 // pred_check_branch
      %147 = sbr.rel (%p144) target = $region28
    $region27: #{model_forward.10} parent=5 // pred_region
      %s148 = ssub.s32 %s8, 1
      %s149 = sadd.s32 %s17, %s18
      %s150 = smul.u32 16, %s149
      %p151 = scmp.lt.s32.totalorder %s150, 31
      %s152 = scalar_select %p151, %s150, 31
      %s153 = scalar_lea.vmem %s0, %s152
      %p154 = pneg %p48
      %p155 = pneg %p45
      %s156 = sadd.s32 %s17, %s18
      %s157 = smul.u32 256, %s156
      %p158 = scmp.lt.s32.totalorder %s157, 511
      %s159 = scalar_select %p158, %s157, 511
      %s160 = smul.addr %s159, 4
      %s161 = scalar_lea.vmem %s1, %s160
      %p162 = pneg %p76
      %p163 = pneg %p73
      %p164 = pneg %p102
      %p165 = pneg %p99
      %p166 = scmp.lt.s32.totalorder %s17, 1
      %s167 = scalar_select %p166, %s17, 1
      %s168 = smul.addr %s167, 2
      %s169 = scalar_lea.vmem %s2, %s168
      %s170 = sadd.s32 %s17, %s18
      %s171 = smul.u32 16, %s170
      %p172 = scmp.lt.s32.totalorder %s171, 31
      %s173 = scalar_select %p172, %s171, 31
      %s174 = scalar_lea.vmem %s0, %s173
      %s175 = sadd.s32 %s17, %s18
      %s176 = smul.u32 16, %s175
      %s177 = sadd.s32 %s17, %s18
      %s178 = smul.u32 256, %s177
      %p179 = scmp.lt.s32.totalorder %s178, 511
      %s180 = scalar_select %p179, %s178, 511
      %s181 = smul.addr %s180, 4
      %s182 = scalar_lea.vmem %s1, %s181
      %s183 = sadd.s32 %s17, %s18
      %s184 = smul.u32 256, %s183
      %p185 = scmp.lt.s32.totalorder %s17, 1
      %s186 = scalar_select %p185, %s17, 1
      %s187 = smul.addr %s186, 2
      %s188 = scalar_lea.vmem %s2, %s187
      %p189 = scmp.eq.s32.totalorder %s18, 0
      // Predicated region
      $region29: #{model_forward.10} parent=27 // pred_check
        %p190 = pneg %p189
      $region30: #{model_forward.10} parent=27 // pred_check_branch
        %192 = sbr.rel (%p190) target = $region32
      $region31: #{model_forward.10} parent=27 // pred_region
        %193 = vst [vmem:[#allocation2] sm:$0x3] 0.0
      $region32: #{model_forward.10} parent=27 // pred_fallthru
        _
      %v194 = vld [vmem:[#allocation2] sm:$0x3]
      %v195 = vld [vmem:[%s174] sm:$0xff]
      %v196 = vld [vmem:[%s174 + $0x8] sm:$0xff]
      %v197 = vld [vmem:[%s182] sm:$0xf]
      %v198 = vld [vmem:[%s182 + $0x4] sm:$0xf]
      %v199 = vld [vmem:[%s182 + $0x8] sm:$0xf]
      %v200 = vld [vmem:[%s182 + $0xc] sm:$0xf]
      %v201 = vld [vmem:[%s182 + $0x10] sm:$0xf]
      %v202 = vld [vmem:[%s182 + $0x14] sm:$0xf]
      %v203 = vld [vmem:[%s182 + $0x18] sm:$0xf]
      %v204 = vld [vmem:[%s182 + $0x1c] sm:$0xf]
      %v205 = vld [vmem:[%s182 + $0x20] sm:$0xf]
      %v206 = vld [vmem:[%s182 + $0x24] sm:$0xf]
      %v207 = vld [vmem:[%s182 + $0x28] sm:$0xf]
      %v208 = vld [vmem:[%s182 + $0x2c] sm:$0xf]
      %v209 = vld [vmem:[%s182 + $0x30] sm:$0xf]
      %v210 = vld [vmem:[%s182 + $0x34] sm:$0xf]
      %v211 = vld [vmem:[%s182 + $0x38] sm:$0xf]
      %v212 = vld [vmem:[%s182 + $0x3c] sm:$0xf]
      %v213 = vld [vmem:[%s182 + $0x40] sm:$0xf]
      %v214 = vld [vmem:[%s182 + $0x44] sm:$0xf]
      %v215 = vld [vmem:[%s182 + $0x48] sm:$0xf]
      %v216 = vld [vmem:[%s182 + $0x4c] sm:$0xf]
      %v217 = vld [vmem:[%s182 + $0x50] sm:$0xf]
      %v218 = vld [vmem:[%s182 + $0x54] sm:$0xf]
      %v219 = vld [vmem:[%s182 + $0x58] sm:$0xf]
      %v220 = vld [vmem:[%s182 + $0x5c] sm:$0xf]
      %v221 = vld [vmem:[%s182 + $0x60] sm:$0xf]
      %v222 = vld [vmem:[%s182 + $0x64] sm:$0xf]
      %v223 = vld [vmem:[%s182 + $0x68] sm:$0xf]
      %v224 = vld [vmem:[%s182 + $0x6c] sm:$0xf]
      %v225 = vld [vmem:[%s182 + $0x70] sm:$0xf]
      %v226 = vld [vmem:[%s182 + $0x74] sm:$0xf]
      %v227 = vld [vmem:[%s182 + $0x78] sm:$0xf]
      %v228 = vld [vmem:[%s182 + $0x7c] sm:$0xf]
      %v229 = vld [vmem:[%s182 + $0x80] sm:$0xf]
      %v230 = vld [vmem:[%s182 + $0x84] sm:$0xf]
      %v231 = vld [vmem:[%s182 + $0x88] sm:$0xf]
      %v232 = vld [vmem:[%s182 + $0x8c] sm:$0xf]
      %v233 = vld [vmem:[%s182 + $0x90] sm:$0xf]
      %v234 = vld [vmem:[%s182 + $0x94] sm:$0xf]
      %v235 = vld [vmem:[%s182 + $0x98] sm:$0xf]
      %v236 = vld [vmem:[%s182 + $0x9c] sm:$0xf]
      %v237 = vld [vmem:[%s182 + $0xa0] sm:$0xf]
      %v238 = vld [vmem:[%s182 + $0xa4] sm:$0xf]
      %v239 = vld [vmem:[%s182 + $0xa8] sm:$0xf]
      %v240 = vld [vmem:[%s182 + $0xac] sm:$0xf]
      %v241 = vld [vmem:[%s182 + $0xb0] sm:$0xf]
      %v242 = vld [vmem:[%s182 + $0xb4] sm:$0xf]
      %v243 = vld [vmem:[%s182 + $0xb8] sm:$0xf]
      %v244 = vld [vmem:[%s182 + $0xbc] sm:$0xf]
      %v245 = vld [vmem:[%s182 + $0xc0] sm:$0xf]
      %v246 = vld [vmem:[%s182 + $0xc4] sm:$0xf]
      %v247 = vld [vmem:[%s182 + $0xc8] sm:$0xf]
      %v248 = vld [vmem:[%s182 + $0xcc] sm:$0xf]
      %v249 = vld [vmem:[%s182 + $0xd0] sm:$0xf]
      %v250 = vld [vmem:[%s182 + $0xd4] sm:$0xf]
      %v251 = vld [vmem:[%s182 + $0xd8] sm:$0xf]
      %v252 = vld [vmem:[%s182 + $0xdc] sm:$0xf]
      %v253 = vld [vmem:[%s182 + $0xe0] sm:$0xf]
      %v254 = vld [vmem:[%s182 + $0xe4] sm:$0xf]
      %v255 = vld [vmem:[%s182 + $0xe8] sm:$0xf]
      %v256 = vld [vmem:[%s182 + $0xec] sm:$0xf]
      %v257 = vld [vmem:[%s182 + $0xf0] sm:$0xf]
      %v258 = vld [vmem:[%s182 + $0xf4] sm:$0xf]
      %v259 = vld [vmem:[%s182 + $0xf8] sm:$0xf]
      %v260 = vld [vmem:[%s182 + $0xfc] sm:$0xf]
      %v261 = vld [vmem:[%s182 + $0x100] sm:$0xf]
      %v262 = vld [vmem:[%s182 + $0x104] sm:$0xf]
      %v263 = vld [vmem:[%s182 + $0x108] sm:$0xf]
      %v264 = vld [vmem:[%s182 + $0x10c] sm:$0xf]
      %v265 = vld [vmem:[%s182 + $0x110] sm:$0xf]
      %v266 = vld [vmem:[%s182 + $0x114] sm:$0xf]
      %v267 = vld [vmem:[%s182 + $0x118] sm:$0xf]
      %v268 = vld [vmem:[%s182 + $0x11c] sm:$0xf]
      %v269 = vld [vmem:[%s182 + $0x120] sm:$0xf]
      %v270 = vld [vmem:[%s182 + $0x124] sm:$0xf]
      %v271 = vld [vmem:[%s182 + $0x128] sm:$0xf]
      %v272 = vld [vmem:[%s182 + $0x12c] sm:$0xf]
      %v273 = vld [vmem:[%s182 + $0x130] sm:$0xf]
      %v274 = vld [vmem:[%s182 + $0x134] sm:$0xf]
      %v275 = vld [vmem:[%s182 + $0x138] sm:$0xf]
      %v276 = vld [vmem:[%s182 + $0x13c] sm:$0xf]
      %v277 = vld [vmem:[%s182 + $0x140] sm:$0xf]
      %v278 = vld [vmem:[%s182 + $0x144] sm:$0xf]
      %v279 = vld [vmem:[%s182 + $0x148] sm:$0xf]
      %v280 = vld [vmem:[%s182 + $0x14c] sm:$0xf]
      %v281 = vld [vmem:[%s182 + $0x150] sm:$0xf]
      %v282 = vld [vmem:[%s182 + $0x154] sm:$0xf]
      %v283 = vld [vmem:[%s182 + $0x158] sm:$0xf]
      %v284 = vld [vmem:[%s182 + $0x15c] sm:$0xf]
      %v285 = vld [vmem:[%s182 + $0x160] sm:$0xf]
      %v286 = vld [vmem:[%s182 + $0x164] sm:$0xf]
      %v287 = vld [vmem:[%s182 + $0x168] sm:$0xf]
      %v288 = vld [vmem:[%s182 + $0x16c] sm:$0xf]
      %v289 = vld [vmem:[%s182 + $0x170] sm:$0xf]
      %v290 = vld [vmem:[%s182 + $0x174] sm:$0xf]
      %v291 = vld [vmem:[%s182 + $0x178] sm:$0xf]
      %v292 = vld [vmem:[%s182 + $0x17c] sm:$0xf]
      %v293 = vld [vmem:[%s182 + $0x180] sm:$0xf]
      %v294 = vld [vmem:[%s182 + $0x184] sm:$0xf]
      %v295 = vld [vmem:[%s182 + $0x188] sm:$0xf]
      %v296 = vld [vmem:[%s182 + $0x18c] sm:$0xf]
      %v297 = vld [vmem:[%s182 + $0x190] sm:$0xf]
      %v298 = vld [vmem:[%s182 + $0x194] sm:$0xf]
      %v299 = vld [vmem:[%s182 + $0x198] sm:$0xf]
      %v300 = vld [vmem:[%s182 + $0x19c] sm:$0xf]
      %v301 = vld [vmem:[%s182 + $0x1a0] sm:$0xf]
      %v302 = vld [vmem:[%s182 + $0x1a4] sm:$0xf]
      %v303 = vld [vmem:[%s182 + $0x1a8] sm:$0xf]
      %v304 = vld [vmem:[%s182 + $0x1ac] sm:$0xf]
      %v305 = vld [vmem:[%s182 + $0x1b0] sm:$0xf]
      %v306 = vld [vmem:[%s182 + $0x1b4] sm:$0xf]
      %v307 = vld [vmem:[%s182 + $0x1b8] sm:$0xf]
      %v308 = vld [vmem:[%s182 + $0x1bc] sm:$0xf]
      %v309 = vld [vmem:[%s182 + $0x1c0] sm:$0xf]
      %v310 = vld [vmem:[%s182 + $0x1c4] sm:$0xf]
      %v311 = vld [vmem:[%s182 + $0x1c8] sm:$0xf]
      %v312 = vld [vmem:[%s182 + $0x1cc] sm:$0xf]
      %v313 = vld [vmem:[%s182 + $0x1d0] sm:$0xf]
      %v314 = vld [vmem:[%s182 + $0x1d4] sm:$0xf]
      %v315 = vld [vmem:[%s182 + $0x1d8] sm:$0xf]
      %v316 = vld [vmem:[%s182 + $0x1dc] sm:$0xf]
      %v317 = vld [vmem:[%s182 + $0x1e0] sm:$0xf]
      %v318 = vld [vmem:[%s182 + $0x1e4] sm:$0xf]
      %v319 = vld [vmem:[%s182 + $0x1e8] sm:$0xf]
      %v320 = vld [vmem:[%s182 + $0x1ec] sm:$0xf]
      %v321 = vld [vmem:[%s182 + $0x1f0] sm:$0xf]
      %v322 = vld [vmem:[%s182 + $0x1f4] sm:$0xf]
      %v323 = vld [vmem:[%s182 + $0x1f8] sm:$0xf]
      %v324 = vld [vmem:[%s182 + $0x1fc] sm:$0xf]
      %v325 = vld [vmem:[%s182 + $0x200] sm:$0xf]
      %v326 = vld [vmem:[%s182 + $0x204] sm:$0xf]
      %v327 = vld [vmem:[%s182 + $0x208] sm:$0xf]
      %v328 = vld [vmem:[%s182 + $0x20c] sm:$0xf]
      %v329 = vld [vmem:[%s182 + $0x210] sm:$0xf]
      %v330 = vld [vmem:[%s182 + $0x214] sm:$0xf]
      %v331 = vld [vmem:[%s182 + $0x218] sm:$0xf]
      %v332 = vld [vmem:[%s182 + $0x21c] sm:$0xf]
      %v333 = vld [vmem:[%s182 + $0x220] sm:$0xf]
      %v334 = vld [vmem:[%s182 + $0x224] sm:$0xf]
      %v335 = vld [vmem:[%s182 + $0x228] sm:$0xf]
      %v336 = vld [vmem:[%s182 + $0x22c] sm:$0xf]
      %v337 = vld [vmem:[%s182 + $0x230] sm:$0xf]
      %v338 = vld [vmem:[%s182 + $0x234] sm:$0xf]
      %v339 = vld [vmem:[%s182 + $0x238] sm:$0xf]
      %v340 = vld [vmem:[%s182 + $0x23c] sm:$0xf]
      %v341 = vld [vmem:[%s182 + $0x240] sm:$0xf]
      %v342 = vld [vmem:[%s182 + $0x244] sm:$0xf]
      %v343 = vld [vmem:[%s182 + $0x248] sm:$0xf]
      %v344 = vld [vmem:[%s182 + $0x24c] sm:$0xf]
      %v345 = vld [vmem:[%s182 + $0x250] sm:$0xf]
      %v346 = vld [vmem:[%s182 + $0x254] sm:$0xf]
      %v347 = vld [vmem:[%s182 + $0x258] sm:$0xf]
      %v348 = vld [vmem:[%s182 + $0x25c] sm:$0xf]
      %v349 = vld [vmem:[%s182 + $0x260] sm:$0xf]
      %v350 = vld [vmem:[%s182 + $0x264] sm:$0xf]
      %v351 = vld [vmem:[%s182 + $0x268] sm:$0xf]
      %v352 = vld [vmem:[%s182 + $0x26c] sm:$0xf]
      %v353 = vld [vmem:[%s182 + $0x270] sm:$0xf]
      %v354 = vld [vmem:[%s182 + $0x274] sm:$0xf]
      %v355 = vld [vmem:[%s182 + $0x278] sm:$0xf]
      %v356 = vld [vmem:[%s182 + $0x27c] sm:$0xf]
      %v357 = vld [vmem:[%s182 + $0x280] sm:$0xf]
      %v358 = vld [vmem:[%s182 + $0x284] sm:$0xf]
      %v359 = vld [vmem:[%s182 + $0x288] sm:$0xf]
      %v360 = vld [vmem:[%s182 + $0x28c] sm:$0xf]
      %v361 = vld [vmem:[%s182 + $0x290] sm:$0xf]
      %v362 = vld [vmem:[%s182 + $0x294] sm:$0xf]
      %v363 = vld [vmem:[%s182 + $0x298] sm:$0xf]
      %v364 = vld [vmem:[%s182 + $0x29c] sm:$0xf]
      %v365 = vld [vmem:[%s182 + $0x2a0] sm:$0xf]
      %v366 = vld [vmem:[%s182 + $0x2a4] sm:$0xf]
      %v367 = vld [vmem:[%s182 + $0x2a8] sm:$0xf]
      %v368 = vld [vmem:[%s182 + $0x2ac] sm:$0xf]
      %v369 = vld [vmem:[%s182 + $0x2b0] sm:$0xf]
      %v370 = vld [vmem:[%s182 + $0x2b4] sm:$0xf]
      %v371 = vld [vmem:[%s182 + $0x2b8] sm:$0xf]
      %v372 = vld [vmem:[%s182 + $0x2bc] sm:$0xf]
      %v373 = vld [vmem:[%s182 + $0x2c0] sm:$0xf]
      %v374 = vld [vmem:[%s182 + $0x2c4] sm:$0xf]
      %v375 = vld [vmem:[%s182 + $0x2c8] sm:$0xf]
      %v376 = vld [vmem:[%s182 + $0x2cc] sm:$0xf]
      %v377 = vld [vmem:[%s182 + $0x2d0] sm:$0xf]
      %v378 = vld [vmem:[%s182 + $0x2d4] sm:$0xf]
      %v379 = vld [vmem:[%s182 + $0x2d8] sm:$0xf]
      %v380 = vld [vmem:[%s182 + $0x2dc] sm:$0xf]
      %v381 = vld [vmem:[%s182 + $0x2e0] sm:$0xf]
      %v382 = vld [vmem:[%s182 + $0x2e4] sm:$0xf]
      %v383 = vld [vmem:[%s182 + $0x2e8] sm:$0xf]
      %v384 = vld [vmem:[%s182 + $0x2ec] sm:$0xf]
      %v385 = vld [vmem:[%s182 + $0x2f0] sm:$0xf]
      %v386 = vld [vmem:[%s182 + $0x2f4] sm:$0xf]
      %v387 = vld [vmem:[%s182 + $0x2f8] sm:$0xf]
      %v388 = vld [vmem:[%s182 + $0x2fc] sm:$0xf]
      %v389 = vld [vmem:[%s182 + $0x300] sm:$0xf]
      %v390 = vld [vmem:[%s182 + $0x304] sm:$0xf]
      %v391 = vld [vmem:[%s182 + $0x308] sm:$0xf]
      %v392 = vld [vmem:[%s182 + $0x30c] sm:$0xf]
      %v393 = vld [vmem:[%s182 + $0x310] sm:$0xf]
      %v394 = vld [vmem:[%s182 + $0x314] sm:$0xf]
      %v395 = vld [vmem:[%s182 + $0x318] sm:$0xf]
      %v396 = vld [vmem:[%s182 + $0x31c] sm:$0xf]
      %v397 = vld [vmem:[%s182 + $0x320] sm:$0xf]
      %v398 = vld [vmem:[%s182 + $0x324] sm:$0xf]
      %v399 = vld [vmem:[%s182 + $0x328] sm:$0xf]
      %v400 = vld [vmem:[%s182 + $0x32c] sm:$0xf]
      %v401 = vld [vmem:[%s182 + $0x330] sm:$0xf]
      %v402 = vld [vmem:[%s182 + $0x334] sm:$0xf]
      %v403 = vld [vmem:[%s182 + $0x338] sm:$0xf]
      %v404 = vld [vmem:[%s182 + $0x33c] sm:$0xf]
      %v405 = vld [vmem:[%s182 + $0x340] sm:$0xf]
      %v406 = vld [vmem:[%s182 + $0x344] sm:$0xf]
      %v407 = vld [vmem:[%s182 + $0x348] sm:$0xf]
      %v408 = vld [vmem:[%s182 + $0x34c] sm:$0xf]
      %v409 = vld [vmem:[%s182 + $0x350] sm:$0xf]
      %v410 = vld [vmem:[%s182 + $0x354] sm:$0xf]
      %v411 = vld [vmem:[%s182 + $0x358] sm:$0xf]
      %v412 = vld [vmem:[%s182 + $0x35c] sm:$0xf]
      %v413 = vld [vmem:[%s182 + $0x360] sm:$0xf]
      %v414 = vld [vmem:[%s182 + $0x364] sm:$0xf]
      %v415 = vld [vmem:[%s182 + $0x368] sm:$0xf]
      %v416 = vld [vmem:[%s182 + $0x36c] sm:$0xf]
      %v417 = vld [vmem:[%s182 + $0x370] sm:$0xf]
      %v418 = vld [vmem:[%s182 + $0x374] sm:$0xf]
      %v419 = vld [vmem:[%s182 + $0x378] sm:$0xf]
      %v420 = vld [vmem:[%s182 + $0x37c] sm:$0xf]
      %v421 = vld [vmem:[%s182 + $0x380] sm:$0xf]
      %v422 = vld [vmem:[%s182 + $0x384] sm:$0xf]
      %v423 = vld [vmem:[%s182 + $0x388] sm:$0xf]
      %v424 = vld [vmem:[%s182 + $0x38c] sm:$0xf]
      %v425 = vld [vmem:[%s182 + $0x390] sm:$0xf]
      %v426 = vld [vmem:[%s182 + $0x394] sm:$0xf]
      %v427 = vld [vmem:[%s182 + $0x398] sm:$0xf]
      %v428 = vld [vmem:[%s182 + $0x39c] sm:$0xf]
      %v429 = vld [vmem:[%s182 + $0x3a0] sm:$0xf]
      %v430 = vld [vmem:[%s182 + $0x3a4] sm:$0xf]
      %v431 = vld [vmem:[%s182 + $0x3a8] sm:$0xf]
      %v432 = vld [vmem:[%s182 + $0x3ac] sm:$0xf]
      %v433 = vld [vmem:[%s182 + $0x3b0] sm:$0xf]
      %v434 = vld [vmem:[%s182 + $0x3b4] sm:$0xf]
      %v435 = vld [vmem:[%s182 + $0x3b8] sm:$0xf]
      %v436 = vld [vmem:[%s182 + $0x3bc] sm:$0xf]
      %v437 = vld [vmem:[%s182 + $0x3c0] sm:$0xf]
      %v438 = vld [vmem:[%s182 + $0x3c4] sm:$0xf]
      %v439 = vld [vmem:[%s182 + $0x3c8] sm:$0xf]
      %v440 = vld [vmem:[%s182 + $0x3cc] sm:$0xf]
      %v441 = vld [vmem:[%s182 + $0x3d0] sm:$0xf]
      %v442 = vld [vmem:[%s182 + $0x3d4] sm:$0xf]
      %v443 = vld [vmem:[%s182 + $0x3d8] sm:$0xf]
      %v444 = vld [vmem:[%s182 + $0x3dc] sm:$0xf]
      %v445 = vld [vmem:[%s182 + $0x3e0] sm:$0xf]
      %v446 = vld [vmem:[%s182 + $0x3e4] sm:$0xf]
      %v447 = vld [vmem:[%s182 + $0x3e8] sm:$0xf]
      %v448 = vld [vmem:[%s182 + $0x3ec] sm:$0xf]
      %v449 = vld [vmem:[%s182 + $0x3f0] sm:$0xf]
      %v450 = vld [vmem:[%s182 + $0x3f4] sm:$0xf]
      %v451 = vld [vmem:[%s182 + $0x3f8] sm:$0xf]
      %v452 = vld [vmem:[%s182 + $0x3fc] sm:$0xf]
      %454 = vst [vmem:[#allocation1] ss:$9 sm:$0xff] %v195
      %v455 = vld [vmem:[#allocation1] sm:$0xff]
      %v456 = vld [vmem:[#allocation1 + $0x9] sm:$0xff]
      %v457 = vld [vmem:[#allocation1 + $0x12] sm:$0xff]
      %v458 = vld [vmem:[#allocation1 + $0x1b] sm:$0xff]
      %v459 = vld [vmem:[#allocation1 + $0x24] sm:$0xff]
      %v460 = vld [vmem:[#allocation1 + $0x2d] sm:$0xff]
      %v461 = vld [vmem:[#allocation1 + $0x36] sm:$0xff]
      %v462 = vld [vmem:[#allocation1 + $0x3f] sm:$0xff]
      %464 = vst [vmem:[#allocation1] ss:$9 sm:$0xff] %v196
      %v465 = vld [vmem:[#allocation1] sm:$0xff]
      %v466 = vld [vmem:[#allocation1 + $0x9] sm:$0xff]
      %v467 = vld [vmem:[#allocation1 + $0x12] sm:$0xff]
      %v468 = vld [vmem:[#allocation1 + $0x1b] sm:$0xff]
      %v469 = vld [vmem:[#allocation1 + $0x24] sm:$0xff]
      %v470 = vld [vmem:[#allocation1 + $0x2d] sm:$0xff]
      %v471 = vld [vmem:[#allocation1 + $0x36] sm:$0xff]
      %v472 = vld [vmem:[#allocation1 + $0x3f] sm:$0xff]
      %v745 = vunpack.c.l.b16 %v197
      %v746 = vunpack.c.l.b16 %v198
      %v747 = vunpack.c.l.b16 %v199
      %v748 = vunpack.c.l.b16 %v200
      %v749 = vunpack.c.l.b16 %v201
      %v750 = vunpack.c.l.b16 %v202
      %v751 = vunpack.c.l.b16 %v203
      %v752 = vunpack.c.l.b16 %v204
      %v753 = vunpack.c.l.b16 %v205
      %v754 = vunpack.c.l.b16 %v206
      %v755 = vunpack.c.l.b16 %v207
      %v756 = vunpack.c.l.b16 %v208
      %v757 = vunpack.c.l.b16 %v209
      %v758 = vunpack.c.l.b16 %v210
      %v759 = vunpack.c.l.b16 %v211
      %v760 = vunpack.c.l.b16 %v212
      %v761 = vunpack.c.l.b16 %v213
      %v762 = vunpack.c.l.b16 %v214
      %v763 = vunpack.c.l.b16 %v215
      %v764 = vunpack.c.l.b16 %v216
      %v765 = vunpack.c.l.b16 %v217
      %v766 = vunpack.c.l.b16 %v218
      %v767 = vunpack.c.l.b16 %v219
      %v768 = vunpack.c.l.b16 %v220
      %v769 = vunpack.c.l.b16 %v221
      %v770 = vunpack.c.l.b16 %v222
      %v771 = vunpack.c.l.b16 %v223
      %v772 = vunpack.c.l.b16 %v224
      %v773 = vunpack.c.l.b16 %v225
      %v774 = vunpack.c.l.b16 %v226
      %v775 = vunpack.c.l.b16 %v227
      %v776 = vunpack.c.l.b16 %v228
      %v777 = vunpack.c.l.b16 %v229
      %v778 = vunpack.c.l.b16 %v230
      %v779 = vunpack.c.l.b16 %v231
      %v780 = vunpack.c.l.b16 %v232
      %v781 = vunpack.c.l.b16 %v233
      %v782 = vunpack.c.l.b16 %v234
      %v783 = vunpack.c.l.b16 %v235
      %v784 = vunpack.c.l.b16 %v236
      %v785 = vunpack.c.l.b16 %v237
      %v786 = vunpack.c.l.b16 %v238
      %v787 = vunpack.c.l.b16 %v239
      %v788 = vunpack.c.l.b16 %v240
      %v789 = vunpack.c.l.b16 %v241
      %v790 = vunpack.c.l.b16 %v242
      %v791 = vunpack.c.l.b16 %v243
      %v792 = vunpack.c.l.b16 %v244
      %v793 = vunpack.c.l.b16 %v245
      %v794 = vunpack.c.l.b16 %v246
      %v795 = vunpack.c.l.b16 %v247
      %v796 = vunpack.c.l.b16 %v248
      %v797 = vunpack.c.l.b16 %v249
      %v798 = vunpack.c.l.b16 %v250
      %v799 = vunpack.c.l.b16 %v251
      %v800 = vunpack.c.l.b16 %v252
      %v801 = vunpack.c.l.b16 %v253
      %v802 = vunpack.c.l.b16 %v254
      %v803 = vunpack.c.l.b16 %v255
      %v804 = vunpack.c.l.b16 %v256
      %v805 = vunpack.c.l.b16 %v257
      %v806 = vunpack.c.l.b16 %v258
      %v807 = vunpack.c.l.b16 %v259
      %v808 = vunpack.c.l.b16 %v260
      %v809 = vunpack.c.l.b16 %v261
      %v810 = vunpack.c.l.b16 %v262
      %v811 = vunpack.c.l.b16 %v263
      %v812 = vunpack.c.l.b16 %v264
      %v813 = vunpack.c.l.b16 %v265
      %v814 = vunpack.c.l.b16 %v266
      %v815 = vunpack.c.l.b16 %v267
      %v816 = vunpack.c.l.b16 %v268
      %v817 = vunpack.c.l.b16 %v269
      %v818 = vunpack.c.l.b16 %v270
      %v819 = vunpack.c.l.b16 %v271
      %v820 = vunpack.c.l.b16 %v272
      %v821 = vunpack.c.l.b16 %v273
      %v822 = vunpack.c.l.b16 %v274
      %v823 = vunpack.c.l.b16 %v275
      %v824 = vunpack.c.l.b16 %v276
      %v825 = vunpack.c.l.b16 %v277
      %v826 = vunpack.c.l.b16 %v278
      %v827 = vunpack.c.l.b16 %v279
      %v828 = vunpack.c.l.b16 %v280
      %v829 = vunpack.c.l.b16 %v281
      %v830 = vunpack.c.l.b16 %v282
      %v831 = vunpack.c.l.b16 %v283
      %v832 = vunpack.c.l.b16 %v284
      %v833 = vunpack.c.l.b16 %v285
      %v834 = vunpack.c.l.b16 %v286
      %v835 = vunpack.c.l.b16 %v287
      %v836 = vunpack.c.l.b16 %v288
      %v837 = vunpack.c.l.b16 %v289
      %v838 = vunpack.c.l.b16 %v290
      %v839 = vunpack.c.l.b16 %v291
      %v840 = vunpack.c.l.b16 %v292
      %v841 = vunpack.c.l.b16 %v293
      %v842 = vunpack.c.l.b16 %v294
      %v843 = vunpack.c.l.b16 %v295
      %v844 = vunpack.c.l.b16 %v296
      %v845 = vunpack.c.l.b16 %v297
      %v846 = vunpack.c.l.b16 %v298
      %v847 = vunpack.c.l.b16 %v299
      %v848 = vunpack.c.l.b16 %v300
      %v849 = vunpack.c.l.b16 %v301
      %v850 = vunpack.c.l.b16 %v302
      %v851 = vunpack.c.l.b16 %v303
      %v852 = vunpack.c.l.b16 %v304
      %v853 = vunpack.c.l.b16 %v305
      %v854 = vunpack.c.l.b16 %v306
      %v855 = vunpack.c.l.b16 %v307
      %v856 = vunpack.c.l.b16 %v308
      %v857 = vunpack.c.l.b16 %v309
      %v858 = vunpack.c.l.b16 %v310
      %v859 = vunpack.c.l.b16 %v311
      %v860 = vunpack.c.l.b16 %v312
      %v861 = vunpack.c.l.b16 %v313
      %v862 = vunpack.c.l.b16 %v314
      %v863 = vunpack.c.l.b16 %v315
      %v864 = vunpack.c.l.b16 %v316
      %v865 = vunpack.c.l.b16 %v317
      %v866 = vunpack.c.l.b16 %v318
      %v867 = vunpack.c.l.b16 %v319
      %v868 = vunpack.c.l.b16 %v320
      %v869 = vunpack.c.l.b16 %v321
      %v870 = vunpack.c.l.b16 %v322
      %v871 = vunpack.c.l.b16 %v323
      %v872 = vunpack.c.l.b16 %v324
      %v873 = vunpack.c.l.b16 %v325
      %v874 = vunpack.c.l.b16 %v326
      %v875 = vunpack.c.l.b16 %v327
      %v876 = vunpack.c.l.b16 %v328
      %v877 = vunpack.c.l.b16 %v329
      %v878 = vunpack.c.l.b16 %v330
      %v879 = vunpack.c.l.b16 %v331
      %v880 = vunpack.c.l.b16 %v332
      %v881 = vunpack.c.l.b16 %v333
      %v882 = vunpack.c.l.b16 %v334
      %v883 = vunpack.c.l.b16 %v335
      %v884 = vunpack.c.l.b16 %v336
      %v885 = vunpack.c.l.b16 %v337
      %v886 = vunpack.c.l.b16 %v338
      %v887 = vunpack.c.l.b16 %v339
      %v888 = vunpack.c.l.b16 %v340
      %v889 = vunpack.c.l.b16 %v341
      %v890 = vunpack.c.l.b16 %v342
      %v891 = vunpack.c.l.b16 %v343
      %v892 = vunpack.c.l.b16 %v344
      %v893 = vunpack.c.l.b16 %v345
      %v894 = vunpack.c.l.b16 %v346
      %v895 = vunpack.c.l.b16 %v347
      %v896 = vunpack.c.l.b16 %v348
      %v897 = vunpack.c.l.b16 %v349
      %v898 = vunpack.c.l.b16 %v350
      %v899 = vunpack.c.l.b16 %v351
      %v900 = vunpack.c.l.b16 %v352
      %v901 = vunpack.c.l.b16 %v353
      %v902 = vunpack.c.l.b16 %v354
      %v903 = vunpack.c.l.b16 %v355
      %v904 = vunpack.c.l.b16 %v356
      %v905 = vunpack.c.l.b16 %v357
      %v906 = vunpack.c.l.b16 %v358
      %v907 = vunpack.c.l.b16 %v359
      %v908 = vunpack.c.l.b16 %v360
      %v909 = vunpack.c.l.b16 %v361
      %v910 = vunpack.c.l.b16 %v362
      %v911 = vunpack.c.l.b16 %v363
      %v912 = vunpack.c.l.b16 %v364
      %v913 = vunpack.c.l.b16 %v365
      %v914 = vunpack.c.l.b16 %v366
      %v915 = vunpack.c.l.b16 %v367
      %v916 = vunpack.c.l.b16 %v368
      %v917 = vunpack.c.l.b16 %v369
      %v918 = vunpack.c.l.b16 %v370
      %v919 = vunpack.c.l.b16 %v371
      %v920 = vunpack.c.l.b16 %v372
      %v921 = vunpack.c.l.b16 %v373
      %v922 = vunpack.c.l.b16 %v374
      %v923 = vunpack.c.l.b16 %v375
      %v924 = vunpack.c.l.b16 %v376
      %v925 = vunpack.c.l.b16 %v377
      %v926 = vunpack.c.l.b16 %v378
      %v927 = vunpack.c.l.b16 %v379
      %v928 = vunpack.c.l.b16 %v380
      %v929 = vunpack.c.l.b16 %v381
      %v930 = vunpack.c.l.b16 %v382
      %v931 = vunpack.c.l.b16 %v383
      %v932 = vunpack.c.l.b16 %v384
      %v933 = vunpack.c.l.b16 %v385
      %v934 = vunpack.c.l.b16 %v386
      %v935 = vunpack.c.l.b16 %v387
      %v936 = vunpack.c.l.b16 %v388
      %v937 = vunpack.c.l.b16 %v389
      %v938 = vunpack.c.l.b16 %v390
      %v939 = vunpack.c.l.b16 %v391
      %v940 = vunpack.c.l.b16 %v392
      %v941 = vunpack.c.l.b16 %v393
      %v942 = vunpack.c.l.b16 %v394
      %v943 = vunpack.c.l.b16 %v395
      %v944 = vunpack.c.l.b16 %v396
      %v945 = vunpack.c.l.b16 %v397
      %v946 = vunpack.c.l.b16 %v398
      %v947 = vunpack.c.l.b16 %v399
      %v948 = vunpack.c.l.b16 %v400
      %v949 = vunpack.c.l.b16 %v401
      %v950 = vunpack.c.l.b16 %v402
      %v951 = vunpack.c.l.b16 %v403
      %v952 = vunpack.c.l.b16 %v404
      %v953 = vunpack.c.l.b16 %v405
      %v954 = vunpack.c.l.b16 %v406
      %v955 = vunpack.c.l.b16 %v407
      %v956 = vunpack.c.l.b16 %v408
      %v957 = vunpack.c.l.b16 %v409
      %v958 = vunpack.c.l.b16 %v410
      %v959 = vunpack.c.l.b16 %v411
      %v960 = vunpack.c.l.b16 %v412
      %v961 = vunpack.c.l.b16 %v413
      %v962 = vunpack.c.l.b16 %v414
      %v963 = vunpack.c.l.b16 %v415
      %v964 = vunpack.c.l.b16 %v416
      %v965 = vunpack.c.l.b16 %v417
      %v966 = vunpack.c.l.b16 %v418
      %v967 = vunpack.c.l.b16 %v419
      %v968 = vunpack.c.l.b16 %v420
      %v969 = vunpack.c.l.b16 %v421
      %v970 = vunpack.c.l.b16 %v422
      %v971 = vunpack.c.l.b16 %v423
      %v972 = vunpack.c.l.b16 %v424
      %v973 = vunpack.c.l.b16 %v425
      %v974 = vunpack.c.l.b16 %v426
      %v975 = vunpack.c.l.b16 %v427
      %v976 = vunpack.c.l.b16 %v428
      %v977 = vunpack.c.l.b16 %v429
      %v978 = vunpack.c.l.b16 %v430
      %v979 = vunpack.c.l.b16 %v431
      %v980 = vunpack.c.l.b16 %v432
      %v981 = vunpack.c.l.b16 %v433
      %v982 = vunpack.c.l.b16 %v434
      %v983 = vunpack.c.l.b16 %v435
      %v984 = vunpack.c.l.b16 %v436
      %v985 = vunpack.c.l.b16 %v437
      %v986 = vunpack.c.l.b16 %v438
      %v987 = vunpack.c.l.b16 %v439
      %v988 = vunpack.c.l.b16 %v440
      %v989 = vunpack.c.l.b16 %v441
      %v990 = vunpack.c.l.b16 %v442
      %v991 = vunpack.c.l.b16 %v443
      %v992 = vunpack.c.l.b16 %v444
      %v993 = vunpack.c.l.b16 %v445
      %v994 = vunpack.c.l.b16 %v446
      %v995 = vunpack.c.l.b16 %v447
      %v996 = vunpack.c.l.b16 %v448
      %v997 = vunpack.c.l.b16 %v449
      %v998 = vunpack.c.l.b16 %v450
      %v999 = vunpack.c.l.b16 %v451
      %v1000 = vunpack.c.l.b16 %v452
      %v1001 = vpack.c.b16 %v746, %v745
      %v1002 = vpack.c.b16 %v748, %v747
      %v1003 = vpack.c.b16 %v750, %v749
      %v1004 = vpack.c.b16 %v752, %v751
      %v1005 = vpack.c.b16 %v754, %v753
      %v1006 = vpack.c.b16 %v756, %v755
      %v1007 = vpack.c.b16 %v758, %v757
      %v1008 = vpack.c.b16 %v760, %v759
      %v1009 = vpack.c.b16 %v762, %v761
      %v1010 = vpack.c.b16 %v764, %v763
      %v1011 = vpack.c.b16 %v766, %v765
      %v1012 = vpack.c.b16 %v768, %v767
      %v1013 = vpack.c.b16 %v770, %v769
      %v1014 = vpack.c.b16 %v772, %v771
      %v1015 = vpack.c.b16 %v774, %v773
      %v1016 = vpack.c.b16 %v776, %v775
      %v1017 = vpack.c.b16 %v778, %v777
      %v1018 = vpack.c.b16 %v780, %v779
      %v1019 = vpack.c.b16 %v782, %v781
      %v1020 = vpack.c.b16 %v784, %v783
      %v1021 = vpack.c.b16 %v786, %v785
      %v1022 = vpack.c.b16 %v788, %v787
      %v1023 = vpack.c.b16 %v790, %v789
      %v1024 = vpack.c.b16 %v792, %v791
      %v1025 = vpack.c.b16 %v794, %v793
      %v1026 = vpack.c.b16 %v796, %v795
      %v1027 = vpack.c.b16 %v798, %v797
      %v1028 = vpack.c.b16 %v800, %v799
      %v1029 = vpack.c.b16 %v802, %v801
      %v1030 = vpack.c.b16 %v804, %v803
      %v1031 = vpack.c.b16 %v806, %v805
      %v1032 = vpack.c.b16 %v808, %v807
      %v1033 = vpack.c.b16 %v810, %v809
      %v1034 = vpack.c.b16 %v812, %v811
      %v1035 = vpack.c.b16 %v814, %v813
      %v1036 = vpack.c.b16 %v816, %v815
      %v1037 = vpack.c.b16 %v818, %v817
      %v1038 = vpack.c.b16 %v820, %v819
      %v1039 = vpack.c.b16 %v822, %v821
      %v1040 = vpack.c.b16 %v824, %v823
      %v1041 = vpack.c.b16 %v826, %v825
      %v1042 = vpack.c.b16 %v828, %v827
      %v1043 = vpack.c.b16 %v830, %v829
      %v1044 = vpack.c.b16 %v832, %v831
      %v1045 = vpack.c.b16 %v834, %v833
      %v1046 = vpack.c.b16 %v836, %v835
      %v1047 = vpack.c.b16 %v838, %v837
      %v1048 = vpack.c.b16 %v840, %v839
      %v1049 = vpack.c.b16 %v842, %v841
      %v1050 = vpack.c.b16 %v844, %v843
      %v1051 = vpack.c.b16 %v846, %v845
      %v1052 = vpack.c.b16 %v848, %v847
      %v1053 = vpack.c.b16 %v850, %v849
      %v1054 = vpack.c.b16 %v852, %v851
      %v1055 = vpack.c.b16 %v854, %v853
      %v1056 = vpack.c.b16 %v856, %v855
      %v1057 = vpack.c.b16 %v858, %v857
      %v1058 = vpack.c.b16 %v860, %v859
      %v1059 = vpack.c.b16 %v862, %v861
      %v1060 = vpack.c.b16 %v864, %v863
      %v1061 = vpack.c.b16 %v866, %v865
      %v1062 = vpack.c.b16 %v868, %v867
      %v1063 = vpack.c.b16 %v870, %v869
      %v1064 = vpack.c.b16 %v872, %v871
      %v1065 = vpack.c.b16 %v874, %v873
      %v1066 = vpack.c.b16 %v876, %v875
      %v1067 = vpack.c.b16 %v878, %v877
      %v1068 = vpack.c.b16 %v880, %v879
      %v1069 = vpack.c.b16 %v882, %v881
      %v1070 = vpack.c.b16 %v884, %v883
      %v1071 = vpack.c.b16 %v886, %v885
      %v1072 = vpack.c.b16 %v888, %v887
      %v1073 = vpack.c.b16 %v890, %v889
      %v1074 = vpack.c.b16 %v892, %v891
      %v1075 = vpack.c.b16 %v894, %v893
      %v1076 = vpack.c.b16 %v896, %v895
      %v1077 = vpack.c.b16 %v898, %v897
      %v1078 = vpack.c.b16 %v900, %v899
      %v1079 = vpack.c.b16 %v902, %v901
      %v1080 = vpack.c.b16 %v904, %v903
      %v1081 = vpack.c.b16 %v906, %v905
      %v1082 = vpack.c.b16 %v908, %v907
      %v1083 = vpack.c.b16 %v910, %v909
      %v1084 = vpack.c.b16 %v912, %v911
      %v1085 = vpack.c.b16 %v914, %v913
      %v1086 = vpack.c.b16 %v916, %v915
      %v1087 = vpack.c.b16 %v918, %v917
      %v1088 = vpack.c.b16 %v920, %v919
      %v1089 = vpack.c.b16 %v922, %v921
      %v1090 = vpack.c.b16 %v924, %v923
      %v1091 = vpack.c.b16 %v926, %v925
      %v1092 = vpack.c.b16 %v928, %v927
      %v1093 = vpack.c.b16 %v930, %v929
      %v1094 = vpack.c.b16 %v932, %v931
      %v1095 = vpack.c.b16 %v934, %v933
      %v1096 = vpack.c.b16 %v936, %v935
      %v1097 = vpack.c.b16 %v938, %v937
      %v1098 = vpack.c.b16 %v940, %v939
      %v1099 = vpack.c.b16 %v942, %v941
      %v1100 = vpack.c.b16 %v944, %v943
      %v1101 = vpack.c.b16 %v946, %v945
      %v1102 = vpack.c.b16 %v948, %v947
      %v1103 = vpack.c.b16 %v950, %v949
      %v1104 = vpack.c.b16 %v952, %v951
      %v1105 = vpack.c.b16 %v954, %v953
      %v1106 = vpack.c.b16 %v956, %v955
      %v1107 = vpack.c.b16 %v958, %v957
      %v1108 = vpack.c.b16 %v960, %v959
      %v1109 = vpack.c.b16 %v962, %v961
      %v1110 = vpack.c.b16 %v964, %v963
      %v1111 = vpack.c.b16 %v966, %v965
      %v1112 = vpack.c.b16 %v968, %v967
      %v1113 = vpack.c.b16 %v970, %v969
      %v1114 = vpack.c.b16 %v972, %v971
      %v1115 = vpack.c.b16 %v974, %v973
      %v1116 = vpack.c.b16 %v976, %v975
      %v1117 = vpack.c.b16 %v978, %v977
      %v1118 = vpack.c.b16 %v980, %v979
      %v1119 = vpack.c.b16 %v982, %v981
      %v1120 = vpack.c.b16 %v984, %v983
      %v1121 = vpack.c.b16 %v986, %v985
      %v1122 = vpack.c.b16 %v988, %v987
      %v1123 = vpack.c.b16 %v990, %v989
      %v1124 = vpack.c.b16 %v992, %v991
      %v1125 = vpack.c.b16 %v994, %v993
      %v1126 = vpack.c.b16 %v996, %v995
      %v1127 = vpack.c.b16 %v998, %v997
      %v1128 = vpack.c.b16 %v1000, %v999
      %1257 = vmatpush.bf16.msra.mxu0 %v1008
      %1258 = vmatpush.bf16.msra.mxu0 %v1007
      %1259 = vmatpush.bf16.msra.mxu0 %v1006
      %1260 = vmatpush.bf16.msra.mxu0 %v1005
      %1261 = vmatpush.bf16.msra.mxu0 %v1004
      %1262 = vmatpush.bf16.msra.mxu0 %v1003
      %1263 = vmatpush.bf16.msra.mxu0 %v1002
      %1264 = vmatpush.bf16.msra.mxu0 %v1001
      %1265 = vmatmul.bf16.gmra.mxu0 %v455
      %v1266 = vpop.f32.mrf.mxu0
      %v1267 = vadd.f32 0.0, %v1266
      %v1268 = vpop.f32.mrf.mxu0
      %1269 = vdwg.mxu0
      %1270 = vmatpush.bf16.msra.mxu0 %v1016
      %1271 = vmatpush.bf16.msra.mxu0 %v1015
      %1272 = vmatpush.bf16.msra.mxu0 %v1014
      %1273 = vmatpush.bf16.msra.mxu0 %v1013
      %1274 = vmatpush.bf16.msra.mxu0 %v1012
      %1275 = vmatpush.bf16.msra.mxu0 %v1011
      %1276 = vmatpush.bf16.msra.mxu0 %v1010
      %1277 = vmatpush.bf16.msra.mxu0 %v1009
      %1278 = vmatmul.bf16.gmra.mxu0 %v456
      %v1279 = vpop.f32.mrf.mxu0
      %v1280 = vadd.f32 %v1267, %v1279
      %v1281 = vpop.f32.mrf.mxu0
      %1282 = vdwg.mxu0
      %1283 = vmatpush.bf16.msra.mxu0 %v1024
      %1284 = vmatpush.bf16.msra.mxu0 %v1023
      %1285 = vmatpush.bf16.msra.mxu0 %v1022
      %1286 = vmatpush.bf16.msra.mxu0 %v1021
      %1287 = vmatpush.bf16.msra.mxu0 %v1020
      %1288 = vmatpush.bf16.msra.mxu0 %v1019
      %1289 = vmatpush.bf16.msra.mxu0 %v1018
      %1290 = vmatpush.bf16.msra.mxu0 %v1017
      %1291 = vmatmul.bf16.gmra.mxu0 %v457
      %v1292 = vpop.f32.mrf.mxu0
      %v1293 = vadd.f32 %v1280, %v1292
      %v1294 = vpop.f32.mrf.mxu0
      %1295 = vdwg.mxu0
      %1296 = vmatpush.bf16.msra.mxu0 %v1032
      %1297 = vmatpush.bf16.msra.mxu0 %v1031
      %1298 = vmatpush.bf16.msra.mxu0 %v1030
      %1299 = vmatpush.bf16.msra.mxu0 %v1029
      %1300 = vmatpush.bf16.msra.mxu0 %v1028
      %1301 = vmatpush.bf16.msra.mxu0 %v1027
      %1302 = vmatpush.bf16.msra.mxu0 %v1026
      %1303 = vmatpush.bf16.msra.mxu0 %v1025
      %1304 = vmatmul.bf16.gmra.mxu0 %v458
      %v1305 = vpop.f32.mrf.mxu0
      %v1306 = vadd.f32 %v1293, %v1305
      %v1307 = vpop.f32.mrf.mxu0
      %1308 = vdwg.mxu0
      %1309 = vmatpush.bf16.msra.mxu0 %v1040
      %1310 = vmatpush.bf16.msra.mxu0 %v1039
      %1311 = vmatpush.bf16.msra.mxu0 %v1038
      %1312 = vmatpush.bf16.msra.mxu0 %v1037
      %1313 = vmatpush.bf16.msra.mxu0 %v1036
      %1314 = vmatpush.bf16.msra.mxu0 %v1035
      %1315 = vmatpush.bf16.msra.mxu0 %v1034
      %1316 = vmatpush.bf16.msra.mxu0 %v1033
      %1317 = vmatmul.bf16.gmra.mxu0 %v459
      %v1318 = vpop.f32.mrf.mxu0
      %v1319 = vadd.f32 %v1306, %v1318
      %v1320 = vpop.f32.mrf.mxu0
      %1321 = vdwg.mxu0
      %1322 = vmatpush.bf16.msra.mxu0 %v1048
      %1323 = vmatpush.bf16.msra.mxu0 %v1047
      %1324 = vmatpush.bf16.msra.mxu0 %v1046
      %1325 = vmatpush.bf16.msra.mxu0 %v1045
      %1326 = vmatpush.bf16.msra.mxu0 %v1044
      %1327 = vmatpush.bf16.msra.mxu0 %v1043
      %1328 = vmatpush.bf16.msra.mxu0 %v1042
      %1329 = vmatpush.bf16.msra.mxu0 %v1041
      %1330 = vmatmul.bf16.gmra.mxu0 %v460
      %v1331 = vpop.f32.mrf.mxu0
      %v1332 = vadd.f32 %v1319, %v1331
      %v1333 = vpop.f32.mrf.mxu0
      %1334 = vdwg.mxu0
      %1335 = vmatpush.bf16.msra.mxu0 %v1056
      %1336 = vmatpush.bf16.msra.mxu0 %v1055
      %1337 = vmatpush.bf16.msra.mxu0 %v1054
      %1338 = vmatpush.bf16.msra.mxu0 %v1053
      %1339 = vmatpush.bf16.msra.mxu0 %v1052
      %1340 = vmatpush.bf16.msra.mxu0 %v1051
      %1341 = vmatpush.bf16.msra.mxu0 %v1050
      %1342 = vmatpush.bf16.msra.mxu0 %v1049
      %1343 = vmatmul.bf16.gmra.mxu0 %v461
      %v1344 = vpop.f32.mrf.mxu0
      %v1345 = vadd.f32 %v1332, %v1344
      %v1346 = vpop.f32.mrf.mxu0
      %1347 = vdwg.mxu0
      %1348 = vmatpush.bf16.msra.mxu0 %v1064
      %1349 = vmatpush.bf16.msra.mxu0 %v1063
      %1350 = vmatpush.bf16.msra.mxu0 %v1062
      %1351 = vmatpush.bf16.msra.mxu0 %v1061
      %1352 = vmatpush.bf16.msra.mxu0 %v1060
      %1353 = vmatpush.bf16.msra.mxu0 %v1059
      %1354 = vmatpush.bf16.msra.mxu0 %v1058
      %1355 = vmatpush.bf16.msra.mxu0 %v1057
      %1356 = vmatmul.bf16.gmra.mxu0 %v462
      %v1357 = vpop.f32.mrf.mxu0
      %v1358 = vadd.f32 %v1345, %v1357
      %v1359 = vpop.f32.mrf.mxu0
      %1360 = vdwg.mxu0
      %1361 = vmatpush.bf16.msra.mxu0 %v1072
      %1362 = vmatpush.bf16.msra.mxu0 %v1071
      %1363 = vmatpush.bf16.msra.mxu0 %v1070
      %1364 = vmatpush.bf16.msra.mxu0 %v1069
      %1365 = vmatpush.bf16.msra.mxu0 %v1068
      %1366 = vmatpush.bf16.msra.mxu0 %v1067
      %1367 = vmatpush.bf16.msra.mxu0 %v1066
      %1368 = vmatpush.bf16.msra.mxu0 %v1065
      %1369 = vmatmul.bf16.gmra.mxu0 %v465
      %v1370 = vpop.f32.mrf.mxu0
      %v1371 = vadd.f32 %v1358, %v1370
      %v1372 = vpop.f32.mrf.mxu0
      %1373 = vdwg.mxu0
      %1374 = vmatpush.bf16.msra.mxu0 %v1080
      %1375 = vmatpush.bf16.msra.mxu0 %v1079
      %1376 = vmatpush.bf16.msra.mxu0 %v1078
      %1377 = vmatpush.bf16.msra.mxu0 %v1077
      %1378 = vmatpush.bf16.msra.mxu0 %v1076
      %1379 = vmatpush.bf16.msra.mxu0 %v1075
      %1380 = vmatpush.bf16.msra.mxu0 %v1074
      %1381 = vmatpush.bf16.msra.mxu0 %v1073
      %1382 = vmatmul.bf16.gmra.mxu0 %v466
      %v1383 = vpop.f32.mrf.mxu0
      %v1384 = vadd.f32 %v1371, %v1383
      %v1385 = vpop.f32.mrf.mxu0
      %1386 = vdwg.mxu0
      %1387 = vmatpush.bf16.msra.mxu0 %v1088
      %1388 = vmatpush.bf16.msra.mxu0 %v1087
      %1389 = vmatpush.bf16.msra.mxu0 %v1086
      %1390 = vmatpush.bf16.msra.mxu0 %v1085
      %1391 = vmatpush.bf16.msra.mxu0 %v1084
      %1392 = vmatpush.bf16.msra.mxu0 %v1083
      %1393 = vmatpush.bf16.msra.mxu0 %v1082
      %1394 = vmatpush.bf16.msra.mxu0 %v1081
      %1395 = vmatmul.bf16.gmra.mxu0 %v467
      %v1396 = vpop.f32.mrf.mxu0
      %v1397 = vadd.f32 %v1384, %v1396
      %v1398 = vpop.f32.mrf.mxu0
      %1399 = vdwg.mxu0
      %1400 = vmatpush.bf16.msra.mxu0 %v1096
      %1401 = vmatpush.bf16.msra.mxu0 %v1095
      %1402 = vmatpush.bf16.msra.mxu0 %v1094
      %1403 = vmatpush.bf16.msra.mxu0 %v1093
      %1404 = vmatpush.bf16.msra.mxu0 %v1092
      %1405 = vmatpush.bf16.msra.mxu0 %v1091
      %1406 = vmatpush.bf16.msra.mxu0 %v1090
      %1407 = vmatpush.bf16.msra.mxu0 %v1089
      %1408 = vmatmul.bf16.gmra.mxu0 %v468
      %v1409 = vpop.f32.mrf.mxu0
      %v1410 = vadd.f32 %v1397, %v1409
      %v1411 = vpop.f32.mrf.mxu0
      %1412 = vdwg.mxu0
      %1413 = vmatpush.bf16.msra.mxu0 %v1104
      %1414 = vmatpush.bf16.msra.mxu0 %v1103
      %1415 = vmatpush.bf16.msra.mxu0 %v1102
      %1416 = vmatpush.bf16.msra.mxu0 %v1101
      %1417 = vmatpush.bf16.msra.mxu0 %v1100
      %1418 = vmatpush.bf16.msra.mxu0 %v1099
      %1419 = vmatpush.bf16.msra.mxu0 %v1098
      %1420 = vmatpush.bf16.msra.mxu0 %v1097
      %1421 = vmatmul.bf16.gmra.mxu0 %v469
      %v1422 = vpop.f32.mrf.mxu0
      %v1423 = vadd.f32 %v1410, %v1422
      %v1424 = vpop.f32.mrf.mxu0
      %1425 = vdwg.mxu0
      %1426 = vmatpush.bf16.msra.mxu0 %v1112
      %1427 = vmatpush.bf16.msra.mxu0 %v1111
      %1428 = vmatpush.bf16.msra.mxu0 %v1110
      %1429 = vmatpush.bf16.msra.mxu0 %v1109
      %1430 = vmatpush.bf16.msra.mxu0 %v1108
      %1431 = vmatpush.bf16.msra.mxu0 %v1107
      %1432 = vmatpush.bf16.msra.mxu0 %v1106
      %1433 = vmatpush.bf16.msra.mxu0 %v1105
      %1434 = vmatmul.bf16.gmra.mxu0 %v470
      %v1435 = vpop.f32.mrf.mxu0
      %v1436 = vadd.f32 %v1423, %v1435
      %v1437 = vpop.f32.mrf.mxu0
      %1438 = vdwg.mxu0
      %1439 = vmatpush.bf16.msra.mxu0 %v1120
      %1440 = vmatpush.bf16.msra.mxu0 %v1119
      %1441 = vmatpush.bf16.msra.mxu0 %v1118
      %1442 = vmatpush.bf16.msra.mxu0 %v1117
      %1443 = vmatpush.bf16.msra.mxu0 %v1116
      %1444 = vmatpush.bf16.msra.mxu0 %v1115
      %1445 = vmatpush.bf16.msra.mxu0 %v1114
      %1446 = vmatpush.bf16.msra.mxu0 %v1113
      %1447 = vmatmul.bf16.gmra.mxu0 %v471
      %v1448 = vpop.f32.mrf.mxu0
      %v1449 = vadd.f32 %v1436, %v1448
      %v1450 = vpop.f32.mrf.mxu0
      %1451 = vdwg.mxu0
      %1452 = vmatpush.bf16.msra.mxu0 %v1128
      %1453 = vmatpush.bf16.msra.mxu0 %v1127
      %1454 = vmatpush.bf16.msra.mxu0 %v1126
      %1455 = vmatpush.bf16.msra.mxu0 %v1125
      %1456 = vmatpush.bf16.msra.mxu0 %v1124
      %1457 = vmatpush.bf16.msra.mxu0 %v1123
      %1458 = vmatpush.bf16.msra.mxu0 %v1122
      %1459 = vmatpush.bf16.msra.mxu0 %v1121
      %1460 = vmatmul.bf16.gmra.mxu0 %v472
      %v1461 = vpop.f32.mrf.mxu0
      %v1462 = vadd.f32 %v1449, %v1461
      %v1463 = vpop.f32.mrf.mxu0
      %1464 = vdwg.mxu0
      %v1465 = vadd.f32 %v194, %v1462
      %1466 = vst [vmem:[#allocation2] sm:$0x3] %v1465
      // Predicated region
      $region33: #{model_forward.10} parent=27 // pred_check
        %p1467 = pneg %p189
      $region34: #{model_forward.10} parent=27 // pred_check_branch
        %1469 = sbr.rel (%p1467) target = $region36
      $region35: #{model_forward.10} parent=27 // pred_region
        %v1470 = vld [vmem:[#allocation2] sm:$0x3]
        %1471 = vst [vmem:[%s188] sm:$0x3] %v1470
      $region36: #{model_forward.10} parent=27 // pred_fallthru
        _
      %p1472 = scmp.lt.s32.totalorder %s17, 1
      %s1473 = scalar_select %p1472, %s17, 1
      %s1474 = smul.addr %s1473, 2
      %s1475 = scalar_lea.vmem %s2, %s1474
      // Predicated region
      $region37: #{model_forward.10} parent=27 // pred_check
        %p1476 = pneg %p99
      $region38: #{model_forward.10} parent=27 // pred_check_branch
        %1478 = sbr.rel (%p1476) target = $region40
      $region39: #{model_forward.10} parent=27 // pred_region
        _
      $region40: #{model_forward.10} parent=27 // pred_fallthru
        _
    $region28: #{model_forward.10} parent=5 // pred_fallthru
      _
    %p1479 = scmp.le.s32.totalorder 2, %s8
    // Predicated region
    $region41: #{model_forward.10} parent=5 // pred_check
      %p1480 = pneg %p1479
    $region42: #{model_forward.10} parent=5 // pred_check_branch
      %1482 = sbr.rel (%p1480) target = $region44
    $region43: #{model_forward.10} parent=5 // pred_region
      %s1483 = ssub.s32 %s8, 2
      // Predicated region
      $region45: #{model_forward.10} parent=43 // pred_check
        %p1484 = pneg %p105
      $region46: #{model_forward.10} parent=43 // pred_check_branch
        %1486 = sbr.rel (%p1484) target = $region48
      $region47: #{model_forward.10} parent=43 // pred_region
        %p1487 = scmp.lt.s32.totalorder %s19, 1
        %s1488 = scalar_select %p1487, %s19, 1
        %s1489 = smul.addr %s1488, 2
        %s1490 = scalar_lea.vmem %s2, %s1489
      $region48: #{model_forward.10} parent=43 // pred_fallthru
        _
    $region44: #{model_forward.10} parent=5 // pred_fallthru
      _
  $region6: #{model_forward.10} parent=0 // loop_footer
    %s12 = sadd.s32 1, %s8
  $region7: #{model_forward.10} parent=0 // loop_footer_branch
    %7 = sbr.rel target = $region3
  $region8: #{model_forward.10} parent=0 // loop_exit
    _

</llo_original>
